<compile_context>
chip_gen: v6e
topology: v6e:2x2x1
jax: 0.10.0
libtpu: 0.0.40
codegen_flags: <defaults>
</compile_context>

<pallas_src>
import functools
import math

import jax
import jax.numpy as jnp
from jax.experimental import pallas as pl
from jax.experimental.pallas import tpu as pltpu


def _layernorm(x, w, b, eps=1e-5):
    mu = jnp.mean(x, axis=-1, keepdims=True)
    var = jnp.mean((x - mu) ** 2, axis=-1, keepdims=True)
    return (x - mu) * jax.lax.rsqrt(var + eps) * w + b


def _gelu_exact(x):
    # PyTorch nn.GELU default (erf-based, exact)
    return 0.5 * x * (1.0 + jax.lax.erf(x * (1.0 / math.sqrt(2.0))))


def encoder_kernel(x_ref, pos_ref,
                   ln1w_ref, ln1b_ref,
                   wq_ref, wk_ref, wv_ref,
                   wproj_ref, projb_ref,
                   ln2w_ref, ln2b_ref,
                   fc1w_ref, fc1b_ref,
                   fc2w_ref, fc2b_ref,
                   o_ref,
                   *, num_layers, num_heads, batch, seq):
    BN, C = x_ref.shape
    hd = C // num_heads

    # Fused positional-embedding add; activation stays in VMEM/vregs from here on.
    x = x_ref[...] + pos_ref[...]                       # [B*N, C] float32

    for l in range(num_layers):                         # static unroll (small depth)
        # ---------------- Attention branch ----------------
        xn = _layernorm(x, ln1w_ref[l], ln1b_ref[l])    # f32
        xb = xn.astype(jnp.bfloat16)                    # cast once at the MXU boundary

        attn_out = jnp.zeros((BN, C), jnp.float32)
        for h in range(num_heads):                      # per-head weights: no lane slicing / concat
            # scale is already folded into wq (wrapper), so no logit scaling needed.
            qh = jnp.dot(xb, wq_ref[l, h], preferred_element_type=jnp.float32)   # [BN, hd]
            kh = jnp.dot(xb, wk_ref[l, h], preferred_element_type=jnp.float32)
            vh = jnp.dot(xb, wv_ref[l, h], preferred_element_type=jnp.float32)

            # Batched (over B) attention einsums; sublane-aligned reshapes only.
            q3 = qh.reshape(batch, seq, hd).astype(jnp.bfloat16)
            k3 = kh.reshape(batch, seq, hd).astype(jnp.bfloat16)
            v3 = vh.reshape(batch, seq, hd).astype(jnp.bfloat16)

            s = jnp.einsum('bnd,bmd->bnm', q3, k3,
                           preferred_element_type=jnp.float32)                   # [B, N, N] f32
            s = s - jnp.max(s, axis=-1, keepdims=True)
            p = jnp.exp(s)
            p = p * pl.reciprocal(jnp.sum(p, axis=-1, keepdims=True), approx=True)

            ctx = jnp.einsum('bnm,bmd->bnd', p.astype(jnp.bfloat16), v3,
                             preferred_element_type=jnp.float32)                 # [B, N, hd] f32
            ctx2 = ctx.reshape(BN, hd).astype(jnp.bfloat16)

            # proj(concat_h ctx_h) == sum_h ctx_h @ Wproj_h : accumulate, no concatenate.
            attn_out = attn_out + jnp.dot(ctx2, wproj_ref[l, h],
                                          preferred_element_type=jnp.float32)
        x = x + attn_out + projb_ref[l]                 # residual (+ proj bias)

        # ---------------- MLP branch ----------------
        xn2 = _layernorm(x, ln2w_ref[l], ln2b_ref[l])
        h1 = jnp.dot(xn2.astype(jnp.bfloat16), fc1w_ref[l],
                     preferred_element_type=jnp.float32) + fc1b_ref[l]
        h1 = _gelu_exact(h1)
        h2 = jnp.dot(h1.astype(jnp.bfloat16), fc2w_ref[l],
                     preferred_element_type=jnp.float32) + fc2b_ref[l]
        x = x + h2                                      # residual

    o_ref[...] = x


def transformer_encoder(x, pos, blocks_params, *, num_heads):
    """Fused encoder: x, pos are [B, N, C] float32; blocks_params is a list of per-block dicts."""
    B, N, C = x.shape
    L = len(blocks_params)
    hd = C // num_heads
    scale = hd ** -0.5

    stack = lambda key: jnp.stack([p[key] for p in blocks_params], axis=0)

    # qkv weight [L, C, 3C]; the 3C output dim is laid out (3, H, hd) exactly as the
    # PyTorch reshape(B, N, 3, H, hd) assumes. Pre-split per head, fold qk scale into Wq.
    qkv_w = stack("qkv_w").reshape(L, C, 3, num_heads, hd)
    wq = jnp.transpose(qkv_w[:, :, 0], (0, 2, 1, 3)) * scale     # [L, H, C, hd]
    wk = jnp.transpose(qkv_w[:, :, 1], (0, 2, 1, 3))
    wv = jnp.transpose(qkv_w[:, :, 2], (0, 2, 1, 3))
    wproj = stack("proj_w").reshape(L, num_heads, hd, C)         # [L, H, hd, C]

    bf16 = lambda a: a.astype(jnp.bfloat16)
    weights = [
        stack("ln1_w"), stack("ln1_b"),                          # [L, 1, C] f32
        bf16(wq), bf16(wk), bf16(wv),                            # bf16 MXU operands
        bf16(wproj), stack("proj_b"),
        stack("ln2_w"), stack("ln2_b"),
        bf16(stack("fc1_w")), stack("fc1_b"),
        bf16(stack("fc2_w")), stack("fc2_b"),
    ]

    kernel = functools.partial(encoder_kernel, num_layers=L, num_heads=num_heads,
                               batch=B, seq=N)

    # Fold batch into the sublane dim: one grid step, whole-array VMEM-resident blocks
    # (single buffered — no per-step double-buffering since there is no grid).
    x_flat = x.reshape(B * N, C)
    pos_flat = pos.reshape(B * N, C)
    n_in = 2 + len(weights)

    out = pl.pallas_call(
        kernel,
        out_shape=jax.ShapeDtypeStruct((B * N, C), jnp.float32),
        in_specs=[pl.BlockSpec(memory_space=pltpu.MemorySpace.VMEM)] * n_in,
        out_specs=pl.BlockSpec(memory_space=pltpu.MemorySpace.VMEM),
    )(x_flat, pos_flat, *weights)
    return out.reshape(B, N, C)


def init_block_params(key, dim, num_heads, hidden):
    ks = jax.random.split(key, 4)
    std = 0.02
    return {
        # LayerNorm params (PyTorch default init: ones / zeros)
        "ln1_w": jnp.ones((1, dim), jnp.float32),
        "ln1_b": jnp.zeros((1, dim), jnp.float32),
        "ln2_w": jnp.ones((1, dim), jnp.float32),
        "ln2_b": jnp.zeros((1, dim), jnp.float32),
        # Linear weights stored as [in, out] so the kernel does x @ W
        "qkv_w": std * jax.random.normal(ks[0], (dim, 3 * dim), jnp.float32),   # qkv_bias=False
        "proj_w": std * jax.random.normal(ks[1], (dim, dim), jnp.float32),
        "proj_b": jnp.zeros((1, dim), jnp.float32),
        "fc1_w": std * jax.random.normal(ks[2], (dim, hidden), jnp.float32),
        "fc1_b": jnp.zeros((1, hidden), jnp.float32),
        "fc2_w": std * jax.random.normal(ks[3], (hidden, dim), jnp.float32),
        "fc2_b": jnp.zeros((1, dim), jnp.float32),
    }


if __name__ == "__main__":
    # encoder_cfg: NUM_LAYERS=2, NUM_FEATURES=32, NUM_HEADS=4, NUM_HIDDEN_FEATURES=64
    B, N, C = 2, 8, 32
    NUM_HEADS = 4
    HIDDEN = 64
    DEPTH = 2

    key = jax.random.PRNGKey(0)
    kx, kpos, kparams = jax.random.split(key, 3)
    x = jax.random.normal(kx, (B, N, C), jnp.float32)
    pos = jax.random.normal(kpos, (B, N, C), jnp.float32)

    block_keys = jax.random.split(kparams, DEPTH)
    blocks_params = [init_block_params(block_keys[i], C, NUM_HEADS, HIDDEN)
                     for i in range(DEPTH)]

    encoder = jax.jit(functools.partial(transformer_encoder, num_heads=NUM_HEADS))
    out = encoder(x, pos, blocks_params)
    jax.block_until_ready(out)
    assert out.shape == (B, N, C) and out.dtype == jnp.float32
    print("KERNEL_OK")
</pallas_src>

<mosaic_0001>
module attributes {stable_mosaic.version = 11 : i64} {
  func.func @encoder_kernel(%arg0: memref<16x32xf32, #tpu.memory_space<vmem>>, %arg1: memref<16x32xf32, #tpu.memory_space<vmem>>, %arg2: memref<2x1x32xf32, #tpu.memory_space<vmem>>, %arg3: memref<2x1x32xf32, #tpu.memory_space<vmem>>, %arg4: memref<2x4x32x8xbf16, #tpu.memory_space<vmem>>, %arg5: memref<2x4x32x8xbf16, #tpu.memory_space<vmem>>, %arg6: memref<2x4x32x8xbf16, #tpu.memory_space<vmem>>, %arg7: memref<2x4x8x32xbf16, #tpu.memory_space<vmem>>, %arg8: memref<2x1x32xf32, #tpu.memory_space<vmem>>, %arg9: memref<2x1x32xf32, #tpu.memory_space<vmem>>, %arg10: memref<2x1x32xf32, #tpu.memory_space<vmem>>, %arg11: memref<2x32x64xbf16, #tpu.memory_space<vmem>>, %arg12: memref<2x1x64xf32, #tpu.memory_space<vmem>>, %arg13: memref<2x64x32xbf16, #tpu.memory_space<vmem>>, %arg14: memref<2x1x32xf32, #tpu.memory_space<vmem>>, %arg15: memref<16x32xf32, #tpu.memory_space<vmem>>) attributes {dimension_semantics = [], scalar_prefetch = 0 : i64, scratch_operands = 0 : i64, tpu.core_type = #tpu.core_type<tc>} {
    %c0 = arith.constant 0 : index
    %c0_0 = arith.constant 0 : index
    %0 = vector.load %arg0[%c0, %c0_0] : memref<16x32xf32, #tpu.memory_space<vmem>>, vector<16x32xf32>
    %c0_1 = arith.constant 0 : index
    %c0_2 = arith.constant 0 : index
    %1 = vector.load %arg1[%c0_1, %c0_2] : memref<16x32xf32, #tpu.memory_space<vmem>>, vector<16x32xf32>
    %2 = arith.addf %0, %1 : vector<16x32xf32>
    %c0_3 = arith.constant 0 : index
    %c0_4 = arith.constant 0 : index
    %c0_5 = arith.constant 0 : index
    %3 = vector.load %arg2[%c0_3, %c0_4, %c0_5] : memref<2x1x32xf32, #tpu.memory_space<vmem>>, vector<1x1x32xf32>
    %4 = vector.shape_cast %3 : vector<1x1x32xf32> to vector<1x32xf32>
    %c0_6 = arith.constant 0 : index
    %c0_7 = arith.constant 0 : index
    %c0_8 = arith.constant 0 : index
    %5 = vector.load %arg3[%c0_6, %c0_7, %c0_8] : memref<2x1x32xf32, #tpu.memory_space<vmem>>, vector<1x1x32xf32>
    %6 = vector.shape_cast %5 : vector<1x1x32xf32> to vector<1x32xf32>
    %cst = arith.constant dense<0.000000e+00> : vector<16xf32>
    %7 = vector.multi_reduction <add>, %2, %cst [1] : vector<16x32xf32> to vector<16xf32>
    %8 = vector.shape_cast %7 : vector<16xf32> to vector<16x1xf32>
    %cst_9 = arith.constant 3.200000e+01 : f32
    %9 = vector.broadcast %cst_9 : f32 to vector<16x1xf32>
    %10 = arith.divf %8, %9 : vector<16x1xf32>
    %11 = vector.broadcast %10 : vector<16x1xf32> to vector<16x32xf32>
    %12 = arith.subf %2, %11 : vector<16x32xf32>
    %13 = arith.mulf %12, %12 : vector<16x32xf32>
    %cst_10 = arith.constant dense<0.000000e+00> : vector<16xf32>
    %14 = vector.multi_reduction <add>, %13, %cst_10 [1] : vector<16x32xf32> to vector<16xf32>
    %15 = vector.shape_cast %14 : vector<16xf32> to vector<16x1xf32>
    %cst_11 = arith.constant 3.200000e+01 : f32
    %16 = vector.broadcast %cst_11 : f32 to vector<16x1xf32>
    %17 = arith.divf %15, %16 : vector<16x1xf32>
    %18 = vector.broadcast %10 : vector<16x1xf32> to vector<16x32xf32>
    %19 = arith.subf %2, %18 : vector<16x32xf32>
    %cst_12 = arith.constant 9.99999974E-6 : f32
    %20 = vector.broadcast %cst_12 : f32 to vector<16x1xf32>
    %21 = arith.addf %17, %20 : vector<16x1xf32>
    %22 = math.rsqrt %21 : vector<16x1xf32>
    %23 = vector.broadcast %22 : vector<16x1xf32> to vector<16x32xf32>
    %24 = arith.mulf %19, %23 : vector<16x32xf32>
    %25 = vector.broadcast %4 : vector<1x32xf32> to vector<16x32xf32>
    %26 = arith.mulf %24, %25 : vector<16x32xf32>
    %27 = vector.broadcast %6 : vector<1x32xf32> to vector<16x32xf32>
    %28 = arith.addf %26, %27 : vector<16x32xf32>
    %29 = arith.truncf %28 : vector<16x32xf32> to vector<16x32xbf16>
    %cst_13 = arith.constant 0.000000e+00 : f32
    %30 = vector.broadcast %cst_13 : f32 to vector<16x32xf32>
    %c0_14 = arith.constant 0 : index
    %c0_15 = arith.constant 0 : index
    %c0_16 = arith.constant 0 : index
    %c0_17 = arith.constant 0 : index
    %31 = vector.load %arg4[%c0_14, %c0_15, %c0_16, %c0_17] : memref<2x4x32x8xbf16, #tpu.memory_space<vmem>>, vector<1x1x32x8xbf16>
    %32 = vector.shape_cast %31 : vector<1x1x32x8xbf16> to vector<32x8xbf16>
    %cst_18 = arith.constant dense<0.000000e+00> : vector<16x8xf32>
    %33 = tpu.matmul %29, %32, %cst_18 {dimension_numbers = #tpu.dot_dimension_numbers<[1], [0], [0], [1], [0, 0, 1, 1], [], []>} : vector<16x32xbf16>, vector<32x8xbf16>, vector<16x8xf32> -> vector<16x8xf32>
    %c0_19 = arith.constant 0 : index
    %c0_20 = arith.constant 0 : index
    %c0_21 = arith.constant 0 : index
    %c0_22 = arith.constant 0 : index
    %34 = vector.load %arg5[%c0_19, %c0_20, %c0_21, %c0_22] : memref<2x4x32x8xbf16, #tpu.memory_space<vmem>>, vector<1x1x32x8xbf16>
    %35 = vector.shape_cast %34 : vector<1x1x32x8xbf16> to vector<32x8xbf16>
    %cst_23 = arith.constant dense<0.000000e+00> : vector<16x8xf32>
    %36 = tpu.matmul %29, %35, %cst_23 {dimension_numbers = #tpu.dot_dimension_numbers<[1], [0], [0], [1], [0, 0, 1, 1], [], []>} : vector<16x32xbf16>, vector<32x8xbf16>, vector<16x8xf32> -> vector<16x8xf32>
    %c0_24 = arith.constant 0 : index
    %c0_25 = arith.constant 0 : index
    %c0_26 = arith.constant 0 : index
    %c0_27 = arith.constant 0 : index
    %37 = vector.load %arg6[%c0_24, %c0_25, %c0_26, %c0_27] : memref<2x4x32x8xbf16, #tpu.memory_space<vmem>>, vector<1x1x32x8xbf16>
    %38 = vector.shape_cast %37 : vector<1x1x32x8xbf16> to vector<32x8xbf16>
    %cst_28 = arith.constant dense<0.000000e+00> : vector<16x8xf32>
    %39 = tpu.matmul %29, %38, %cst_28 {dimension_numbers = #tpu.dot_dimension_numbers<[1], [0], [0], [1], [0, 0, 1, 1], [], []>} : vector<16x32xbf16>, vector<32x8xbf16>, vector<16x8xf32> -> vector<16x8xf32>
    %40 = vector.shape_cast %33 : vector<16x8xf32> to vector<2x8x8xf32>
    %41 = arith.truncf %40 : vector<2x8x8xf32> to vector<2x8x8xbf16>
    %42 = vector.shape_cast %36 : vector<16x8xf32> to vector<2x8x8xf32>
    %43 = arith.truncf %42 : vector<2x8x8xf32> to vector<2x8x8xbf16>
    %44 = vector.shape_cast %39 : vector<16x8xf32> to vector<2x8x8xf32>
    %45 = arith.truncf %44 : vector<2x8x8xf32> to vector<2x8x8xbf16>
    "tpu.trace_start"() <{level = 10 : i32, message = "bnd,bmd->bnm"}> : () -> ()
    %cst_29 = arith.constant dense<0.000000e+00> : vector<2x8x8xf32>
    %46 = tpu.matmul %41, %43, %cst_29 {dimension_numbers = #tpu.dot_dimension_numbers<[2], [2], [1], [1], [0, 0, 0, 1, 1, 1], [0], [0]>} : vector<2x8x8xbf16>, vector<2x8x8xbf16>, vector<2x8x8xf32> -> vector<2x8x8xf32>
    "tpu.trace_stop"() : () -> ()
    %cst_30 = arith.constant dense<0xFF800000> : vector<2x8xf32>
    %47 = vector.multi_reduction <maximumf>, %46, %cst_30 [2] : vector<2x8x8xf32> to vector<2x8xf32>
    %48 = vector.shape_cast %47 : vector<2x8xf32> to vector<2x8x1xf32>
    %49 = vector.broadcast %48 : vector<2x8x1xf32> to vector<2x8x8xf32>
    %50 = arith.subf %46, %49 : vector<2x8x8xf32>
    %51 = math.exp %50 : vector<2x8x8xf32>
    %cst_31 = arith.constant dense<0.000000e+00> : vector<2x8xf32>
    %52 = vector.multi_reduction <add>, %51, %cst_31 [2] : vector<2x8x8xf32> to vector<2x8xf32>
    %53 = vector.shape_cast %52 : vector<2x8xf32> to vector<2x8x1xf32>
    %54 = tpu.reciprocal %53 {approx = true} : vector<2x8x1xf32> -> vector<2x8x1xf32>
    %55 = vector.broadcast %54 : vector<2x8x1xf32> to vector<2x8x8xf32>
    %56 = arith.mulf %51, %55 : vector<2x8x8xf32>
    %57 = arith.truncf %56 : vector<2x8x8xf32> to vector<2x8x8xbf16>
    "tpu.trace_start"() <{level = 10 : i32, message = "bnm,bmd->bnd"}> : () -> ()
    %cst_32 = arith.constant dense<0.000000e+00> : vector<2x8x8xf32>
    %58 = tpu.matmul %57, %45, %cst_32 {dimension_numbers = #tpu.dot_dimension_numbers<[2], [1], [1], [2], [0, 0, 0, 1, 1, 2], [0], [0]>} : vector<2x8x8xbf16>, vector<2x8x8xbf16>, vector<2x8x8xf32> -> vector<2x8x8xf32>
    "tpu.trace_stop"() : () -> ()
    %59 = vector.shape_cast %58 : vector<2x8x8xf32> to vector<16x8xf32>
    %60 = arith.truncf %59 : vector<16x8xf32> to vector<16x8xbf16>
    %c0_33 = arith.constant 0 : index
    %c0_34 = arith.constant 0 : index
    %c0_35 = arith.constant 0 : index
    %c0_36 = arith.constant 0 : index
    %61 = vector.load %arg7[%c0_33, %c0_34, %c0_35, %c0_36] : memref<2x4x8x32xbf16, #tpu.memory_space<vmem>>, vector<1x1x8x32xbf16>
    %62 = vector.shape_cast %61 : vector<1x1x8x32xbf16> to vector<8x32xbf16>
    %cst_37 = arith.constant dense<0.000000e+00> : vector<16x32xf32>
    %63 = tpu.matmul %60, %62, %cst_37 {dimension_numbers = #tpu.dot_dimension_numbers<[1], [0], [0], [1], [0, 0, 1, 1], [], []>} : vector<16x8xbf16>, vector<8x32xbf16>, vector<16x32xf32> -> vector<16x32xf32>
    %64 = arith.addf %30, %63 : vector<16x32xf32>
    %c0_38 = arith.constant 0 : index
    %c1 = arith.constant 1 : index
    %c0_39 = arith.constant 0 : index
    %c0_40 = arith.constant 0 : index
    %65 = vector.load %arg4[%c0_38, %c1, %c0_39, %c0_40] : memref<2x4x32x8xbf16, #tpu.memory_space<vmem>>, vector<1x1x32x8xbf16>
    %66 = vector.shape_cast %65 : vector<1x1x32x8xbf16> to vector<32x8xbf16>
    %cst_41 = arith.constant dense<0.000000e+00> : vector<16x8xf32>
    %67 = tpu.matmul %29, %66, %cst_41 {dimension_numbers = #tpu.dot_dimension_numbers<[1], [0], [0], [1], [0, 0, 1, 1], [], []>} : vector<16x32xbf16>, vector<32x8xbf16>, vector<16x8xf32> -> vector<16x8xf32>
    %c0_42 = arith.constant 0 : index
    %c1_43 = arith.constant 1 : index
    %c0_44 = arith.constant 0 : index
    %c0_45 = arith.constant 0 : index
    %68 = vector.load %arg5[%c0_42, %c1_43, %c0_44, %c0_45] : memref<2x4x32x8xbf16, #tpu.memory_space<vmem>>, vector<1x1x32x8xbf16>
    %69 = vector.shape_cast %68 : vector<1x1x32x8xbf16> to vector<32x8xbf16>
    %cst_46 = arith.constant dense<0.000000e+00> : vector<16x8xf32>
    %70 = tpu.matmul %29, %69, %cst_46 {dimension_numbers = #tpu.dot_dimension_numbers<[1], [0], [0], [1], [0, 0, 1, 1], [], []>} : vector<16x32xbf16>, vector<32x8xbf16>, vector<16x8xf32> -> vector<16x8xf32>
    %c0_47 = arith.constant 0 : index
    %c1_48 = arith.constant 1 : index
    %c0_49 = arith.constant 0 : index
    %c0_50 = arith.constant 0 : index
    %71 = vector.load %arg6[%c0_47, %c1_48, %c0_49, %c0_50] : memref<2x4x32x8xbf16, #tpu.memory_space<vmem>>, vector<1x1x32x8xbf16>
    %72 = vector.shape_cast %71 : vector<1x1x32x8xbf16> to vector<32x8xbf16>
    %cst_51 = arith.constant dense<0.000000e+00> : vector<16x8xf32>
    %73 = tpu.matmul %29, %72, %cst_51 {dimension_numbers = #tpu.dot_dimension_numbers<[1], [0], [0], [1], [0, 0, 1, 1], [], []>} : vector<16x32xbf16>, vector<32x8xbf16>, vector<16x8xf32> -> vector<16x8xf32>
    %74 = vector.shape_cast %67 : vector<16x8xf32> to vector<2x8x8xf32>
    %75 = arith.truncf %74 : vector<2x8x8xf32> to vector<2x8x8xbf16>
    %76 = vector.shape_cast %70 : vector<16x8xf32> to vector<2x8x8xf32>
    %77 = arith.truncf %76 : vector<2x8x8xf32> to vector<2x8x8xbf16>
    %78 = vector.shape_cast %73 : vector<16x8xf32> to vector<2x8x8xf32>
    %79 = arith.truncf %78 : vector<2x8x8xf32> to vector<2x8x8xbf16>
    "tpu.trace_start"() <{level = 10 : i32, message = "bnd,bmd->bnm"}> : () -> ()
    %cst_52 = arith.constant dense<0.000000e+00> : vector<2x8x8xf32>
    %80 = tpu.matmul %75, %77, %cst_52 {dimension_numbers = #tpu.dot_dimension_numbers<[2], [2], [1], [1], [0, 0, 0, 1, 1, 1], [0], [0]>} : vector<2x8x8xbf16>, vector<2x8x8xbf16>, vector<2x8x8xf32> -> vector<2x8x8xf32>
    "tpu.trace_stop"() : () -> ()
    %cst_53 = arith.constant dense<0xFF800000> : vector<2x8xf32>
    %81 = vector.multi_reduction <maximumf>, %80, %cst_53 [2] : vector<2x8x8xf32> to vector<2x8xf32>
    %82 = vector.shape_cast %81 : vector<2x8xf32> to vector<2x8x1xf32>
    %83 = vector.broadcast %82 : vector<2x8x1xf32> to vector<2x8x8xf32>
    %84 = arith.subf %80, %83 : vector<2x8x8xf32>
    %85 = math.exp %84 : vector<2x8x8xf32>
    %cst_54 = arith.constant dense<0.000000e+00> : vector<2x8xf32>
    %86 = vector.multi_reduction <add>, %85, %cst_54 [2] : vector<2x8x8xf32> to vector<2x8xf32>
    %87 = vector.shape_cast %86 : vector<2x8xf32> to vector<2x8x1xf32>
    %88 = tpu.reciprocal %87 {approx = true} : vector<2x8x1xf32> -> vector<2x8x1xf32>
    %89 = vector.broadcast %88 : vector<2x8x1xf32> to vector<2x8x8xf32>
    %90 = arith.mulf %85, %89 : vector<2x8x8xf32>
    %91 = arith.truncf %90 : vector<2x8x8xf32> to vector<2x8x8xbf16>
    "tpu.trace_start"() <{level = 10 : i32, message = "bnm,bmd->bnd"}> : () -> ()
    %cst_55 = arith.constant dense<0.000000e+00> : vector<2x8x8xf32>
    %92 = tpu.matmul %91, %79, %cst_55 {dimension_numbers = #tpu.dot_dimension_numbers<[2], [1], [1], [2], [0, 0, 0, 1, 1, 2], [0], [0]>} : vector<2x8x8xbf16>, vector<2x8x8xbf16>, vector<2x8x8xf32> -> vector<2x8x8xf32>
    "tpu.trace_stop"() : () -> ()
    %93 = vector.shape_cast %92 : vector<2x8x8xf32> to vector<16x8xf32>
    %94 = arith.truncf %93 : vector<16x8xf32> to vector<16x8xbf16>
    %c0_56 = arith.constant 0 : index
    %c1_57 = arith.constant 1 : index
    %c0_58 = arith.constant 0 : index
    %c0_59 = arith.constant 0 : index
    %95 = vector.load %arg7[%c0_56, %c1_57, %c0_58, %c0_59] : memref<2x4x8x32xbf16, #tpu.memory_space<vmem>>, vector<1x1x8x32xbf16>
    %96 = vector.shape_cast %95 : vector<1x1x8x32xbf16> to vector<8x32xbf16>
    %cst_60 = arith.constant dense<0.000000e+00> : vector<16x32xf32>
    %97 = tpu.matmul %94, %96, %cst_60 {dimension_numbers = #tpu.dot_dimension_numbers<[1], [0], [0], [1], [0, 0, 1, 1], [], []>} : vector<16x8xbf16>, vector<8x32xbf16>, vector<16x32xf32> -> vector<16x32xf32>
    %98 = arith.addf %64, %97 : vector<16x32xf32>
    %c0_61 = arith.constant 0 : index
    %c2 = arith.constant 2 : index
    %c0_62 = arith.constant 0 : index
    %c0_63 = arith.constant 0 : index
    %99 = vector.load %arg4[%c0_61, %c2, %c0_62, %c0_63] : memref<2x4x32x8xbf16, #tpu.memory_space<vmem>>, vector<1x1x32x8xbf16>
    %100 = vector.shape_cast %99 : vector<1x1x32x8xbf16> to vector<32x8xbf16>
    %cst_64 = arith.constant dense<0.000000e+00> : vector<16x8xf32>
    %101 = tpu.matmul %29, %100, %cst_64 {dimension_numbers = #tpu.dot_dimension_numbers<[1], [0], [0], [1], [0, 0, 1, 1], [], []>} : vector<16x32xbf16>, vector<32x8xbf16>, vector<16x8xf32> -> vector<16x8xf32>
    %c0_65 = arith.constant 0 : index
    %c2_66 = arith.constant 2 : index
    %c0_67 = arith.constant 0 : index
    %c0_68 = arith.constant 0 : index
    %102 = vector.load %arg5[%c0_65, %c2_66, %c0_67, %c0_68] : memref<2x4x32x8xbf16, #tpu.memory_space<vmem>>, vector<1x1x32x8xbf16>
    %103 = vector.shape_cast %102 : vector<1x1x32x8xbf16> to vector<32x8xbf16>
    %cst_69 = arith.constant dense<0.000000e+00> : vector<16x8xf32>
    %104 = tpu.matmul %29, %103, %cst_69 {dimension_numbers = #tpu.dot_dimension_numbers<[1], [0], [0], [1], [0, 0, 1, 1], [], []>} : vector<16x32xbf16>, vector<32x8xbf16>, vector<16x8xf32> -> vector<16x8xf32>
    %c0_70 = arith.constant 0 : index
    %c2_71 = arith.constant 2 : index
    %c0_72 = arith.constant 0 : index
    %c0_73 = arith.constant 0 : index
    %105 = vector.load %arg6[%c0_70, %c2_71, %c0_72, %c0_73] : memref<2x4x32x8xbf16, #tpu.memory_space<vmem>>, vector<1x1x32x8xbf16>
    %106 = vector.shape_cast %105 : vector<1x1x32x8xbf16> to vector<32x8xbf16>
    %cst_74 = arith.constant dense<0.000000e+00> : vector<16x8xf32>
    %107 = tpu.matmul %29, %106, %cst_74 {dimension_numbers = #tpu.dot_dimension_numbers<[1], [0], [0], [1], [0, 0, 1, 1], [], []>} : vector<16x32xbf16>, vector<32x8xbf16>, vector<16x8xf32> -> vector<16x8xf32>
    %108 = vector.shape_cast %101 : vector<16x8xf32> to vector<2x8x8xf32>
    %109 = arith.truncf %108 : vector<2x8x8xf32> to vector<2x8x8xbf16>
    %110 = vector.shape_cast %104 : vector<16x8xf32> to vector<2x8x8xf32>
    %111 = arith.truncf %110 : vector<2x8x8xf32> to vector<2x8x8xbf16>
    %112 = vector.shape_cast %107 : vector<16x8xf32> to vector<2x8x8xf32>
    %113 = arith.truncf %112 : vector<2x8x8xf32> to vector<2x8x8xbf16>
    "tpu.trace_start"() <{level = 10 : i32, message = "bnd,bmd->bnm"}> : () -> ()
    %cst_75 = arith.constant dense<0.000000e+00> : vector<2x8x8xf32>
    %114 = tpu.matmul %109, %111, %cst_75 {dimension_numbers = #tpu.dot_dimension_numbers<[2], [2], [1], [1], [0, 0, 0, 1, 1, 1], [0], [0]>} : vector<2x8x8xbf16>, vector<2x8x8xbf16>, vector<2x8x8xf32> -> vector<2x8x8xf32>
    "tpu.trace_stop"() : () -> ()
    %cst_76 = arith.constant dense<0xFF800000> : vector<2x8xf32>
    %115 = vector.multi_reduction <maximumf>, %114, %cst_76 [2] : vector<2x8x8xf32> to vector<2x8xf32>
    %116 = vector.shape_cast %115 : vector<2x8xf32> to vector<2x8x1xf32>
    %117 = vector.broadcast %116 : vector<2x8x1xf32> to vector<2x8x8xf32>
    %118 = arith.subf %114, %117 : vector<2x8x8xf32>
    %119 = math.exp %118 : vector<2x8x8xf32>
    %cst_77 = arith.constant dense<0.000000e+00> : vector<2x8xf32>
    %120 = vector.multi_reduction <add>, %119, %cst_77 [2] : vector<2x8x8xf32> to vector<2x8xf32>
    %121 = vector.shape_cast %120 : vector<2x8xf32> to vector<2x8x1xf32>
    %122 = tpu.reciprocal %121 {approx = true} : vector<2x8x1xf32> -> vector<2x8x1xf32>
    %123 = vector.broadcast %122 : vector<2x8x1xf32> to vector<2x8x8xf32>
    %124 = arith.mulf %119, %123 : vector<2x8x8xf32>
    %125 = arith.truncf %124 : vector<2x8x8xf32> to vector<2x8x8xbf16>
    "tpu.trace_start"() <{level = 10 : i32, message = "bnm,bmd->bnd"}> : () -> ()
    %cst_78 = arith.constant dense<0.000000e+00> : vector<2x8x8xf32>
    %126 = tpu.matmul %125, %113, %cst_78 {dimension_numbers = #tpu.dot_dimension_numbers<[2], [1], [1], [2], [0, 0, 0, 1, 1, 2], [0], [0]>} : vector<2x8x8xbf16>, vector<2x8x8xbf16>, vector<2x8x8xf32> -> vector<2x8x8xf32>
    "tpu.trace_stop"() : () -> ()
    %127 = vector.shape_cast %126 : vector<2x8x8xf32> to vector<16x8xf32>
    %128 = arith.truncf %127 : vector<16x8xf32> to vector<16x8xbf16>
    %c0_79 = arith.constant 0 : index
    %c2_80 = arith.constant 2 : index
    %c0_81 = arith.constant 0 : index
    %c0_82 = arith.constant 0 : index
    %129 = vector.load %arg7[%c0_79, %c2_80, %c0_81, %c0_82] : memref<2x4x8x32xbf16, #tpu.memory_space<vmem>>, vector<1x1x8x32xbf16>
    %130 = vector.shape_cast %129 : vector<1x1x8x32xbf16> to vector<8x32xbf16>
    %cst_83 = arith.constant dense<0.000000e+00> : vector<16x32xf32>
    %131 = tpu.matmul %128, %130, %cst_83 {dimension_numbers = #tpu.dot_dimension_numbers<[1], [0], [0], [1], [0, 0, 1, 1], [], []>} : vector<16x8xbf16>, vector<8x32xbf16>, vector<16x32xf32> -> vector<16x32xf32>
    %132 = arith.addf %98, %131 : vector<16x32xf32>
    %c0_84 = arith.constant 0 : index
    %c3 = arith.constant 3 : index
    %c0_85 = arith.constant 0 : index
    %c0_86 = arith.constant 0 : index
    %133 = vector.load %arg4[%c0_84, %c3, %c0_85, %c0_86] : memref<2x4x32x8xbf16, #tpu.memory_space<vmem>>, vector<1x1x32x8xbf16>
    %134 = vector.shape_cast %133 : vector<1x1x32x8xbf16> to vector<32x8xbf16>
    %cst_87 = arith.constant dense<0.000000e+00> : vector<16x8xf32>
    %135 = tpu.matmul %29, %134, %cst_87 {dimension_numbers = #tpu.dot_dimension_numbers<[1], [0], [0], [1], [0, 0, 1, 1], [], []>} : vector<16x32xbf16>, vector<32x8xbf16>, vector<16x8xf32> -> vector<16x8xf32>
    %c0_88 = arith.constant 0 : index
    %c3_89 = arith.constant 3 : index
    %c0_90 = arith.constant 0 : index
    %c0_91 = arith.constant 0 : index
    %136 = vector.load %arg5[%c0_88, %c3_89, %c0_90, %c0_91] : memref<2x4x32x8xbf16, #tpu.memory_space<vmem>>, vector<1x1x32x8xbf16>
    %137 = vector.shape_cast %136 : vector<1x1x32x8xbf16> to vector<32x8xbf16>
    %cst_92 = arith.constant dense<0.000000e+00> : vector<16x8xf32>
    %138 = tpu.matmul %29, %137, %cst_92 {dimension_numbers = #tpu.dot_dimension_numbers<[1], [0], [0], [1], [0, 0, 1, 1], [], []>} : vector<16x32xbf16>, vector<32x8xbf16>, vector<16x8xf32> -> vector<16x8xf32>
    %c0_93 = arith.constant 0 : index
    %c3_94 = arith.constant 3 : index
    %c0_95 = arith.constant 0 : index
    %c0_96 = arith.constant 0 : index
    %139 = vector.load %arg6[%c0_93, %c3_94, %c0_95, %c0_96] : memref<2x4x32x8xbf16, #tpu.memory_space<vmem>>, vector<1x1x32x8xbf16>
    %140 = vector.shape_cast %139 : vector<1x1x32x8xbf16> to vector<32x8xbf16>
    %cst_97 = arith.constant dense<0.000000e+00> : vector<16x8xf32>
    %141 = tpu.matmul %29, %140, %cst_97 {dimension_numbers = #tpu.dot_dimension_numbers<[1], [0], [0], [1], [0, 0, 1, 1], [], []>} : vector<16x32xbf16>, vector<32x8xbf16>, vector<16x8xf32> -> vector<16x8xf32>
    %142 = vector.shape_cast %135 : vector<16x8xf32> to vector<2x8x8xf32>
    %143 = arith.truncf %142 : vector<2x8x8xf32> to vector<2x8x8xbf16>
    %144 = vector.shape_cast %138 : vector<16x8xf32> to vector<2x8x8xf32>
    %145 = arith.truncf %144 : vector<2x8x8xf32> to vector<2x8x8xbf16>
    %146 = vector.shape_cast %141 : vector<16x8xf32> to vector<2x8x8xf32>
    %147 = arith.truncf %146 : vector<2x8x8xf32> to vector<2x8x8xbf16>
    "tpu.trace_start"() <{level = 10 : i32, message = "bnd,bmd->bnm"}> : () -> ()
    %cst_98 = arith.constant dense<0.000000e+00> : vector<2x8x8xf32>
    %148 = tpu.matmul %143, %145, %cst_98 {dimension_numbers = #tpu.dot_dimension_numbers<[2], [2], [1], [1], [0, 0, 0, 1, 1, 1], [0], [0]>} : vector<2x8x8xbf16>, vector<2x8x8xbf16>, vector<2x8x8xf32> -> vector<2x8x8xf32>
    "tpu.trace_stop"() : () -> ()
    %cst_99 = arith.constant dense<0xFF800000> : vector<2x8xf32>
    %149 = vector.multi_reduction <maximumf>, %148, %cst_99 [2] : vector<2x8x8xf32> to vector<2x8xf32>
    %150 = vector.shape_cast %149 : vector<2x8xf32> to vector<2x8x1xf32>
    %151 = vector.broadcast %150 : vector<2x8x1xf32> to vector<2x8x8xf32>
    %152 = arith.subf %148, %151 : vector<2x8x8xf32>
    %153 = math.exp %152 : vector<2x8x8xf32>
    %cst_100 = arith.constant dense<0.000000e+00> : vector<2x8xf32>
    %154 = vector.multi_reduction <add>, %153, %cst_100 [2] : vector<2x8x8xf32> to vector<2x8xf32>
    %155 = vector.shape_cast %154 : vector<2x8xf32> to vector<2x8x1xf32>
    %156 = tpu.reciprocal %155 {approx = true} : vector<2x8x1xf32> -> vector<2x8x1xf32>
    %157 = vector.broadcast %156 : vector<2x8x1xf32> to vector<2x8x8xf32>
    %158 = arith.mulf %153, %157 : vector<2x8x8xf32>
    %159 = arith.truncf %158 : vector<2x8x8xf32> to vector<2x8x8xbf16>
    "tpu.trace_start"() <{level = 10 : i32, message = "bnm,bmd->bnd"}> : () -> ()
    %cst_101 = arith.constant dense<0.000000e+00> : vector<2x8x8xf32>
    %160 = tpu.matmul %159, %147, %cst_101 {dimension_numbers = #tpu.dot_dimension_numbers<[2], [1], [1], [2], [0, 0, 0, 1, 1, 2], [0], [0]>} : vector<2x8x8xbf16>, vector<2x8x8xbf16>, vector<2x8x8xf32> -> vector<2x8x8xf32>
    "tpu.trace_stop"() : () -> ()
    %161 = vector.shape_cast %160 : vector<2x8x8xf32> to vector<16x8xf32>
    %162 = arith.truncf %161 : vector<16x8xf32> to vector<16x8xbf16>
    %c0_102 = arith.constant 0 : index
    %c3_103 = arith.constant 3 : index
    %c0_104 = arith.constant 0 : index
    %c0_105 = arith.constant 0 : index
    %163 = vector.load %arg7[%c0_102, %c3_103, %c0_104, %c0_105] : memref<2x4x8x32xbf16, #tpu.memory_space<vmem>>, vector<1x1x8x32xbf16>
    %164 = vector.shape_cast %163 : vector<1x1x8x32xbf16> to vector<8x32xbf16>
    %cst_106 = arith.constant dense<0.000000e+00> : vector<16x32xf32>
    %165 = tpu.matmul %162, %164, %cst_106 {dimension_numbers = #tpu.dot_dimension_numbers<[1], [0], [0], [1], [0, 0, 1, 1], [], []>} : vector<16x8xbf16>, vector<8x32xbf16>, vector<16x32xf32> -> vector<16x32xf32>
    %166 = arith.addf %132, %165 : vector<16x32xf32>
    %167 = arith.addf %2, %166 : vector<16x32xf32>
    %c0_107 = arith.constant 0 : index
    %c0_108 = arith.constant 0 : index
    %c0_109 = arith.constant 0 : index
    %168 = vector.load %arg8[%c0_107, %c0_108, %c0_109] : memref<2x1x32xf32, #tpu.memory_space<vmem>>, vector<1x1x32xf32>
    %169 = vector.shape_cast %168 : vector<1x1x32xf32> to vector<1x32xf32>
    %170 = vector.broadcast %169 : vector<1x32xf32> to vector<16x32xf32>
    %171 = arith.addf %167, %170 : vector<16x32xf32>
    %c0_110 = arith.constant 0 : index
    %c0_111 = arith.constant 0 : index
    %c0_112 = arith.constant 0 : index
    %172 = vector.load %arg9[%c0_110, %c0_111, %c0_112] : memref<2x1x32xf32, #tpu.memory_space<vmem>>, vector<1x1x32xf32>
    %173 = vector.shape_cast %172 : vector<1x1x32xf32> to vector<1x32xf32>
    %c0_113 = arith.constant 0 : index
    %c0_114 = arith.constant 0 : index
    %c0_115 = arith.constant 0 : index
    %174 = vector.load %arg10[%c0_113, %c0_114, %c0_115] : memref<2x1x32xf32, #tpu.memory_space<vmem>>, vector<1x1x32xf32>
    %175 = vector.shape_cast %174 : vector<1x1x32xf32> to vector<1x32xf32>
    %cst_116 = arith.constant dense<0.000000e+00> : vector<16xf32>
    %176 = vector.multi_reduction <add>, %171, %cst_116 [1] : vector<16x32xf32> to vector<16xf32>
    %177 = vector.shape_cast %176 : vector<16xf32> to vector<16x1xf32>
    %cst_117 = arith.constant 3.200000e+01 : f32
    %178 = vector.broadcast %cst_117 : f32 to vector<16x1xf32>
    %179 = arith.divf %177, %178 : vector<16x1xf32>
    %180 = vector.broadcast %179 : vector<16x1xf32> to vector<16x32xf32>
    %181 = arith.subf %171, %180 : vector<16x32xf32>
    %182 = arith.mulf %181, %181 : vector<16x32xf32>
    %cst_118 = arith.constant dense<0.000000e+00> : vector<16xf32>
    %183 = vector.multi_reduction <add>, %182, %cst_118 [1] : vector<16x32xf32> to vector<16xf32>
    %184 = vector.shape_cast %183 : vector<16xf32> to vector<16x1xf32>
    %cst_119 = arith.constant 3.200000e+01 : f32
    %185 = vector.broadcast %cst_119 : f32 to vector<16x1xf32>
    %186 = arith.divf %184, %185 : vector<16x1xf32>
    %187 = vector.broadcast %179 : vector<16x1xf32> to vector<16x32xf32>
    %188 = arith.subf %171, %187 : vector<16x32xf32>
    %cst_120 = arith.constant 9.99999974E-6 : f32
    %189 = vector.broadcast %cst_120 : f32 to vector<16x1xf32>
    %190 = arith.addf %186, %189 : vector<16x1xf32>
    %191 = math.rsqrt %190 : vector<16x1xf32>
    %192 = vector.broadcast %191 : vector<16x1xf32> to vector<16x32xf32>
    %193 = arith.mulf %188, %192 : vector<16x32xf32>
    %194 = vector.broadcast %173 : vector<1x32xf32> to vector<16x32xf32>
    %195 = arith.mulf %193, %194 : vector<16x32xf32>
    %196 = vector.broadcast %175 : vector<1x32xf32> to vector<16x32xf32>
    %197 = arith.addf %195, %196 : vector<16x32xf32>
    %198 = arith.truncf %197 : vector<16x32xf32> to vector<16x32xbf16>
    %c0_121 = arith.constant 0 : index
    %c0_122 = arith.constant 0 : index
    %c0_123 = arith.constant 0 : index
    %199 = vector.load %arg11[%c0_121, %c0_122, %c0_123] : memref<2x32x64xbf16, #tpu.memory_space<vmem>>, vector<1x32x64xbf16>
    %200 = vector.shape_cast %199 : vector<1x32x64xbf16> to vector<32x64xbf16>
    %cst_124 = arith.constant dense<0.000000e+00> : vector<16x64xf32>
    %201 = tpu.matmul %198, %200, %cst_124 {dimension_numbers = #tpu.dot_dimension_numbers<[1], [0], [0], [1], [0, 0, 1, 1], [], []>} : vector<16x32xbf16>, vector<32x64xbf16>, vector<16x64xf32> -> vector<16x64xf32>
    %c0_125 = arith.constant 0 : index
    %c0_126 = arith.constant 0 : index
    %c0_127 = arith.constant 0 : index
    %202 = vector.load %arg12[%c0_125, %c0_126, %c0_127] : memref<2x1x64xf32, #tpu.memory_space<vmem>>, vector<1x1x64xf32>
    %203 = vector.shape_cast %202 : vector<1x1x64xf32> to vector<1x64xf32>
    %204 = vector.broadcast %203 : vector<1x64xf32> to vector<16x64xf32>
    %205 = arith.addf %201, %204 : vector<16x64xf32>
    %cst_128 = arith.constant 5.000000e-01 : f32
    %206 = vector.broadcast %cst_128 : f32 to vector<16x64xf32>
    %207 = arith.mulf %206, %205 : vector<16x64xf32>
    %cst_129 = arith.constant 0.707106769 : f32
    %208 = vector.broadcast %cst_129 : f32 to vector<16x64xf32>
    %209 = arith.mulf %205, %208 : vector<16x64xf32>
    %210 = math.erf %209 : vector<16x64xf32>
    %cst_130 = arith.constant 1.000000e+00 : f32
    %211 = vector.broadcast %cst_130 : f32 to vector<16x64xf32>
    %212 = arith.addf %211, %210 : vector<16x64xf32>
    %213 = arith.mulf %207, %212 : vector<16x64xf32>
    %214 = arith.truncf %213 : vector<16x64xf32> to vector<16x64xbf16>
    %c0_131 = arith.constant 0 : index
    %c0_132 = arith.constant 0 : index
    %c0_133 = arith.constant 0 : index
    %215 = vector.load %arg13[%c0_131, %c0_132, %c0_133] : memref<2x64x32xbf16, #tpu.memory_space<vmem>>, vector<1x64x32xbf16>
    %216 = vector.shape_cast %215 : vector<1x64x32xbf16> to vector<64x32xbf16>
    %cst_134 = arith.constant dense<0.000000e+00> : vector<16x32xf32>
    %217 = tpu.matmul %214, %216, %cst_134 {dimension_numbers = #tpu.dot_dimension_numbers<[1], [0], [0], [1], [0, 0, 1, 1], [], []>} : vector<16x64xbf16>, vector<64x32xbf16>, vector<16x32xf32> -> vector<16x32xf32>
    %c0_135 = arith.constant 0 : index
    %c0_136 = arith.constant 0 : index
    %c0_137 = arith.constant 0 : index
    %218 = vector.load %arg14[%c0_135, %c0_136, %c0_137] : memref<2x1x32xf32, #tpu.memory_space<vmem>>, vector<1x1x32xf32>
    %219 = vector.shape_cast %218 : vector<1x1x32xf32> to vector<1x32xf32>
    %220 = vector.broadcast %219 : vector<1x32xf32> to vector<16x32xf32>
    %221 = arith.addf %217, %220 : vector<16x32xf32>
    %222 = arith.addf %171, %221 : vector<16x32xf32>
    %c1_138 = arith.constant 1 : index
    %c0_139 = arith.constant 0 : index
    %c0_140 = arith.constant 0 : index
    %223 = vector.load %arg2[%c1_138, %c0_139, %c0_140] : memref<2x1x32xf32, #tpu.memory_space<vmem>>, vector<1x1x32xf32>
    %224 = vector.shape_cast %223 : vector<1x1x32xf32> to vector<1x32xf32>
    %c1_141 = arith.constant 1 : index
    %c0_142 = arith.constant 0 : index
    %c0_143 = arith.constant 0 : index
    %225 = vector.load %arg3[%c1_141, %c0_142, %c0_143] : memref<2x1x32xf32, #tpu.memory_space<vmem>>, vector<1x1x32xf32>
    %226 = vector.shape_cast %225 : vector<1x1x32xf32> to vector<1x32xf32>
    %cst_144 = arith.constant dense<0.000000e+00> : vector<16xf32>
    %227 = vector.multi_reduction <add>, %222, %cst_144 [1] : vector<16x32xf32> to vector<16xf32>
    %228 = vector.shape_cast %227 : vector<16xf32> to vector<16x1xf32>
    %cst_145 = arith.constant 3.200000e+01 : f32
    %229 = vector.broadcast %cst_145 : f32 to vector<16x1xf32>
    %230 = arith.divf %228, %229 : vector<16x1xf32>
    %231 = vector.broadcast %230 : vector<16x1xf32> to vector<16x32xf32>
    %232 = arith.subf %222, %231 : vector<16x32xf32>
    %233 = arith.mulf %232, %232 : vector<16x32xf32>
    %cst_146 = arith.constant dense<0.000000e+00> : vector<16xf32>
    %234 = vector.multi_reduction <add>, %233, %cst_146 [1] : vector<16x32xf32> to vector<16xf32>
    %235 = vector.shape_cast %234 : vector<16xf32> to vector<16x1xf32>
    %cst_147 = arith.constant 3.200000e+01 : f32
    %236 = vector.broadcast %cst_147 : f32 to vector<16x1xf32>
    %237 = arith.divf %235, %236 : vector<16x1xf32>
    %238 = vector.broadcast %230 : vector<16x1xf32> to vector<16x32xf32>
    %239 = arith.subf %222, %238 : vector<16x32xf32>
    %cst_148 = arith.constant 9.99999974E-6 : f32
    %240 = vector.broadcast %cst_148 : f32 to vector<16x1xf32>
    %241 = arith.addf %237, %240 : vector<16x1xf32>
    %242 = math.rsqrt %241 : vector<16x1xf32>
    %243 = vector.broadcast %242 : vector<16x1xf32> to vector<16x32xf32>
    %244 = arith.mulf %239, %243 : vector<16x32xf32>
    %245 = vector.broadcast %224 : vector<1x32xf32> to vector<16x32xf32>
    %246 = arith.mulf %244, %245 : vector<16x32xf32>
    %247 = vector.broadcast %226 : vector<1x32xf32> to vector<16x32xf32>
    %248 = arith.addf %246, %247 : vector<16x32xf32>
    %249 = arith.truncf %248 : vector<16x32xf32> to vector<16x32xbf16>
    %cst_149 = arith.constant 0.000000e+00 : f32
    %250 = vector.broadcast %cst_149 : f32 to vector<16x32xf32>
    %c1_150 = arith.constant 1 : index
    %c0_151 = arith.constant 0 : index
    %c0_152 = arith.constant 0 : index
    %c0_153 = arith.constant 0 : index
    %251 = vector.load %arg4[%c1_150, %c0_151, %c0_152, %c0_153] : memref<2x4x32x8xbf16, #tpu.memory_space<vmem>>, vector<1x1x32x8xbf16>
    %252 = vector.shape_cast %251 : vector<1x1x32x8xbf16> to vector<32x8xbf16>
    %cst_154 = arith.constant dense<0.000000e+00> : vector<16x8xf32>
    %253 = tpu.matmul %249, %252, %cst_154 {dimension_numbers = #tpu.dot_dimension_numbers<[1], [0], [0], [1], [0, 0, 1, 1], [], []>} : vector<16x32xbf16>, vector<32x8xbf16>, vector<16x8xf32> -> vector<16x8xf32>
    %c1_155 = arith.constant 1 : index
    %c0_156 = arith.constant 0 : index
    %c0_157 = arith.constant 0 : index
    %c0_158 = arith.constant 0 : index
    %254 = vector.load %arg5[%c1_155, %c0_156, %c0_157, %c0_158] : memref<2x4x32x8xbf16, #tpu.memory_space<vmem>>, vector<1x1x32x8xbf16>
    %255 = vector.shape_cast %254 : vector<1x1x32x8xbf16> to vector<32x8xbf16>
    %cst_159 = arith.constant dense<0.000000e+00> : vector<16x8xf32>
    %256 = tpu.matmul %249, %255, %cst_159 {dimension_numbers = #tpu.dot_dimension_numbers<[1], [0], [0], [1], [0, 0, 1, 1], [], []>} : vector<16x32xbf16>, vector<32x8xbf16>, vector<16x8xf32> -> vector<16x8xf32>
    %c1_160 = arith.constant 1 : index
    %c0_161 = arith.constant 0 : index
    %c0_162 = arith.constant 0 : index
    %c0_163 = arith.constant 0 : index
    %257 = vector.load %arg6[%c1_160, %c0_161, %c0_162, %c0_163] : memref<2x4x32x8xbf16, #tpu.memory_space<vmem>>, vector<1x1x32x8xbf16>
    %258 = vector.shape_cast %257 : vector<1x1x32x8xbf16> to vector<32x8xbf16>
    %cst_164 = arith.constant dense<0.000000e+00> : vector<16x8xf32>
    %259 = tpu.matmul %249, %258, %cst_164 {dimension_numbers = #tpu.dot_dimension_numbers<[1], [0], [0], [1], [0, 0, 1, 1], [], []>} : vector<16x32xbf16>, vector<32x8xbf16>, vector<16x8xf32> -> vector<16x8xf32>
    %260 = vector.shape_cast %253 : vector<16x8xf32> to vector<2x8x8xf32>
    %261 = arith.truncf %260 : vector<2x8x8xf32> to vector<2x8x8xbf16>
    %262 = vector.shape_cast %256 : vector<16x8xf32> to vector<2x8x8xf32>
    %263 = arith.truncf %262 : vector<2x8x8xf32> to vector<2x8x8xbf16>
    %264 = vector.shape_cast %259 : vector<16x8xf32> to vector<2x8x8xf32>
    %265 = arith.truncf %264 : vector<2x8x8xf32> to vector<2x8x8xbf16>
    "tpu.trace_start"() <{level = 10 : i32, message = "bnd,bmd->bnm"}> : () -> ()
    %cst_165 = arith.constant dense<0.000000e+00> : vector<2x8x8xf32>
    %266 = tpu.matmul %261, %263, %cst_165 {dimension_numbers = #tpu.dot_dimension_numbers<[2], [2], [1], [1], [0, 0, 0, 1, 1, 1], [0], [0]>} : vector<2x8x8xbf16>, vector<2x8x8xbf16>, vector<2x8x8xf32> -> vector<2x8x8xf32>
    "tpu.trace_stop"() : () -> ()
    %cst_166 = arith.constant dense<0xFF800000> : vector<2x8xf32>
    %267 = vector.multi_reduction <maximumf>, %266, %cst_166 [2] : vector<2x8x8xf32> to vector<2x8xf32>
    %268 = vector.shape_cast %267 : vector<2x8xf32> to vector<2x8x1xf32>
    %269 = vector.broadcast %268 : vector<2x8x1xf32> to vector<2x8x8xf32>
    %270 = arith.subf %266, %269 : vector<2x8x8xf32>
    %271 = math.exp %270 : vector<2x8x8xf32>
    %cst_167 = arith.constant dense<0.000000e+00> : vector<2x8xf32>
    %272 = vector.multi_reduction <add>, %271, %cst_167 [2] : vector<2x8x8xf32> to vector<2x8xf32>
    %273 = vector.shape_cast %272 : vector<2x8xf32> to vector<2x8x1xf32>
    %274 = tpu.reciprocal %273 {approx = true} : vector<2x8x1xf32> -> vector<2x8x1xf32>
    %275 = vector.broadcast %274 : vector<2x8x1xf32> to vector<2x8x8xf32>
    %276 = arith.mulf %271, %275 : vector<2x8x8xf32>
    %277 = arith.truncf %276 : vector<2x8x8xf32> to vector<2x8x8xbf16>
    "tpu.trace_start"() <{level = 10 : i32, message = "bnm,bmd->bnd"}> : () -> ()
    %cst_168 = arith.constant dense<0.000000e+00> : vector<2x8x8xf32>
    %278 = tpu.matmul %277, %265, %cst_168 {dimension_numbers = #tpu.dot_dimension_numbers<[2], [1], [1], [2], [0, 0, 0, 1, 1, 2], [0], [0]>} : vector<2x8x8xbf16>, vector<2x8x8xbf16>, vector<2x8x8xf32> -> vector<2x8x8xf32>
    "tpu.trace_stop"() : () -> ()
    %279 = vector.shape_cast %278 : vector<2x8x8xf32> to vector<16x8xf32>
    %280 = arith.truncf %279 : vector<16x8xf32> to vector<16x8xbf16>
    %c1_169 = arith.constant 1 : index
    %c0_170 = arith.constant 0 : index
    %c0_171 = arith.constant 0 : index
    %c0_172 = arith.constant 0 : index
    %281 = vector.load %arg7[%c1_169, %c0_170, %c0_171, %c0_172] : memref<2x4x8x32xbf16, #tpu.memory_space<vmem>>, vector<1x1x8x32xbf16>
    %282 = vector.shape_cast %281 : vector<1x1x8x32xbf16> to vector<8x32xbf16>
    %cst_173 = arith.constant dense<0.000000e+00> : vector<16x32xf32>
    %283 = tpu.matmul %280, %282, %cst_173 {dimension_numbers = #tpu.dot_dimension_numbers<[1], [0], [0], [1], [0, 0, 1, 1], [], []>} : vector<16x8xbf16>, vector<8x32xbf16>, vector<16x32xf32> -> vector<16x32xf32>
    %284 = arith.addf %250, %283 : vector<16x32xf32>
    %c1_174 = arith.constant 1 : index
    %c1_175 = arith.constant 1 : index
    %c0_176 = arith.constant 0 : index
    %c0_177 = arith.constant 0 : index
    %285 = vector.load %arg4[%c1_174, %c1_175, %c0_176, %c0_177] : memref<2x4x32x8xbf16, #tpu.memory_space<vmem>>, vector<1x1x32x8xbf16>
    %286 = vector.shape_cast %285 : vector<1x1x32x8xbf16> to vector<32x8xbf16>
    %cst_178 = arith.constant dense<0.000000e+00> : vector<16x8xf32>
    %287 = tpu.matmul %249, %286, %cst_178 {dimension_numbers = #tpu.dot_dimension_numbers<[1], [0], [0], [1], [0, 0, 1, 1], [], []>} : vector<16x32xbf16>, vector<32x8xbf16>, vector<16x8xf32> -> vector<16x8xf32>
    %c1_179 = arith.constant 1 : index
    %c1_180 = arith.constant 1 : index
    %c0_181 = arith.constant 0 : index
    %c0_182 = arith.constant 0 : index
    %288 = vector.load %arg5[%c1_179, %c1_180, %c0_181, %c0_182] : memref<2x4x32x8xbf16, #tpu.memory_space<vmem>>, vector<1x1x32x8xbf16>
    %289 = vector.shape_cast %288 : vector<1x1x32x8xbf16> to vector<32x8xbf16>
    %cst_183 = arith.constant dense<0.000000e+00> : vector<16x8xf32>
    %290 = tpu.matmul %249, %289, %cst_183 {dimension_numbers = #tpu.dot_dimension_numbers<[1], [0], [0], [1], [0, 0, 1, 1], [], []>} : vector<16x32xbf16>, vector<32x8xbf16>, vector<16x8xf32> -> vector<16x8xf32>
    %c1_184 = arith.constant 1 : index
    %c1_185 = arith.constant 1 : index
    %c0_186 = arith.constant 0 : index
    %c0_187 = arith.constant 0 : index
    %291 = vector.load %arg6[%c1_184, %c1_185, %c0_186, %c0_187] : memref<2x4x32x8xbf16, #tpu.memory_space<vmem>>, vector<1x1x32x8xbf16>
    %292 = vector.shape_cast %291 : vector<1x1x32x8xbf16> to vector<32x8xbf16>
    %cst_188 = arith.constant dense<0.000000e+00> : vector<16x8xf32>
    %293 = tpu.matmul %249, %292, %cst_188 {dimension_numbers = #tpu.dot_dimension_numbers<[1], [0], [0], [1], [0, 0, 1, 1], [], []>} : vector<16x32xbf16>, vector<32x8xbf16>, vector<16x8xf32> -> vector<16x8xf32>
    %294 = vector.shape_cast %287 : vector<16x8xf32> to vector<2x8x8xf32>
    %295 = arith.truncf %294 : vector<2x8x8xf32> to vector<2x8x8xbf16>
    %296 = vector.shape_cast %290 : vector<16x8xf32> to vector<2x8x8xf32>
    %297 = arith.truncf %296 : vector<2x8x8xf32> to vector<2x8x8xbf16>
    %298 = vector.shape_cast %293 : vector<16x8xf32> to vector<2x8x8xf32>
    %299 = arith.truncf %298 : vector<2x8x8xf32> to vector<2x8x8xbf16>
    "tpu.trace_start"() <{level = 10 : i32, message = "bnd,bmd->bnm"}> : () -> ()
    %cst_189 = arith.constant dense<0.000000e+00> : vector<2x8x8xf32>
    %300 = tpu.matmul %295, %297, %cst_189 {dimension_numbers = #tpu.dot_dimension_numbers<[2], [2], [1], [1], [0, 0, 0, 1, 1, 1], [0], [0]>} : vector<2x8x8xbf16>, vector<2x8x8xbf16>, vector<2x8x8xf32> -> vector<2x8x8xf32>
    "tpu.trace_stop"() : () -> ()
    %cst_190 = arith.constant dense<0xFF800000> : vector<2x8xf32>
    %301 = vector.multi_reduction <maximumf>, %300, %cst_190 [2] : vector<2x8x8xf32> to vector<2x8xf32>
    %302 = vector.shape_cast %301 : vector<2x8xf32> to vector<2x8x1xf32>
    %303 = vector.broadcast %302 : vector<2x8x1xf32> to vector<2x8x8xf32>
    %304 = arith.subf %300, %303 : vector<2x8x8xf32>
    %305 = math.exp %304 : vector<2x8x8xf32>
    %cst_191 = arith.constant dense<0.000000e+00> : vector<2x8xf32>
    %306 = vector.multi_reduction <add>, %305, %cst_191 [2] : vector<2x8x8xf32> to vector<2x8xf32>
    %307 = vector.shape_cast %306 : vector<2x8xf32> to vector<2x8x1xf32>
    %308 = tpu.reciprocal %307 {approx = true} : vector<2x8x1xf32> -> vector<2x8x1xf32>
    %309 = vector.broadcast %308 : vector<2x8x1xf32> to vector<2x8x8xf32>
    %310 = arith.mulf %305, %309 : vector<2x8x8xf32>
    %311 = arith.truncf %310 : vector<2x8x8xf32> to vector<2x8x8xbf16>
    "tpu.trace_start"() <{level = 10 : i32, message = "bnm,bmd->bnd"}> : () -> ()
    %cst_192 = arith.constant dense<0.000000e+00> : vector<2x8x8xf32>
    %312 = tpu.matmul %311, %299, %cst_192 {dimension_numbers = #tpu.dot_dimension_numbers<[2], [1], [1], [2], [0, 0, 0, 1, 1, 2], [0], [0]>} : vector<2x8x8xbf16>, vector<2x8x8xbf16>, vector<2x8x8xf32> -> vector<2x8x8xf32>
    "tpu.trace_stop"() : () -> ()
    %313 = vector.shape_cast %312 : vector<2x8x8xf32> to vector<16x8xf32>
    %314 = arith.truncf %313 : vector<16x8xf32> to vector<16x8xbf16>
    %c1_193 = arith.constant 1 : index
    %c1_194 = arith.constant 1 : index
    %c0_195 = arith.constant 0 : index
    %c0_196 = arith.constant 0 : index
    %315 = vector.load %arg7[%c1_193, %c1_194, %c0_195, %c0_196] : memref<2x4x8x32xbf16, #tpu.memory_space<vmem>>, vector<1x1x8x32xbf16>
    %316 = vector.shape_cast %315 : vector<1x1x8x32xbf16> to vector<8x32xbf16>
    %cst_197 = arith.constant dense<0.000000e+00> : vector<16x32xf32>
    %317 = tpu.matmul %314, %316, %cst_197 {dimension_numbers = #tpu.dot_dimension_numbers<[1], [0], [0], [1], [0, 0, 1, 1], [], []>} : vector<16x8xbf16>, vector<8x32xbf16>, vector<16x32xf32> -> vector<16x32xf32>
    %318 = arith.addf %284, %317 : vector<16x32xf32>
    %c1_198 = arith.constant 1 : index
    %c2_199 = arith.constant 2 : index
    %c0_200 = arith.constant 0 : index
    %c0_201 = arith.constant 0 : index
    %319 = vector.load %arg4[%c1_198, %c2_199, %c0_200, %c0_201] : memref<2x4x32x8xbf16, #tpu.memory_space<vmem>>, vector<1x1x32x8xbf16>
    %320 = vector.shape_cast %319 : vector<1x1x32x8xbf16> to vector<32x8xbf16>
    %cst_202 = arith.constant dense<0.000000e+00> : vector<16x8xf32>
    %321 = tpu.matmul %249, %320, %cst_202 {dimension_numbers = #tpu.dot_dimension_numbers<[1], [0], [0], [1], [0, 0, 1, 1], [], []>} : vector<16x32xbf16>, vector<32x8xbf16>, vector<16x8xf32> -> vector<16x8xf32>
    %c1_203 = arith.constant 1 : index
    %c2_204 = arith.constant 2 : index
    %c0_205 = arith.constant 0 : index
    %c0_206 = arith.constant 0 : index
    %322 = vector.load %arg5[%c1_203, %c2_204, %c0_205, %c0_206] : memref<2x4x32x8xbf16, #tpu.memory_space<vmem>>, vector<1x1x32x8xbf16>
    %323 = vector.shape_cast %322 : vector<1x1x32x8xbf16> to vector<32x8xbf16>
    %cst_207 = arith.constant dense<0.000000e+00> : vector<16x8xf32>
    %324 = tpu.matmul %249, %323, %cst_207 {dimension_numbers = #tpu.dot_dimension_numbers<[1], [0], [0], [1], [0, 0, 1, 1], [], []>} : vector<16x32xbf16>, vector<32x8xbf16>, vector<16x8xf32> -> vector<16x8xf32>
    %c1_208 = arith.constant 1 : index
    %c2_209 = arith.constant 2 : index
    %c0_210 = arith.constant 0 : index
    %c0_211 = arith.constant 0 : index
    %325 = vector.load %arg6[%c1_208, %c2_209, %c0_210, %c0_211] : memref<2x4x32x8xbf16, #tpu.memory_space<vmem>>, vector<1x1x32x8xbf16>
    %326 = vector.shape_cast %325 : vector<1x1x32x8xbf16> to vector<32x8xbf16>
    %cst_212 = arith.constant dense<0.000000e+00> : vector<16x8xf32>
    %327 = tpu.matmul %249, %326, %cst_212 {dimension_numbers = #tpu.dot_dimension_numbers<[1], [0], [0], [1], [0, 0, 1, 1], [], []>} : vector<16x32xbf16>, vector<32x8xbf16>, vector<16x8xf32> -> vector<16x8xf32>
    %328 = vector.shape_cast %321 : vector<16x8xf32> to vector<2x8x8xf32>
    %329 = arith.truncf %328 : vector<2x8x8xf32> to vector<2x8x8xbf16>
    %330 = vector.shape_cast %324 : vector<16x8xf32> to vector<2x8x8xf32>
    %331 = arith.truncf %330 : vector<2x8x8xf32> to vector<2x8x8xbf16>
    %332 = vector.shape_cast %327 : vector<16x8xf32> to vector<2x8x8xf32>
    %333 = arith.truncf %332 : vector<2x8x8xf32> to vector<2x8x8xbf16>
    "tpu.trace_start"() <{level = 10 : i32, message = "bnd,bmd->bnm"}> : () -> ()
    %cst_213 = arith.constant dense<0.000000e+00> : vector<2x8x8xf32>
    %334 = tpu.matmul %329, %331, %cst_213 {dimension_numbers = #tpu.dot_dimension_numbers<[2], [2], [1], [1], [0, 0, 0, 1, 1, 1], [0], [0]>} : vector<2x8x8xbf16>, vector<2x8x8xbf16>, vector<2x8x8xf32> -> vector<2x8x8xf32>
    "tpu.trace_stop"() : () -> ()
    %cst_214 = arith.constant dense<0xFF800000> : vector<2x8xf32>
    %335 = vector.multi_reduction <maximumf>, %334, %cst_214 [2] : vector<2x8x8xf32> to vector<2x8xf32>
    %336 = vector.shape_cast %335 : vector<2x8xf32> to vector<2x8x1xf32>
    %337 = vector.broadcast %336 : vector<2x8x1xf32> to vector<2x8x8xf32>
    %338 = arith.subf %334, %337 : vector<2x8x8xf32>
    %339 = math.exp %338 : vector<2x8x8xf32>
    %cst_215 = arith.constant dense<0.000000e+00> : vector<2x8xf32>
    %340 = vector.multi_reduction <add>, %339, %cst_215 [2] : vector<2x8x8xf32> to vector<2x8xf32>
    %341 = vector.shape_cast %340 : vector<2x8xf32> to vector<2x8x1xf32>
    %342 = tpu.reciprocal %341 {approx = true} : vector<2x8x1xf32> -> vector<2x8x1xf32>
    %343 = vector.broadcast %342 : vector<2x8x1xf32> to vector<2x8x8xf32>
    %344 = arith.mulf %339, %343 : vector<2x8x8xf32>
    %345 = arith.truncf %344 : vector<2x8x8xf32> to vector<2x8x8xbf16>
    "tpu.trace_start"() <{level = 10 : i32, message = "bnm,bmd->bnd"}> : () -> ()
    %cst_216 = arith.constant dense<0.000000e+00> : vector<2x8x8xf32>
    %346 = tpu.matmul %345, %333, %cst_216 {dimension_numbers = #tpu.dot_dimension_numbers<[2], [1], [1], [2], [0, 0, 0, 1, 1, 2], [0], [0]>} : vector<2x8x8xbf16>, vector<2x8x8xbf16>, vector<2x8x8xf32> -> vector<2x8x8xf32>
    "tpu.trace_stop"() : () -> ()
    %347 = vector.shape_cast %346 : vector<2x8x8xf32> to vector<16x8xf32>
    %348 = arith.truncf %347 : vector<16x8xf32> to vector<16x8xbf16>
    %c1_217 = arith.constant 1 : index
    %c2_218 = arith.constant 2 : index
    %c0_219 = arith.constant 0 : index
    %c0_220 = arith.constant 0 : index
    %349 = vector.load %arg7[%c1_217, %c2_218, %c0_219, %c0_220] : memref<2x4x8x32xbf16, #tpu.memory_space<vmem>>, vector<1x1x8x32xbf16>
    %350 = vector.shape_cast %349 : vector<1x1x8x32xbf16> to vector<8x32xbf16>
    %cst_221 = arith.constant dense<0.000000e+00> : vector<16x32xf32>
    %351 = tpu.matmul %348, %350, %cst_221 {dimension_numbers = #tpu.dot_dimension_numbers<[1], [0], [0], [1], [0, 0, 1, 1], [], []>} : vector<16x8xbf16>, vector<8x32xbf16>, vector<16x32xf32> -> vector<16x32xf32>
    %352 = arith.addf %318, %351 : vector<16x32xf32>
    %c1_222 = arith.constant 1 : index
    %c3_223 = arith.constant 3 : index
    %c0_224 = arith.constant 0 : index
    %c0_225 = arith.constant 0 : index
    %353 = vector.load %arg4[%c1_222, %c3_223, %c0_224, %c0_225] : memref<2x4x32x8xbf16, #tpu.memory_space<vmem>>, vector<1x1x32x8xbf16>
    %354 = vector.shape_cast %353 : vector<1x1x32x8xbf16> to vector<32x8xbf16>
    %cst_226 = arith.constant dense<0.000000e+00> : vector<16x8xf32>
    %355 = tpu.matmul %249, %354, %cst_226 {dimension_numbers = #tpu.dot_dimension_numbers<[1], [0], [0], [1], [0, 0, 1, 1], [], []>} : vector<16x32xbf16>, vector<32x8xbf16>, vector<16x8xf32> -> vector<16x8xf32>
    %c1_227 = arith.constant 1 : index
    %c3_228 = arith.constant 3 : index
    %c0_229 = arith.constant 0 : index
    %c0_230 = arith.constant 0 : index
    %356 = vector.load %arg5[%c1_227, %c3_228, %c0_229, %c0_230] : memref<2x4x32x8xbf16, #tpu.memory_space<vmem>>, vector<1x1x32x8xbf16>
    %357 = vector.shape_cast %356 : vector<1x1x32x8xbf16> to vector<32x8xbf16>
    %cst_231 = arith.constant dense<0.000000e+00> : vector<16x8xf32>
    %358 = tpu.matmul %249, %357, %cst_231 {dimension_numbers = #tpu.dot_dimension_numbers<[1], [0], [0], [1], [0, 0, 1, 1], [], []>} : vector<16x32xbf16>, vector<32x8xbf16>, vector<16x8xf32> -> vector<16x8xf32>
    %c1_232 = arith.constant 1 : index
    %c3_233 = arith.constant 3 : index
    %c0_234 = arith.constant 0 : index
    %c0_235 = arith.constant 0 : index
    %359 = vector.load %arg6[%c1_232, %c3_233, %c0_234, %c0_235] : memref<2x4x32x8xbf16, #tpu.memory_space<vmem>>, vector<1x1x32x8xbf16>
    %360 = vector.shape_cast %359 : vector<1x1x32x8xbf16> to vector<32x8xbf16>
    %cst_236 = arith.constant dense<0.000000e+00> : vector<16x8xf32>
    %361 = tpu.matmul %249, %360, %cst_236 {dimension_numbers = #tpu.dot_dimension_numbers<[1], [0], [0], [1], [0, 0, 1, 1], [], []>} : vector<16x32xbf16>, vector<32x8xbf16>, vector<16x8xf32> -> vector<16x8xf32>
    %362 = vector.shape_cast %355 : vector<16x8xf32> to vector<2x8x8xf32>
    %363 = arith.truncf %362 : vector<2x8x8xf32> to vector<2x8x8xbf16>
    %364 = vector.shape_cast %358 : vector<16x8xf32> to vector<2x8x8xf32>
    %365 = arith.truncf %364 : vector<2x8x8xf32> to vector<2x8x8xbf16>
    %366 = vector.shape_cast %361 : vector<16x8xf32> to vector<2x8x8xf32>
    %367 = arith.truncf %366 : vector<2x8x8xf32> to vector<2x8x8xbf16>
    "tpu.trace_start"() <{level = 10 : i32, message = "bnd,bmd->bnm"}> : () -> ()
    %cst_237 = arith.constant dense<0.000000e+00> : vector<2x8x8xf32>
    %368 = tpu.matmul %363, %365, %cst_237 {dimension_numbers = #tpu.dot_dimension_numbers<[2], [2], [1], [1], [0, 0, 0, 1, 1, 1], [0], [0]>} : vector<2x8x8xbf16>, vector<2x8x8xbf16>, vector<2x8x8xf32> -> vector<2x8x8xf32>
    "tpu.trace_stop"() : () -> ()
    %cst_238 = arith.constant dense<0xFF800000> : vector<2x8xf32>
    %369 = vector.multi_reduction <maximumf>, %368, %cst_238 [2] : vector<2x8x8xf32> to vector<2x8xf32>
    %370 = vector.shape_cast %369 : vector<2x8xf32> to vector<2x8x1xf32>
    %371 = vector.broadcast %370 : vector<2x8x1xf32> to vector<2x8x8xf32>
    %372 = arith.subf %368, %371 : vector<2x8x8xf32>
    %373 = math.exp %372 : vector<2x8x8xf32>
    %cst_239 = arith.constant dense<0.000000e+00> : vector<2x8xf32>
    %374 = vector.multi_reduction <add>, %373, %cst_239 [2] : vector<2x8x8xf32> to vector<2x8xf32>
    %375 = vector.shape_cast %374 : vector<2x8xf32> to vector<2x8x1xf32>
    %376 = tpu.reciprocal %375 {approx = true} : vector<2x8x1xf32> -> vector<2x8x1xf32>
    %377 = vector.broadcast %376 : vector<2x8x1xf32> to vector<2x8x8xf32>
    %378 = arith.mulf %373, %377 : vector<2x8x8xf32>
    %379 = arith.truncf %378 : vector<2x8x8xf32> to vector<2x8x8xbf16>
    "tpu.trace_start"() <{level = 10 : i32, message = "bnm,bmd->bnd"}> : () -> ()
    %cst_240 = arith.constant dense<0.000000e+00> : vector<2x8x8xf32>
    %380 = tpu.matmul %379, %367, %cst_240 {dimension_numbers = #tpu.dot_dimension_numbers<[2], [1], [1], [2], [0, 0, 0, 1, 1, 2], [0], [0]>} : vector<2x8x8xbf16>, vector<2x8x8xbf16>, vector<2x8x8xf32> -> vector<2x8x8xf32>
    "tpu.trace_stop"() : () -> ()
    %381 = vector.shape_cast %380 : vector<2x8x8xf32> to vector<16x8xf32>
    %382 = arith.truncf %381 : vector<16x8xf32> to vector<16x8xbf16>
    %c1_241 = arith.constant 1 : index
    %c3_242 = arith.constant 3 : index
    %c0_243 = arith.constant 0 : index
    %c0_244 = arith.constant 0 : index
    %383 = vector.load %arg7[%c1_241, %c3_242, %c0_243, %c0_244] : memref<2x4x8x32xbf16, #tpu.memory_space<vmem>>, vector<1x1x8x32xbf16>
    %384 = vector.shape_cast %383 : vector<1x1x8x32xbf16> to vector<8x32xbf16>
    %cst_245 = arith.constant dense<0.000000e+00> : vector<16x32xf32>
    %385 = tpu.matmul %382, %384, %cst_245 {dimension_numbers = #tpu.dot_dimension_numbers<[1], [0], [0], [1], [0, 0, 1, 1], [], []>} : vector<16x8xbf16>, vector<8x32xbf16>, vector<16x32xf32> -> vector<16x32xf32>
    %386 = arith.addf %352, %385 : vector<16x32xf32>
    %387 = arith.addf %222, %386 : vector<16x32xf32>
    %c1_246 = arith.constant 1 : index
    %c0_247 = arith.constant 0 : index
    %c0_248 = arith.constant 0 : index
    %388 = vector.load %arg8[%c1_246, %c0_247, %c0_248] : memref<2x1x32xf32, #tpu.memory_space<vmem>>, vector<1x1x32xf32>
    %389 = vector.shape_cast %388 : vector<1x1x32xf32> to vector<1x32xf32>
    %390 = vector.broadcast %389 : vector<1x32xf32> to vector<16x32xf32>
    %391 = arith.addf %387, %390 : vector<16x32xf32>
    %c1_249 = arith.constant 1 : index
    %c0_250 = arith.constant 0 : index
    %c0_251 = arith.constant 0 : index
    %392 = vector.load %arg9[%c1_249, %c0_250, %c0_251] : memref<2x1x32xf32, #tpu.memory_space<vmem>>, vector<1x1x32xf32>
    %393 = vector.shape_cast %392 : vector<1x1x32xf32> to vector<1x32xf32>
    %c1_252 = arith.constant 1 : index
    %c0_253 = arith.constant 0 : index
    %c0_254 = arith.constant 0 : index
    %394 = vector.load %arg10[%c1_252, %c0_253, %c0_254] : memref<2x1x32xf32, #tpu.memory_space<vmem>>, vector<1x1x32xf32>
    %395 = vector.shape_cast %394 : vector<1x1x32xf32> to vector<1x32xf32>
    %cst_255 = arith.constant dense<0.000000e+00> : vector<16xf32>
    %396 = vector.multi_reduction <add>, %391, %cst_255 [1] : vector<16x32xf32> to vector<16xf32>
    %397 = vector.shape_cast %396 : vector<16xf32> to vector<16x1xf32>
    %cst_256 = arith.constant 3.200000e+01 : f32
    %398 = vector.broadcast %cst_256 : f32 to vector<16x1xf32>
    %399 = arith.divf %397, %398 : vector<16x1xf32>
    %400 = vector.broadcast %399 : vector<16x1xf32> to vector<16x32xf32>
    %401 = arith.subf %391, %400 : vector<16x32xf32>
    %402 = arith.mulf %401, %401 : vector<16x32xf32>
    %cst_257 = arith.constant dense<0.000000e+00> : vector<16xf32>
    %403 = vector.multi_reduction <add>, %402, %cst_257 [1] : vector<16x32xf32> to vector<16xf32>
    %404 = vector.shape_cast %403 : vector<16xf32> to vector<16x1xf32>
    %cst_258 = arith.constant 3.200000e+01 : f32
    %405 = vector.broadcast %cst_258 : f32 to vector<16x1xf32>
    %406 = arith.divf %404, %405 : vector<16x1xf32>
    %407 = vector.broadcast %399 : vector<16x1xf32> to vector<16x32xf32>
    %408 = arith.subf %391, %407 : vector<16x32xf32>
    %cst_259 = arith.constant 9.99999974E-6 : f32
    %409 = vector.broadcast %cst_259 : f32 to vector<16x1xf32>
    %410 = arith.addf %406, %409 : vector<16x1xf32>
    %411 = math.rsqrt %410 : vector<16x1xf32>
    %412 = vector.broadcast %411 : vector<16x1xf32> to vector<16x32xf32>
    %413 = arith.mulf %408, %412 : vector<16x32xf32>
    %414 = vector.broadcast %393 : vector<1x32xf32> to vector<16x32xf32>
    %415 = arith.mulf %413, %414 : vector<16x32xf32>
    %416 = vector.broadcast %395 : vector<1x32xf32> to vector<16x32xf32>
    %417 = arith.addf %415, %416 : vector<16x32xf32>
    %418 = arith.truncf %417 : vector<16x32xf32> to vector<16x32xbf16>
    %c1_260 = arith.constant 1 : index
    %c0_261 = arith.constant 0 : index
    %c0_262 = arith.constant 0 : index
    %419 = vector.load %arg11[%c1_260, %c0_261, %c0_262] : memref<2x32x64xbf16, #tpu.memory_space<vmem>>, vector<1x32x64xbf16>
    %420 = vector.shape_cast %419 : vector<1x32x64xbf16> to vector<32x64xbf16>
    %cst_263 = arith.constant dense<0.000000e+00> : vector<16x64xf32>
    %421 = tpu.matmul %418, %420, %cst_263 {dimension_numbers = #tpu.dot_dimension_numbers<[1], [0], [0], [1], [0, 0, 1, 1], [], []>} : vector<16x32xbf16>, vector<32x64xbf16>, vector<16x64xf32> -> vector<16x64xf32>
    %c1_264 = arith.constant 1 : index
    %c0_265 = arith.constant 0 : index
    %c0_266 = arith.constant 0 : index
    %422 = vector.load %arg12[%c1_264, %c0_265, %c0_266] : memref<2x1x64xf32, #tpu.memory_space<vmem>>, vector<1x1x64xf32>
    %423 = vector.shape_cast %422 : vector<1x1x64xf32> to vector<1x64xf32>
    %424 = vector.broadcast %423 : vector<1x64xf32> to vector<16x64xf32>
    %425 = arith.addf %421, %424 : vector<16x64xf32>
    %cst_267 = arith.constant 5.000000e-01 : f32
    %426 = vector.broadcast %cst_267 : f32 to vector<16x64xf32>
    %427 = arith.mulf %426, %425 : vector<16x64xf32>
    %cst_268 = arith.constant 0.707106769 : f32
    %428 = vector.broadcast %cst_268 : f32 to vector<16x64xf32>
    %429 = arith.mulf %425, %428 : vector<16x64xf32>
    %430 = math.erf %429 : vector<16x64xf32>
    %cst_269 = arith.constant 1.000000e+00 : f32
    %431 = vector.broadcast %cst_269 : f32 to vector<16x64xf32>
    %432 = arith.addf %431, %430 : vector<16x64xf32>
    %433 = arith.mulf %427, %432 : vector<16x64xf32>
    %434 = arith.truncf %433 : vector<16x64xf32> to vector<16x64xbf16>
    %c1_270 = arith.constant 1 : index
    %c0_271 = arith.constant 0 : index
    %c0_272 = arith.constant 0 : index
    %435 = vector.load %arg13[%c1_270, %c0_271, %c0_272] : memref<2x64x32xbf16, #tpu.memory_space<vmem>>, vector<1x64x32xbf16>
    %436 = vector.shape_cast %435 : vector<1x64x32xbf16> to vector<64x32xbf16>
    %cst_273 = arith.constant dense<0.000000e+00> : vector<16x32xf32>
    %437 = tpu.matmul %434, %436, %cst_273 {dimension_numbers = #tpu.dot_dimension_numbers<[1], [0], [0], [1], [0, 0, 1, 1], [], []>} : vector<16x64xbf16>, vector<64x32xbf16>, vector<16x32xf32> -> vector<16x32xf32>
    %c1_274 = arith.constant 1 : index
    %c0_275 = arith.constant 0 : index
    %c0_276 = arith.constant 0 : index
    %438 = vector.load %arg14[%c1_274, %c0_275, %c0_276] : memref<2x1x32xf32, #tpu.memory_space<vmem>>, vector<1x1x32xf32>
    %439 = vector.shape_cast %438 : vector<1x1x32xf32> to vector<1x32xf32>
    %440 = vector.broadcast %439 : vector<1x32xf32> to vector<16x32xf32>
    %441 = arith.addf %437, %440 : vector<16x32xf32>
    %442 = arith.addf %391, %441 : vector<16x32xf32>
    %c0_277 = arith.constant 0 : index
    %c0_278 = arith.constant 0 : index
    %443 = vector.load %arg15[%c0_277, %c0_278] : memref<16x32xf32, #tpu.memory_space<vmem>>, vector<16x32xf32>
    tpu.vector_store %arg15[%c0_277, %c0_278], %442 {strides = array<i32>} : memref<16x32xf32, #tpu.memory_space<vmem>>, vector<16x32xf32>,
    return
  }
}

</mosaic_0001>

<llo_original>
// kernel: transformer_encoder.1
$region0: #{transformer_encoder.1}
  #allocation0 [shape = 'u32[]', space=smem, size = 0x4, offset = 0x4, fixed_abs, tag = 'smem constant byte address 0x4 - core index']
  #allocation1 [shape = 'u32[144,128]{1,0:T(1,128)}', space=vmem, size = 0x12000, scoped, tag = 'internal scratch']
  %s0 = inlined_call_operand.vmem [shape: f32[16,32], index: 0, kind: input, shape index: {}]
  %s1 = inlined_call_operand.vmem [shape: f32[16,32], index: 1, kind: input, shape index: {}]
  %s2 = inlined_call_operand.vmem [shape: f32[2,1,32], index: 2, kind: input, shape index: {}]
  %s3 = inlined_call_operand.vmem [shape: f32[2,1,32], index: 3, kind: input, shape index: {}]
  %s4 = inlined_call_operand.vmem [shape: bf16[2,4,32,8], index: 4, kind: input, shape index: {}]
  %s5 = inlined_call_operand.vmem [shape: bf16[2,4,32,8], index: 5, kind: input, shape index: {}]
  %s6 = inlined_call_operand.vmem [shape: bf16[2,4,32,8], index: 6, kind: input, shape index: {}]
  %s7 = inlined_call_operand.vmem [shape: bf16[2,4,8,32], index: 7, kind: input, shape index: {}]
  %s8 = inlined_call_operand.vmem [shape: f32[2,1,32], index: 8, kind: input, shape index: {}]
  %s9 = inlined_call_operand.vmem [shape: f32[2,1,32], index: 9, kind: input, shape index: {}]
  %s10 = inlined_call_operand.vmem [shape: f32[2,1,32], index: 10, kind: input, shape index: {}]
  %s11 = inlined_call_operand.vmem [shape: bf16[2,32,64], index: 11, kind: input, shape index: {}]
  %s12 = inlined_call_operand.vmem [shape: f32[2,1,64], index: 12, kind: input, shape index: {}]
  %s13 = inlined_call_operand.vmem [shape: bf16[2,64,32], index: 13, kind: input, shape index: {}]
  %s14 = inlined_call_operand.vmem [shape: f32[2,1,32], index: 14, kind: input, shape index: {}]
  %s15 = inlined_call_operand.hbm [shape: f32[16,32], index: 15, kind: output, shape index: {}]
  %s16 = sld [smem:[#allocation0]]
  $region70: #{transformer_encoder.1} parent=0
    _
  %s18 = ssub.s32 1, %s16
  %s19 = scalar_select 0, %s18, %s16
  $region1: #{transformer_encoder.1} parent=0
    #allocation2 [shape = 'u8[8192]{0}', space=vmem, size = 0x2000, scoped, tag = 'output window, operand 0, single buffered']
    #allocation3 [shape = 's32[1]{0}', space=sflag, size = 0x4, scoped, tag = 'scoped memory for transformer_encoder.1']
    %20 = vsyncpa [#allocation3], 0
    // Predicated region
    $region2: #{transformer_encoder.1} parent=1 // pred_check
      _
    $region3: #{transformer_encoder.1} parent=1 // pred_check_branch
      %22 = sbr.rel (0) target = $region5
    $region4: #{transformer_encoder.1} parent=1 // pred_region
      _
    $region5: #{transformer_encoder.1} parent=1 // pred_fallthru
      _
    // Predicated region
    $region6: #{transformer_encoder.1} parent=1 // pred_check
      _
    $region7: #{transformer_encoder.1} parent=1 // pred_check_branch
      %24 = sbr.rel (0) target = $region9
    $region8: #{transformer_encoder.1} parent=1 // pred_region
      _
    $region9: #{transformer_encoder.1} parent=1 // pred_fallthru
      _
    // Predicated region
    $region10: #{transformer_encoder.1} parent=1 // pred_check
      _
    $region11: #{transformer_encoder.1} parent=1 // pred_check_branch
      %26 = sbr.rel (0) target = $region13
    $region12: #{transformer_encoder.1} parent=1 // pred_region
      _
    $region13: #{transformer_encoder.1} parent=1 // pred_fallthru
      _
    // Predicated region
    $region14: #{transformer_encoder.1} parent=1 // pred_check
      _
    $region15: #{transformer_encoder.1} parent=1 // pred_check_branch
      %28 = sbr.rel (0) target = $region17
    $region16: #{transformer_encoder.1} parent=1 // pred_region
      _
    $region17: #{transformer_encoder.1} parent=1 // pred_fallthru
      _
    // Predicated region
    $region18: #{transformer_encoder.1} parent=1 // pred_check
      _
    $region19: #{transformer_encoder.1} parent=1 // pred_check_branch
      %30 = sbr.rel (0) target = $region21
    $region20: #{transformer_encoder.1} parent=1 // pred_region
      _
    $region21: #{transformer_encoder.1} parent=1 // pred_fallthru
      _
    // Predicated region
    $region22: #{transformer_encoder.1} parent=1 // pred_check
      _
    $region23: #{transformer_encoder.1} parent=1 // pred_check_branch
      %32 = sbr.rel (0) target = $region25
    $region24: #{transformer_encoder.1} parent=1 // pred_region
      _
    $region25: #{transformer_encoder.1} parent=1 // pred_fallthru
      _
    // Predicated region
    $region26: #{transformer_encoder.1} parent=1 // pred_check
      _
    $region27: #{transformer_encoder.1} parent=1 // pred_check_branch
      %34 = sbr.rel (0) target = $region29
    $region28: #{transformer_encoder.1} parent=1 // pred_region
      _
    $region29: #{transformer_encoder.1} parent=1 // pred_fallthru
      _
    // Predicated region
    $region30: #{transformer_encoder.1} parent=1 // pred_check
      _
    $region31: #{transformer_encoder.1} parent=1 // pred_check_branch
      %36 = sbr.rel (0) target = $region33
    $region32: #{transformer_encoder.1} parent=1 // pred_region
      _
    $region33: #{transformer_encoder.1} parent=1 // pred_fallthru
      _
    // Predicated region
    $region34: #{transformer_encoder.1} parent=1 // pred_check
      _
    $region35: #{transformer_encoder.1} parent=1 // pred_check_branch
      %38 = sbr.rel (0) target = $region37
    $region36: #{transformer_encoder.1} parent=1 // pred_region
      _
    $region37: #{transformer_encoder.1} parent=1 // pred_fallthru
      _
    // Predicated region
    $region38: #{transformer_encoder.1} parent=1 // pred_check
      _
    $region39: #{transformer_encoder.1} parent=1 // pred_check_branch
      %40 = sbr.rel (0) target = $region41
    $region40: #{transformer_encoder.1} parent=1 // pred_region
      _
    $region41: #{transformer_encoder.1} parent=1 // pred_fallthru
      _
    // Predicated region
    $region42: #{transformer_encoder.1} parent=1 // pred_check
      _
    $region43: #{transformer_encoder.1} parent=1 // pred_check_branch
      %42 = sbr.rel (0) target = $region45
    $region44: #{transformer_encoder.1} parent=1 // pred_region
      _
    $region45: #{transformer_encoder.1} parent=1 // pred_fallthru
      _
    // Predicated region
    $region46: #{transformer_encoder.1} parent=1 // pred_check
      _
    $region47: #{transformer_encoder.1} parent=1 // pred_check_branch
      %44 = sbr.rel (0) target = $region49
    $region48: #{transformer_encoder.1} parent=1 // pred_region
      _
    $region49: #{transformer_encoder.1} parent=1 // pred_fallthru
      _
    // Predicated region
    $region50: #{transformer_encoder.1} parent=1 // pred_check
      _
    $region51: #{transformer_encoder.1} parent=1 // pred_check_branch
      %46 = sbr.rel (0) target = $region53
    $region52: #{transformer_encoder.1} parent=1 // pred_region
      _
    $region53: #{transformer_encoder.1} parent=1 // pred_fallthru
      _
    // Predicated region
    $region54: #{transformer_encoder.1} parent=1 // pred_check
      _
    $region55: #{transformer_encoder.1} parent=1 // pred_check_branch
      %48 = sbr.rel (0) target = $region57
    $region56: #{transformer_encoder.1} parent=1 // pred_region
      _
    $region57: #{transformer_encoder.1} parent=1 // pred_fallthru
      _
    // Predicated region
    $region58: #{transformer_encoder.1} parent=1 // pred_check
      _
    $region59: #{transformer_encoder.1} parent=1 // pred_check_branch
      %50 = sbr.rel (0) target = $region61
    $region60: #{transformer_encoder.1} parent=1 // pred_region
      _
    $region61: #{transformer_encoder.1} parent=1 // pred_fallthru
      _
    %v52 = vld [vmem:[%s0] sm:$0xff]
    %v53 = vld [vmem:[%s0 + $0x8] sm:$0xff]
    %v54 = vld [vmem:[%s1] sm:$0xff]
    %v55 = vld [vmem:[%s1 + $0x8] sm:$0xff]
    %v56 = vadd.f32 %v52, %v54
    %v57 = vadd.f32 %v53, %v55
    %v58 = vld [vmem:[%s2] sm:$0x1]
    %v59 = vld [vmem:[%s3] sm:$0x1]
    %vm60 = vcmask 261120
    %v61 = vsel %vm60, %v56, 0.0
    %62 = vadd.xlane.f32.xlu0 %v61
    %v63 = vpop.xlane.xlu0 %62
    %v64 = vsel %vm60, %v57, 0.0
    %65 = vadd.xlane.f32.xlu0 %v64
    %v66 = vpop.xlane.xlu0 %65
    %v67 = vrcp.pop 32.0
    %v68 = vmul.f32 %v63, %v67
    %v69 = vmul.f32 %v66, %v67
    %v70 = vsub.f32 %v56, %v68
    %v71 = vsub.f32 %v57, %v69
    %v72 = vmul.f32 %v70, %v70
    %v73 = vmul.f32 %v71, %v71
    %v74 = vsel %vm60, %v72, 0.0
    %75 = vadd.xlane.f32.xlu0 %v74
    %v76 = vpop.xlane.xlu0 %75
    %v77 = vsel %vm60, %v73, 0.0
    %78 = vadd.xlane.f32.xlu0 %v77
    %v79 = vpop.xlane.xlu0 %78
    %v80 = vmul.f32 %v76, %v67
    %v81 = vmul.f32 %v79, %v67
    %v82 = vadd.f32 %v80, 1e-05
    %v83 = vadd.f32 %v81, 1e-05
    %v84 = vrsqrt.pop %v82
    %v85 = vrsqrt.pop %v83
    %v86 = vmul.f32 %v70, %v84
    %v87 = vmul.f32 %v71, %v85
    %v89 = vlaneseq
    %v90 = vshrl.u32 %v89, 7
    %v91 = vsub.s32 0, %v90
    %v92 = vrot.slane %v58, %v91
    %v94 = vmul.f32 %v86, %v92
    %v95 = vmul.f32 %v87, %v92
    %v97 = vlaneseq
    %v98 = vshrl.u32 %v97, 7
    %v99 = vsub.s32 0, %v98
    %v100 = vrot.slane %v59, %v99
    %v102 = vadd.f32 %v94, %v100
    %v103 = vadd.f32 %v95, %v100
    %v104 = vpack.c.bf16 %v103, %v102
    %v105 = vld [vmem:[%s4] sm:$0xf]
    %v106 = vld [vmem:[%s4 + $0x4] sm:$0xf]
    %v107 = vld [vmem:[%s4 + $0x8] sm:$0xf]
    %v108 = vld [vmem:[%s4 + $0xc] sm:$0xf]
    %v113 = vunpack.c.l.b16 %v105
    %v114 = vunpack.c.l.b16 %v106
    %v115 = vunpack.c.l.b16 %v107
    %v116 = vunpack.c.l.b16 %v108
    %v117 = vpack.c.b16 %v114, %v113
    %v118 = vpack.c.b16 %v116, %v115
    %v122 = vsel %vm60, %v104, 0
    %124 = vmatprep.subr.bf16.mxu0 0
    %125 = vmatpush1.bf16.msra.mxu0 0
    %126 = vmatprep.subr.bf16.mxu0 0
    %127 = vmatpush1.bf16.msra.mxu0 0
    %128 = vmatprep.subr.bf16.mxu0 0
    %129 = vmatpush1.bf16.msra.mxu0 0
    %130 = vmatprep.subr.bf16.mxu0 0
    %131 = vmatpush1.bf16.msra.mxu0 0
    %132 = vmatprep.subr.bf16.mxu0 0
    %133 = vmatpush1.bf16.msra.mxu0 0
    %134 = vmatprep.subr.bf16.mxu0 0
    %135 = vmatpush1.bf16.msra.mxu0 0
    %136 = vmatprep.subr.bf16.mxu0 0
    %137 = vmatpush1.bf16.msra.mxu0 %v118
    %138 = vmatprep.subr.bf16.mxu0 0
    %139 = vmatpush1.bf16.msra.mxu0 %v117
    %140 = vmatprep.subr.bf16.mxu0 0
    %141 = vmatpush2.bf16.msra.mxu0 0
    %142 = vmatprep.subr.bf16.mxu0 0
    %143 = vmatpush2.bf16.msra.mxu0 0
    %144 = vmatprep.subr.bf16.mxu0 0
    %145 = vmatpush2.bf16.msra.mxu0 0
    %146 = vmatprep.subr.bf16.mxu0 0
    %147 = vmatpush2.bf16.msra.mxu0 0
    %148 = vmatprep.subr.bf16.mxu0 0
    %149 = vmatpush2.bf16.msra.mxu0 0
    %150 = vmatprep.subr.bf16.mxu0 0
    %151 = vmatpush2.bf16.msra.mxu0 0
    %152 = vmatprep.subr.bf16.mxu0 0
    %153 = vmatpush2.bf16.msra.mxu0 0
    %154 = vmatprep.subr.bf16.mxu0 0
    %155 = vmatpush2.bf16.msra.mxu0 0
    %156 = vmatprep.mubr.bf16.mxu0 0
    %157 = vmatmul.mubr.bf16.gmra.mxu0 %v122
    %v158 = vpop.f32.mrf.mxu0
    %v159 = vadd.f32 0.0, %v158
    %v160 = vpop.f32.mrf.mxu0
    %v161 = vpop.f32.mrf.mxu0
    %v162 = vadd.f32 0.0, %v161
    %v163 = vpop.f32.mrf.mxu0
    %164 = vdwg.mxu0
    %v165 = vld [vmem:[%s5] sm:$0xf]
    %v166 = vld [vmem:[%s5 + $0x4] sm:$0xf]
    %v167 = vld [vmem:[%s5 + $0x8] sm:$0xf]
    %v168 = vld [vmem:[%s5 + $0xc] sm:$0xf]
    %v173 = vunpack.c.l.b16 %v165
    %v174 = vunpack.c.l.b16 %v166
    %v175 = vunpack.c.l.b16 %v167
    %v176 = vunpack.c.l.b16 %v168
    %v177 = vpack.c.b16 %v174, %v173
    %v178 = vpack.c.b16 %v176, %v175
    %181 = vmatprep.subr.bf16.mxu0 0
    %182 = vmatpush1.bf16.msra.mxu0 0
    %183 = vmatprep.subr.bf16.mxu0 0
    %184 = vmatpush1.bf16.msra.mxu0 0
    %185 = vmatprep.subr.bf16.mxu0 0
    %186 = vmatpush1.bf16.msra.mxu0 0
    %187 = vmatprep.subr.bf16.mxu0 0
    %188 = vmatpush1.bf16.msra.mxu0 0
    %189 = vmatprep.subr.bf16.mxu0 0
    %190 = vmatpush1.bf16.msra.mxu0 0
    %191 = vmatprep.subr.bf16.mxu0 0
    %192 = vmatpush1.bf16.msra.mxu0 0
    %193 = vmatprep.subr.bf16.mxu0 0
    %194 = vmatpush1.bf16.msra.mxu0 %v178
    %195 = vmatprep.subr.bf16.mxu0 0
    %196 = vmatpush1.bf16.msra.mxu0 %v177
    %197 = vmatprep.subr.bf16.mxu0 0
    %198 = vmatpush2.bf16.msra.mxu0 0
    %199 = vmatprep.subr.bf16.mxu0 0
    %200 = vmatpush2.bf16.msra.mxu0 0
    %201 = vmatprep.subr.bf16.mxu0 0
    %202 = vmatpush2.bf16.msra.mxu0 0
    %203 = vmatprep.subr.bf16.mxu0 0
    %204 = vmatpush2.bf16.msra.mxu0 0
    %205 = vmatprep.subr.bf16.mxu0 0
    %206 = vmatpush2.bf16.msra.mxu0 0
    %207 = vmatprep.subr.bf16.mxu0 0
    %208 = vmatpush2.bf16.msra.mxu0 0
    %209 = vmatprep.subr.bf16.mxu0 0
    %210 = vmatpush2.bf16.msra.mxu0 0
    %211 = vmatprep.subr.bf16.mxu0 0
    %212 = vmatpush2.bf16.msra.mxu0 0
    %213 = vmatprep.mubr.bf16.mxu0 0
    %214 = vmatmul.mubr.bf16.gmra.mxu0 %v122
    %v215 = vpop.f32.mrf.mxu0
    %v216 = vadd.f32 0.0, %v215
    %v217 = vpop.f32.mrf.mxu0
    %v218 = vpop.f32.mrf.mxu0
    %v219 = vadd.f32 0.0, %v218
    %v220 = vpop.f32.mrf.mxu0
    %221 = vdwg.mxu0
    %v222 = vld [vmem:[%s6] sm:$0xf]
    %v223 = vld [vmem:[%s6 + $0x4] sm:$0xf]
    %v224 = vld [vmem:[%s6 + $0x8] sm:$0xf]
    %v225 = vld [vmem:[%s6 + $0xc] sm:$0xf]
    %v230 = vunpack.c.l.b16 %v222
    %v231 = vunpack.c.l.b16 %v223
    %v232 = vunpack.c.l.b16 %v224
    %v233 = vunpack.c.l.b16 %v225
    %v234 = vpack.c.b16 %v231, %v230
    %v235 = vpack.c.b16 %v233, %v232
    %238 = vmatprep.subr.bf16.mxu0 0
    %239 = vmatpush1.bf16.msra.mxu0 0
    %240 = vmatprep.subr.bf16.mxu0 0
    %241 = vmatpush1.bf16.msra.mxu0 0
    %242 = vmatprep.subr.bf16.mxu0 0
    %243 = vmatpush1.bf16.msra.mxu0 0
    %244 = vmatprep.subr.bf16.mxu0 0
    %245 = vmatpush1.bf16.msra.mxu0 0
    %246 = vmatprep.subr.bf16.mxu0 0
    %247 = vmatpush1.bf16.msra.mxu0 0
    %248 = vmatprep.subr.bf16.mxu0 0
    %249 = vmatpush1.bf16.msra.mxu0 0
    %250 = vmatprep.subr.bf16.mxu0 0
    %251 = vmatpush1.bf16.msra.mxu0 %v235
    %252 = vmatprep.subr.bf16.mxu0 0
    %253 = vmatpush1.bf16.msra.mxu0 %v234
    %254 = vmatprep.subr.bf16.mxu0 0
    %255 = vmatpush2.bf16.msra.mxu0 0
    %256 = vmatprep.subr.bf16.mxu0 0
    %257 = vmatpush2.bf16.msra.mxu0 0
    %258 = vmatprep.subr.bf16.mxu0 0
    %259 = vmatpush2.bf16.msra.mxu0 0
    %260 = vmatprep.subr.bf16.mxu0 0
    %261 = vmatpush2.bf16.msra.mxu0 0
    %262 = vmatprep.subr.bf16.mxu0 0
    %263 = vmatpush2.bf16.msra.mxu0 0
    %264 = vmatprep.subr.bf16.mxu0 0
    %265 = vmatpush2.bf16.msra.mxu0 0
    %266 = vmatprep.subr.bf16.mxu0 0
    %267 = vmatpush2.bf16.msra.mxu0 0
    %268 = vmatprep.subr.bf16.mxu0 0
    %269 = vmatpush2.bf16.msra.mxu0 0
    %270 = vmatprep.mubr.bf16.mxu0 0
    %271 = vmatmul.mubr.bf16.gmra.mxu0 %v122
    %v272 = vpop.f32.mrf.mxu0
    %v273 = vadd.f32 0.0, %v272
    %v274 = vpop.f32.mrf.mxu0
    %v275 = vpop.f32.mrf.mxu0
    %v276 = vadd.f32 0.0, %v275
    %v277 = vpop.f32.mrf.mxu0
    %278 = vdwg.mxu0
    %v279 = vpack.c.bf16 %v159, %v159
    %v280 = vpack.c.bf16 %v162, %v162
    %v281 = vpack.c.bf16 %v216, %v216
    %v282 = vpack.c.bf16 %v219, %v219
    %v283 = vpack.c.bf16 %v273, %v273
    %v284 = vpack.c.bf16 %v276, %v276
    %vm285 = vcmask 64512
    %v287 = vsel %vm285, %v279, 0
    %v290 = vsel %vm285, %v281, 0
    %292 = vmatprep.subr.bf16.mxu0 0
    %293 = vmatpush1.bf16.xpose.msra.mxu0 0
    %294 = vmatprep.subr.bf16.mxu0 0
    %295 = vmatpush1.bf16.xpose.msra.mxu0 0
    %296 = vmatprep.subr.bf16.mxu0 0
    %297 = vmatpush1.bf16.xpose.msra.mxu0 0
    %298 = vmatprep.subr.bf16.mxu0 0
    %299 = vmatpush1.bf16.xpose.msra.mxu0 0
    %300 = vmatprep.subr.bf16.mxu0 0
    %301 = vmatpush1.bf16.xpose.msra.mxu0 0
    %302 = vmatprep.subr.bf16.mxu0 0
    %303 = vmatpush1.bf16.xpose.msra.mxu0 0
    %304 = vmatprep.subr.bf16.mxu0 0
    %305 = vmatpush1.bf16.xpose.msra.mxu0 0
    %306 = vmatprep.subr.bf16.mxu0 0
    %307 = vmatpush1.bf16.xpose.msra.mxu0 %v290
    %308 = vmatprep.subr.bf16.mxu0 0
    %309 = vmatpush2.bf16.xpose.msra.mxu0 0
    %310 = vmatprep.subr.bf16.mxu0 0
    %311 = vmatpush2.bf16.xpose.msra.mxu0 0
    %312 = vmatprep.subr.bf16.mxu0 0
    %313 = vmatpush2.bf16.xpose.msra.mxu0 0
    %314 = vmatprep.subr.bf16.mxu0 0
    %315 = vmatpush2.bf16.xpose.msra.mxu0 0
    %316 = vmatprep.subr.bf16.mxu0 0
    %317 = vmatpush2.bf16.xpose.msra.mxu0 0
    %318 = vmatprep.subr.bf16.mxu0 0
    %319 = vmatpush2.bf16.xpose.msra.mxu0 0
    %320 = vmatprep.subr.bf16.mxu0 0
    %321 = vmatpush2.bf16.xpose.msra.mxu0 0
    %322 = vmatprep.subr.bf16.mxu0 0
    %323 = vmatpush2.bf16.xpose.msra.mxu0 0
    %324 = vmatprep.mubr.bf16.mxu0 0
    %325 = vmatmul.mubr.bf16.gmra.mxu0 %v287
    %v326 = vpop.f32.mrf.mxu0
    %v327 = vadd.f32 0.0, %v326
    %v328 = vpop.f32.mrf.mxu0
    %v329 = vpop.f32.mrf.mxu0
    %v330 = vpop.f32.mrf.mxu0
    %331 = vdwg.mxu0
    %v333 = vsel %vm285, %v280, 0
    %v336 = vsel %vm285, %v282, 0
    %338 = vmatprep.subr.bf16.mxu0 0
    %339 = vmatpush1.bf16.xpose.msra.mxu0 0
    %340 = vmatprep.subr.bf16.mxu0 0
    %341 = vmatpush1.bf16.xpose.msra.mxu0 0
    %342 = vmatprep.subr.bf16.mxu0 0
    %343 = vmatpush1.bf16.xpose.msra.mxu0 0
    %344 = vmatprep.subr.bf16.mxu0 0
    %345 = vmatpush1.bf16.xpose.msra.mxu0 0
    %346 = vmatprep.subr.bf16.mxu0 0
    %347 = vmatpush1.bf16.xpose.msra.mxu0 0
    %348 = vmatprep.subr.bf16.mxu0 0
    %349 = vmatpush1.bf16.xpose.msra.mxu0 0
    %350 = vmatprep.subr.bf16.mxu0 0
    %351 = vmatpush1.bf16.xpose.msra.mxu0 0
    %352 = vmatprep.subr.bf16.mxu0 0
    %353 = vmatpush1.bf16.xpose.msra.mxu0 %v336
    %354 = vmatprep.subr.bf16.mxu0 0
    %355 = vmatpush2.bf16.xpose.msra.mxu0 0
    %356 = vmatprep.subr.bf16.mxu0 0
    %357 = vmatpush2.bf16.xpose.msra.mxu0 0
    %358 = vmatprep.subr.bf16.mxu0 0
    %359 = vmatpush2.bf16.xpose.msra.mxu0 0
    %360 = vmatprep.subr.bf16.mxu0 0
    %361 = vmatpush2.bf16.xpose.msra.mxu0 0
    %362 = vmatprep.subr.bf16.mxu0 0
    %363 = vmatpush2.bf16.xpose.msra.mxu0 0
    %364 = vmatprep.subr.bf16.mxu0 0
    %365 = vmatpush2.bf16.xpose.msra.mxu0 0
    %366 = vmatprep.subr.bf16.mxu0 0
    %367 = vmatpush2.bf16.xpose.msra.mxu0 0
    %368 = vmatprep.subr.bf16.mxu0 0
    %369 = vmatpush2.bf16.xpose.msra.mxu0 0
    %370 = vmatprep.mubr.bf16.mxu0 0
    %371 = vmatmul.mubr.bf16.gmra.mxu0 %v333
    %v372 = vpop.f32.mrf.mxu0
    %v373 = vadd.f32 0.0, %v372
    %v374 = vpop.f32.mrf.mxu0
    %v375 = vpop.f32.mrf.mxu0
    %v376 = vpop.f32.mrf.mxu0
    %377 = vdwg.mxu0
    %v378 = vsel %vm285, %v327, -inf
    %379 = vmax.xlane.f32.xlu0 %v378
    %v380 = vpop.xlane.xlu0 %379
    %v381 = vsel %vm285, %v373, -inf
    %382 = vmax.xlane.f32.xlu0 %v381
    %v383 = vpop.xlane.xlu0 %382
    %v384 = vsub.f32 %v327, %v380
    %v385 = vsub.f32 %v373, %v383
    %v386 = vmul.f32 %v384, 1.442695
    %v387 = vpow.pop %v386
    %v388 = vmul.f32 %v385, 1.442695
    %v389 = vpow.pop %v388
    %v390 = vsel %vm285, %v387, 0.0
    %391 = vadd.xlane.f32.xlu0 %v390
    %v392 = vpop.xlane.xlu0 %391
    %v393 = vsel %vm285, %v389, 0.0
    %394 = vadd.xlane.f32.xlu0 %v393
    %v395 = vpop.xlane.xlu0 %394
    %v396 = vrcp.pop %v392
    %v397 = vrcp.pop %v395
    %v398 = vmul.f32 %v387, %v396
    %v399 = vmul.f32 %v389, %v397
    %v400 = vpack.c.bf16 %v398, %v398
    %v401 = vpack.c.bf16 %v399, %v399
    %v403 = vsel %vm285, %v400, 0
    %vm405 = vcmask 1043456
    %v407 = vsel %vm405, %v283, 0
    %409 = vmatprep.subr.bf16.mxu0 0
    %410 = vmatpush1.bf16.msra.mxu0 0
    %411 = vmatprep.subr.bf16.mxu0 0
    %412 = vmatpush1.bf16.msra.mxu0 0
    %413 = vmatprep.subr.bf16.mxu0 0
    %414 = vmatpush1.bf16.msra.mxu0 0
    %415 = vmatprep.subr.bf16.mxu0 0
    %416 = vmatpush1.bf16.msra.mxu0 0
    %417 = vmatprep.subr.bf16.mxu0 0
    %418 = vmatpush1.bf16.msra.mxu0 0
    %419 = vmatprep.subr.bf16.mxu0 0
    %420 = vmatpush1.bf16.msra.mxu0 0
    %421 = vmatprep.subr.bf16.mxu0 0
    %422 = vmatpush1.bf16.msra.mxu0 0
    %423 = vmatprep.subr.bf16.mxu0 0
    %424 = vmatpush1.bf16.msra.mxu0 %v407
    %425 = vmatprep.subr.bf16.mxu0 0
    %426 = vmatpush2.bf16.msra.mxu0 0
    %427 = vmatprep.subr.bf16.mxu0 0
    %428 = vmatpush2.bf16.msra.mxu0 0
    %429 = vmatprep.subr.bf16.mxu0 0
    %430 = vmatpush2.bf16.msra.mxu0 0
    %431 = vmatprep.subr.bf16.mxu0 0
    %432 = vmatpush2.bf16.msra.mxu0 0
    %433 = vmatprep.subr.bf16.mxu0 0
    %434 = vmatpush2.bf16.msra.mxu0 0
    %435 = vmatprep.subr.bf16.mxu0 0
    %436 = vmatpush2.bf16.msra.mxu0 0
    %437 = vmatprep.subr.bf16.mxu0 0
    %438 = vmatpush2.bf16.msra.mxu0 0
    %439 = vmatprep.subr.bf16.mxu0 0
    %440 = vmatpush2.bf16.msra.mxu0 0
    %441 = vmatprep.mubr.bf16.mxu0 0
    %442 = vmatmul.mubr.bf16.gmra.mxu0 %v403
    %v443 = vpop.f32.mrf.mxu0
    %v444 = vadd.f32 0.0, %v443
    %v445 = vpop.f32.mrf.mxu0
    %v446 = vpop.f32.mrf.mxu0
    %v447 = vpop.f32.mrf.mxu0
    %448 = vdwg.mxu0
    %v450 = vsel %vm285, %v401, 0
    %v453 = vsel %vm405, %v284, 0
    %455 = vmatprep.subr.bf16.mxu0 0
    %456 = vmatpush1.bf16.msra.mxu0 0
    %457 = vmatprep.subr.bf16.mxu0 0
    %458 = vmatpush1.bf16.msra.mxu0 0
    %459 = vmatprep.subr.bf16.mxu0 0
    %460 = vmatpush1.bf16.msra.mxu0 0
    %461 = vmatprep.subr.bf16.mxu0 0
    %462 = vmatpush1.bf16.msra.mxu0 0
    %463 = vmatprep.subr.bf16.mxu0 0
    %464 = vmatpush1.bf16.msra.mxu0 0
    %465 = vmatprep.subr.bf16.mxu0 0
    %466 = vmatpush1.bf16.msra.mxu0 0
    %467 = vmatprep.subr.bf16.mxu0 0
    %468 = vmatpush1.bf16.msra.mxu0 0
    %469 = vmatprep.subr.bf16.mxu0 0
    %470 = vmatpush1.bf16.msra.mxu0 %v453
    %471 = vmatprep.subr.bf16.mxu0 0
    %472 = vmatpush2.bf16.msra.mxu0 0
    %473 = vmatprep.subr.bf16.mxu0 0
    %474 = vmatpush2.bf16.msra.mxu0 0
    %475 = vmatprep.subr.bf16.mxu0 0
    %476 = vmatpush2.bf16.msra.mxu0 0
    %477 = vmatprep.subr.bf16.mxu0 0
    %478 = vmatpush2.bf16.msra.mxu0 0
    %479 = vmatprep.subr.bf16.mxu0 0
    %480 = vmatpush2.bf16.msra.mxu0 0
    %481 = vmatprep.subr.bf16.mxu0 0
    %482 = vmatpush2.bf16.msra.mxu0 0
    %483 = vmatprep.subr.bf16.mxu0 0
    %484 = vmatpush2.bf16.msra.mxu0 0
    %485 = vmatprep.subr.bf16.mxu0 0
    %486 = vmatpush2.bf16.msra.mxu0 0
    %487 = vmatprep.mubr.bf16.mxu0 0
    %488 = vmatmul.mubr.bf16.gmra.mxu0 %v450
    %v489 = vpop.f32.mrf.mxu0
    %v490 = vadd.f32 0.0, %v489
    %v491 = vpop.f32.mrf.mxu0
    %v492 = vpop.f32.mrf.mxu0
    %v493 = vpop.f32.mrf.mxu0
    %494 = vdwg.mxu0
    %v495 = vpack.c.bf16 %v490, %v444
    %v496 = vld [vmem:[%s7] sm:$0xf]
    %s497 = scalar_lea.vmem %s4, 16
    %v498 = vld [vmem:[%s497] sm:$0xf]
    %v499 = vld [vmem:[%s497 + $0x4] sm:$0xf]
    %v500 = vld [vmem:[%s497 + $0x8] sm:$0xf]
    %v501 = vld [vmem:[%s497 + $0xc] sm:$0xf]
    %v506 = vunpack.c.l.b16 %v498
    %v507 = vunpack.c.l.b16 %v499
    %v508 = vunpack.c.l.b16 %v500
    %v509 = vunpack.c.l.b16 %v501
    %v510 = vpack.c.b16 %v507, %v506
    %v511 = vpack.c.b16 %v509, %v508
    %514 = vmatprep.subr.bf16.mxu0 0
    %515 = vmatpush1.bf16.msra.mxu0 0
    %516 = vmatprep.subr.bf16.mxu0 0
    %517 = vmatpush1.bf16.msra.mxu0 0
    %518 = vmatprep.subr.bf16.mxu0 0
    %519 = vmatpush1.bf16.msra.mxu0 0
    %520 = vmatprep.subr.bf16.mxu0 0
    %521 = vmatpush1.bf16.msra.mxu0 0
    %522 = vmatprep.subr.bf16.mxu0 0
    %523 = vmatpush1.bf16.msra.mxu0 0
    %524 = vmatprep.subr.bf16.mxu0 0
    %525 = vmatpush1.bf16.msra.mxu0 0
    %526 = vmatprep.subr.bf16.mxu0 0
    %527 = vmatpush1.bf16.msra.mxu0 %v511
    %528 = vmatprep.subr.bf16.mxu0 0
    %529 = vmatpush1.bf16.msra.mxu0 %v510
    %530 = vmatprep.subr.bf16.mxu0 0
    %531 = vmatpush2.bf16.msra.mxu0 0
    %532 = vmatprep.subr.bf16.mxu0 0
    %533 = vmatpush2.bf16.msra.mxu0 0
    %534 = vmatprep.subr.bf16.mxu0 0
    %535 = vmatpush2.bf16.msra.mxu0 0
    %536 = vmatprep.subr.bf16.mxu0 0
    %537 = vmatpush2.bf16.msra.mxu0 0
    %538 = vmatprep.subr.bf16.mxu0 0
    %539 = vmatpush2.bf16.msra.mxu0 0
    %540 = vmatprep.subr.bf16.mxu0 0
    %541 = vmatpush2.bf16.msra.mxu0 0
    %542 = vmatprep.subr.bf16.mxu0 0
    %543 = vmatpush2.bf16.msra.mxu0 0
    %544 = vmatprep.subr.bf16.mxu0 0
    %545 = vmatpush2.bf16.msra.mxu0 0
    %546 = vmatprep.mubr.bf16.mxu0 0
    %547 = vmatmul.mubr.bf16.gmra.mxu0 %v122
    %v548 = vpop.f32.mrf.mxu0
    %v549 = vadd.f32 0.0, %v548
    %v550 = vpop.f32.mrf.mxu0
    %v551 = vpop.f32.mrf.mxu0
    %v552 = vadd.f32 0.0, %v551
    %v553 = vpop.f32.mrf.mxu0
    %554 = vdwg.mxu0
    %s555 = scalar_lea.vmem %s5, 16
    %v556 = vld [vmem:[%s555] sm:$0xf]
    %v557 = vld [vmem:[%s555 + $0x4] sm:$0xf]
    %v558 = vld [vmem:[%s555 + $0x8] sm:$0xf]
    %v559 = vld [vmem:[%s555 + $0xc] sm:$0xf]
    %v564 = vunpack.c.l.b16 %v556
    %v565 = vunpack.c.l.b16 %v557
    %v566 = vunpack.c.l.b16 %v558
    %v567 = vunpack.c.l.b16 %v559
    %v568 = vpack.c.b16 %v565, %v564
    %v569 = vpack.c.b16 %v567, %v566
    %572 = vmatprep.subr.bf16.mxu0 0
    %573 = vmatpush1.bf16.msra.mxu0 0
    %574 = vmatprep.subr.bf16.mxu0 0
    %575 = vmatpush1.bf16.msra.mxu0 0
    %576 = vmatprep.subr.bf16.mxu0 0
    %577 = vmatpush1.bf16.msra.mxu0 0
    %578 = vmatprep.subr.bf16.mxu0 0
    %579 = vmatpush1.bf16.msra.mxu0 0
    %580 = vmatprep.subr.bf16.mxu0 0
    %581 = vmatpush1.bf16.msra.mxu0 0
    %582 = vmatprep.subr.bf16.mxu0 0
    %583 = vmatpush1.bf16.msra.mxu0 0
    %584 = vmatprep.subr.bf16.mxu0 0
    %585 = vmatpush1.bf16.msra.mxu0 %v569
    %586 = vmatprep.subr.bf16.mxu0 0
    %587 = vmatpush1.bf16.msra.mxu0 %v568
    %588 = vmatprep.subr.bf16.mxu0 0
    %589 = vmatpush2.bf16.msra.mxu0 0
    %590 = vmatprep.subr.bf16.mxu0 0
    %591 = vmatpush2.bf16.msra.mxu0 0
    %592 = vmatprep.subr.bf16.mxu0 0
    %593 = vmatpush2.bf16.msra.mxu0 0
    %594 = vmatprep.subr.bf16.mxu0 0
    %595 = vmatpush2.bf16.msra.mxu0 0
    %596 = vmatprep.subr.bf16.mxu0 0
    %597 = vmatpush2.bf16.msra.mxu0 0
    %598 = vmatprep.subr.bf16.mxu0 0
    %599 = vmatpush2.bf16.msra.mxu0 0
    %600 = vmatprep.subr.bf16.mxu0 0
    %601 = vmatpush2.bf16.msra.mxu0 0
    %602 = vmatprep.subr.bf16.mxu0 0
    %603 = vmatpush2.bf16.msra.mxu0 0
    %604 = vmatprep.mubr.bf16.mxu0 0
    %605 = vmatmul.mubr.bf16.gmra.mxu0 %v122
    %v606 = vpop.f32.mrf.mxu0
    %v607 = vadd.f32 0.0, %v606
    %v608 = vpop.f32.mrf.mxu0
    %v609 = vpop.f32.mrf.mxu0
    %v610 = vadd.f32 0.0, %v609
    %v611 = vpop.f32.mrf.mxu0
    %612 = vdwg.mxu0
    %s613 = scalar_lea.vmem %s6, 16
    %v614 = vld [vmem:[%s613] sm:$0xf]
    %v615 = vld [vmem:[%s613 + $0x4] sm:$0xf]
    %v616 = vld [vmem:[%s613 + $0x8] sm:$0xf]
    %v617 = vld [vmem:[%s613 + $0xc] sm:$0xf]
    %v622 = vunpack.c.l.b16 %v614
    %v623 = vunpack.c.l.b16 %v615
    %v624 = vunpack.c.l.b16 %v616
    %v625 = vunpack.c.l.b16 %v617
    %v626 = vpack.c.b16 %v623, %v622
    %v627 = vpack.c.b16 %v625, %v624
    %630 = vmatprep.subr.bf16.mxu0 0
    %631 = vmatpush1.bf16.msra.mxu0 0
    %632 = vmatprep.subr.bf16.mxu0 0
    %633 = vmatpush1.bf16.msra.mxu0 0
    %634 = vmatprep.subr.bf16.mxu0 0
    %635 = vmatpush1.bf16.msra.mxu0 0
    %636 = vmatprep.subr.bf16.mxu0 0
    %637 = vmatpush1.bf16.msra.mxu0 0
    %638 = vmatprep.subr.bf16.mxu0 0
    %639 = vmatpush1.bf16.msra.mxu0 0
    %640 = vmatprep.subr.bf16.mxu0 0
    %641 = vmatpush1.bf16.msra.mxu0 0
    %642 = vmatprep.subr.bf16.mxu0 0
    %643 = vmatpush1.bf16.msra.mxu0 %v627
    %644 = vmatprep.subr.bf16.mxu0 0
    %645 = vmatpush1.bf16.msra.mxu0 %v626
    %646 = vmatprep.subr.bf16.mxu0 0
    %647 = vmatpush2.bf16.msra.mxu0 0
    %648 = vmatprep.subr.bf16.mxu0 0
    %649 = vmatpush2.bf16.msra.mxu0 0
    %650 = vmatprep.subr.bf16.mxu0 0
    %651 = vmatpush2.bf16.msra.mxu0 0
    %652 = vmatprep.subr.bf16.mxu0 0
    %653 = vmatpush2.bf16.msra.mxu0 0
    %654 = vmatprep.subr.bf16.mxu0 0
    %655 = vmatpush2.bf16.msra.mxu0 0
    %656 = vmatprep.subr.bf16.mxu0 0
    %657 = vmatpush2.bf16.msra.mxu0 0
    %658 = vmatprep.subr.bf16.mxu0 0
    %659 = vmatpush2.bf16.msra.mxu0 0
    %660 = vmatprep.subr.bf16.mxu0 0
    %661 = vmatpush2.bf16.msra.mxu0 0
    %662 = vmatprep.mubr.bf16.mxu0 0
    %663 = vmatmul.mubr.bf16.gmra.mxu0 %v122
    %v664 = vpop.f32.mrf.mxu0
    %v665 = vadd.f32 0.0, %v664
    %v666 = vpop.f32.mrf.mxu0
    %v667 = vpop.f32.mrf.mxu0
    %v668 = vadd.f32 0.0, %v667
    %v669 = vpop.f32.mrf.mxu0
    %670 = vdwg.mxu0
    %v671 = vpack.c.bf16 %v549, %v549
    %v672 = vpack.c.bf16 %v552, %v552
    %v673 = vpack.c.bf16 %v607, %v607
    %v674 = vpack.c.bf16 %v610, %v610
    %v675 = vpack.c.bf16 %v665, %v665
    %v676 = vpack.c.bf16 %v668, %v668
    %v678 = vsel %vm285, %v671, 0
    %v681 = vsel %vm285, %v673, 0
    %683 = vmatprep.subr.bf16.mxu0 0
    %684 = vmatpush1.bf16.xpose.msra.mxu0 0
    %685 = vmatprep.subr.bf16.mxu0 0
    %686 = vmatpush1.bf16.xpose.msra.mxu0 0
    %687 = vmatprep.subr.bf16.mxu0 0
    %688 = vmatpush1.bf16.xpose.msra.mxu0 0
    %689 = vmatprep.subr.bf16.mxu0 0
    %690 = vmatpush1.bf16.xpose.msra.mxu0 0
    %691 = vmatprep.subr.bf16.mxu0 0
    %692 = vmatpush1.bf16.xpose.msra.mxu0 0
    %693 = vmatprep.subr.bf16.mxu0 0
    %694 = vmatpush1.bf16.xpose.msra.mxu0 0
    %695 = vmatprep.subr.bf16.mxu0 0
    %696 = vmatpush1.bf16.xpose.msra.mxu0 0
    %697 = vmatprep.subr.bf16.mxu0 0
    %698 = vmatpush1.bf16.xpose.msra.mxu0 %v681
    %699 = vmatprep.subr.bf16.mxu0 0
    %700 = vmatpush2.bf16.xpose.msra.mxu0 0
    %701 = vmatprep.subr.bf16.mxu0 0
    %702 = vmatpush2.bf16.xpose.msra.mxu0 0
    %703 = vmatprep.subr.bf16.mxu0 0
    %704 = vmatpush2.bf16.xpose.msra.mxu0 0
    %705 = vmatprep.subr.bf16.mxu0 0
    %706 = vmatpush2.bf16.xpose.msra.mxu0 0
    %707 = vmatprep.subr.bf16.mxu0 0
    %708 = vmatpush2.bf16.xpose.msra.mxu0 0
    %709 = vmatprep.subr.bf16.mxu0 0
    %710 = vmatpush2.bf16.xpose.msra.mxu0 0
    %711 = vmatprep.subr.bf16.mxu0 0
    %712 = vmatpush2.bf16.xpose.msra.mxu0 0
    %713 = vmatprep.subr.bf16.mxu0 0
    %714 = vmatpush2.bf16.xpose.msra.mxu0 0
    %715 = vmatprep.mubr.bf16.mxu0 0
    %716 = vmatmul.mubr.bf16.gmra.mxu0 %v678
    %v717 = vpop.f32.mrf.mxu0
    %v718 = vadd.f32 0.0, %v717
    %v719 = vpop.f32.mrf.mxu0
    %v720 = vpop.f32.mrf.mxu0
    %v721 = vpop.f32.mrf.mxu0
    %722 = vdwg.mxu0
    %v724 = vsel %vm285, %v672, 0
    %v727 = vsel %vm285, %v674, 0
    %729 = vmatprep.subr.bf16.mxu0 0
    %730 = vmatpush1.bf16.xpose.msra.mxu0 0
    %731 = vmatprep.subr.bf16.mxu0 0
    %732 = vmatpush1.bf16.xpose.msra.mxu0 0
    %733 = vmatprep.subr.bf16.mxu0 0
    %734 = vmatpush1.bf16.xpose.msra.mxu0 0
    %735 = vmatprep.subr.bf16.mxu0 0
    %736 = vmatpush1.bf16.xpose.msra.mxu0 0
    %737 = vmatprep.subr.bf16.mxu0 0
    %738 = vmatpush1.bf16.xpose.msra.mxu0 0
    %739 = vmatprep.subr.bf16.mxu0 0
    %740 = vmatpush1.bf16.xpose.msra.mxu0 0
    %741 = vmatprep.subr.bf16.mxu0 0
    %742 = vmatpush1.bf16.xpose.msra.mxu0 0
    %743 = vmatprep.subr.bf16.mxu0 0
    %744 = vmatpush1.bf16.xpose.msra.mxu0 %v727
    %745 = vmatprep.subr.bf16.mxu0 0
    %746 = vmatpush2.bf16.xpose.msra.mxu0 0
    %747 = vmatprep.subr.bf16.mxu0 0
    %748 = vmatpush2.bf16.xpose.msra.mxu0 0
    %749 = vmatprep.subr.bf16.mxu0 0
    %750 = vmatpush2.bf16.xpose.msra.mxu0 0
    %751 = vmatprep.subr.bf16.mxu0 0
    %752 = vmatpush2.bf16.xpose.msra.mxu0 0
    %753 = vmatprep.subr.bf16.mxu0 0
    %754 = vmatpush2.bf16.xpose.msra.mxu0 0
    %755 = vmatprep.subr.bf16.mxu0 0
    %756 = vmatpush2.bf16.xpose.msra.mxu0 0
    %757 = vmatprep.subr.bf16.mxu0 0
    %758 = vmatpush2.bf16.xpose.msra.mxu0 0
    %759 = vmatprep.subr.bf16.mxu0 0
    %760 = vmatpush2.bf16.xpose.msra.mxu0 0
    %761 = vmatprep.mubr.bf16.mxu0 0
    %762 = vmatmul.mubr.bf16.gmra.mxu0 %v724
    %v763 = vpop.f32.mrf.mxu0
    %v764 = vadd.f32 0.0, %v763
    %v765 = vpop.f32.mrf.mxu0
    %v766 = vpop.f32.mrf.mxu0
    %v767 = vpop.f32.mrf.mxu0
    %768 = vdwg.mxu0
    %v769 = vsel %vm285, %v718, -inf
    %770 = vmax.xlane.f32.xlu0 %v769
    %v771 = vpop.xlane.xlu0 %770
    %v772 = vsel %vm285, %v764, -inf
    %773 = vmax.xlane.f32.xlu0 %v772
    %v774 = vpop.xlane.xlu0 %773
    %v775 = vsub.f32 %v718, %v771
    %v776 = vsub.f32 %v764, %v774
    %v777 = vmul.f32 %v775, 1.442695
    %v778 = vpow.pop %v777
    %v779 = vmul.f32 %v776, 1.442695
    %v780 = vpow.pop %v779
    %v781 = vsel %vm285, %v778, 0.0
    %782 = vadd.xlane.f32.xlu0 %v781
    %v783 = vpop.xlane.xlu0 %782
    %v784 = vsel %vm285, %v780, 0.0
    %785 = vadd.xlane.f32.xlu0 %v784
    %v786 = vpop.xlane.xlu0 %785
    %v787 = vrcp.pop %v783
    %v788 = vrcp.pop %v786
    %v789 = vmul.f32 %v778, %v787
    %v790 = vmul.f32 %v780, %v788
    %v791 = vpack.c.bf16 %v789, %v789
    %v792 = vpack.c.bf16 %v790, %v790
    %v794 = vsel %vm285, %v791, 0
    %v797 = vsel %vm405, %v675, 0
    %799 = vmatprep.subr.bf16.mxu0 0
    %800 = vmatpush1.bf16.msra.mxu0 0
    %801 = vmatprep.subr.bf16.mxu0 0
    %802 = vmatpush1.bf16.msra.mxu0 0
    %803 = vmatprep.subr.bf16.mxu0 0
    %804 = vmatpush1.bf16.msra.mxu0 0
    %805 = vmatprep.subr.bf16.mxu0 0
    %806 = vmatpush1.bf16.msra.mxu0 0
    %807 = vmatprep.subr.bf16.mxu0 0
    %808 = vmatpush1.bf16.msra.mxu0 0
    %809 = vmatprep.subr.bf16.mxu0 0
    %810 = vmatpush1.bf16.msra.mxu0 0
    %811 = vmatprep.subr.bf16.mxu0 0
    %812 = vmatpush1.bf16.msra.mxu0 0
    %813 = vmatprep.subr.bf16.mxu0 0
    %814 = vmatpush1.bf16.msra.mxu0 %v797
    %815 = vmatprep.subr.bf16.mxu0 0
    %816 = vmatpush2.bf16.msra.mxu0 0
    %817 = vmatprep.subr.bf16.mxu0 0
    %818 = vmatpush2.bf16.msra.mxu0 0
    %819 = vmatprep.subr.bf16.mxu0 0
    %820 = vmatpush2.bf16.msra.mxu0 0
    %821 = vmatprep.subr.bf16.mxu0 0
    %822 = vmatpush2.bf16.msra.mxu0 0
    %823 = vmatprep.subr.bf16.mxu0 0
    %824 = vmatpush2.bf16.msra.mxu0 0
    %825 = vmatprep.subr.bf16.mxu0 0
    %826 = vmatpush2.bf16.msra.mxu0 0
    %827 = vmatprep.subr.bf16.mxu0 0
    %828 = vmatpush2.bf16.msra.mxu0 0
    %829 = vmatprep.subr.bf16.mxu0 0
    %830 = vmatpush2.bf16.msra.mxu0 0
    %831 = vmatprep.mubr.bf16.mxu0 0
    %832 = vmatmul.mubr.bf16.gmra.mxu0 %v794
    %v833 = vpop.f32.mrf.mxu0
    %v834 = vadd.f32 0.0, %v833
    %v835 = vpop.f32.mrf.mxu0
    %v836 = vpop.f32.mrf.mxu0
    %v837 = vpop.f32.mrf.mxu0
    %838 = vdwg.mxu0
    %v840 = vsel %vm285, %v792, 0
    %v843 = vsel %vm405, %v676, 0
    %845 = vmatprep.subr.bf16.mxu0 0
    %846 = vmatpush1.bf16.msra.mxu0 0
    %847 = vmatprep.subr.bf16.mxu0 0
    %848 = vmatpush1.bf16.msra.mxu0 0
    %849 = vmatprep.subr.bf16.mxu0 0
    %850 = vmatpush1.bf16.msra.mxu0 0
    %851 = vmatprep.subr.bf16.mxu0 0
    %852 = vmatpush1.bf16.msra.mxu0 0
    %853 = vmatprep.subr.bf16.mxu0 0
    %854 = vmatpush1.bf16.msra.mxu0 0
    %855 = vmatprep.subr.bf16.mxu0 0
    %856 = vmatpush1.bf16.msra.mxu0 0
    %857 = vmatprep.subr.bf16.mxu0 0
    %858 = vmatpush1.bf16.msra.mxu0 0
    %859 = vmatprep.subr.bf16.mxu0 0
    %860 = vmatpush1.bf16.msra.mxu0 %v843
    %861 = vmatprep.subr.bf16.mxu0 0
    %862 = vmatpush2.bf16.msra.mxu0 0
    %863 = vmatprep.subr.bf16.mxu0 0
    %864 = vmatpush2.bf16.msra.mxu0 0
    %865 = vmatprep.subr.bf16.mxu0 0
    %866 = vmatpush2.bf16.msra.mxu0 0
    %867 = vmatprep.subr.bf16.mxu0 0
    %868 = vmatpush2.bf16.msra.mxu0 0
    %869 = vmatprep.subr.bf16.mxu0 0
    %870 = vmatpush2.bf16.msra.mxu0 0
    %871 = vmatprep.subr.bf16.mxu0 0
    %872 = vmatpush2.bf16.msra.mxu0 0
    %873 = vmatprep.subr.bf16.mxu0 0
    %874 = vmatpush2.bf16.msra.mxu0 0
    %875 = vmatprep.subr.bf16.mxu0 0
    %876 = vmatpush2.bf16.msra.mxu0 0
    %877 = vmatprep.mubr.bf16.mxu0 0
    %878 = vmatmul.mubr.bf16.gmra.mxu0 %v840
    %v879 = vpop.f32.mrf.mxu0
    %v880 = vadd.f32 0.0, %v879
    %v881 = vpop.f32.mrf.mxu0
    %v882 = vpop.f32.mrf.mxu0
    %v883 = vpop.f32.mrf.mxu0
    %884 = vdwg.mxu0
    %v885 = vpack.c.bf16 %v880, %v834
    %s886 = scalar_lea.vmem %s7, 4
    %v887 = vld [vmem:[%s886] sm:$0xf]
    %v889 = vsel %vm285, %v885, 0
    %v892 = vsel %vm405, %v887, 0
    %894 = vmatprep.subr.bf16.mxu0 0
    %895 = vmatpush1.bf16.msra.mxu0 0
    %896 = vmatprep.subr.bf16.mxu0 0
    %897 = vmatpush1.bf16.msra.mxu0 0
    %898 = vmatprep.subr.bf16.mxu0 0
    %899 = vmatpush1.bf16.msra.mxu0 0
    %900 = vmatprep.subr.bf16.mxu0 0
    %901 = vmatpush1.bf16.msra.mxu0 0
    %902 = vmatprep.subr.bf16.mxu0 0
    %903 = vmatpush1.bf16.msra.mxu0 0
    %904 = vmatprep.subr.bf16.mxu0 0
    %905 = vmatpush1.bf16.msra.mxu0 0
    %906 = vmatprep.subr.bf16.mxu0 0
    %907 = vmatpush1.bf16.msra.mxu0 0
    %908 = vmatprep.subr.bf16.mxu0 0
    %909 = vmatpush1.bf16.msra.mxu0 %v892
    %910 = vmatprep.subr.bf16.mxu0 0
    %911 = vmatpush2.bf16.msra.mxu0 0
    %912 = vmatprep.subr.bf16.mxu0 0
    %913 = vmatpush2.bf16.msra.mxu0 0
    %914 = vmatprep.subr.bf16.mxu0 0
    %915 = vmatpush2.bf16.msra.mxu0 0
    %916 = vmatprep.subr.bf16.mxu0 0
    %917 = vmatpush2.bf16.msra.mxu0 0
    %918 = vmatprep.subr.bf16.mxu0 0
    %919 = vmatpush2.bf16.msra.mxu0 0
    %920 = vmatprep.subr.bf16.mxu0 0
    %921 = vmatpush2.bf16.msra.mxu0 0
    %922 = vmatprep.subr.bf16.mxu0 0
    %923 = vmatpush2.bf16.msra.mxu0 0
    %924 = vmatprep.subr.bf16.mxu0 0
    %925 = vmatpush2.bf16.msra.mxu0 0
    %926 = vmatprep.mubr.bf16.mxu0 0
    %927 = vmatmul.mubr.bf16.gmra.mxu0 %v889
    %v928 = vpop.f32.mrf.mxu0
    %v929 = vadd.f32 0.0, %v928
    %v930 = vpop.f32.mrf.mxu0
    %v931 = vpop.f32.mrf.mxu0
    %v932 = vadd.f32 0.0, %v931
    %v933 = vpop.f32.mrf.mxu0
    %934 = vdwg.mxu0
    %v936 = vsel %vm285, %v495, 0
    %v939 = vsel %vm405, %v496, 0
    %941 = vmatprep.subr.bf16.mxu0 0
    %942 = vmatpush1.bf16.msra.mxu0 0
    %943 = vmatprep.subr.bf16.mxu0 0
    %944 = vmatpush1.bf16.msra.mxu0 0
    %945 = vmatprep.subr.bf16.mxu0 0
    %946 = vmatpush1.bf16.msra.mxu0 0
    %947 = vmatprep.subr.bf16.mxu0 0
    %948 = vmatpush1.bf16.msra.mxu0 0
    %949 = vmatprep.subr.bf16.mxu0 0
    %950 = vmatpush1.bf16.msra.mxu0 0
    %951 = vmatprep.subr.bf16.mxu0 0
    %952 = vmatpush1.bf16.msra.mxu0 0
    %953 = vmatprep.subr.bf16.mxu0 0
    %954 = vmatpush1.bf16.msra.mxu0 0
    %955 = vmatprep.subr.bf16.mxu0 0
    %956 = vmatpush1.bf16.msra.mxu0 %v939
    %957 = vmatprep.subr.bf16.mxu0 0
    %958 = vmatpush2.bf16.msra.mxu0 0
    %959 = vmatprep.subr.bf16.mxu0 0
    %960 = vmatpush2.bf16.msra.mxu0 0
    %961 = vmatprep.subr.bf16.mxu0 0
    %962 = vmatpush2.bf16.msra.mxu0 0
    %963 = vmatprep.subr.bf16.mxu0 0
    %964 = vmatpush2.bf16.msra.mxu0 0
    %965 = vmatprep.subr.bf16.mxu0 0
    %966 = vmatpush2.bf16.msra.mxu0 0
    %967 = vmatprep.subr.bf16.mxu0 0
    %968 = vmatpush2.bf16.msra.mxu0 0
    %969 = vmatprep.subr.bf16.mxu0 0
    %970 = vmatpush2.bf16.msra.mxu0 0
    %971 = vmatprep.subr.bf16.mxu0 0
    %972 = vmatpush2.bf16.msra.mxu0 0
    %973 = vmatprep.mubr.bf16.mxu0 0
    %974 = vmatmul.mubr.bf16.gmra.mxu0 %v936
    %v975 = vpop.f32.mrf.mxu0
    %v976 = vadd.f32 %v929, %v975
    %v977 = vpop.f32.mrf.mxu0
    %v978 = vpop.f32.mrf.mxu0
    %v979 = vadd.f32 %v932, %v978
    %v980 = vpop.f32.mrf.mxu0
    %981 = vdwg.mxu0
    %s982 = scalar_lea.vmem %s4, 32
    %v983 = vld [vmem:[%s982] sm:$0xf]
    %v984 = vld [vmem:[%s982 + $0x4] sm:$0xf]
    %v985 = vld [vmem:[%s982 + $0x8] sm:$0xf]
    %v986 = vld [vmem:[%s982 + $0xc] sm:$0xf]
    %v991 = vunpack.c.l.b16 %v983
    %v992 = vunpack.c.l.b16 %v984
    %v993 = vunpack.c.l.b16 %v985
    %v994 = vunpack.c.l.b16 %v986
    %v995 = vpack.c.b16 %v992, %v991
    %v996 = vpack.c.b16 %v994, %v993
    %999 = vmatprep.subr.bf16.mxu0 0
    %1000 = vmatpush1.bf16.msra.mxu0 0
    %1001 = vmatprep.subr.bf16.mxu0 0
    %1002 = vmatpush1.bf16.msra.mxu0 0
    %1003 = vmatprep.subr.bf16.mxu0 0
    %1004 = vmatpush1.bf16.msra.mxu0 0
    %1005 = vmatprep.subr.bf16.mxu0 0
    %1006 = vmatpush1.bf16.msra.mxu0 0
    %1007 = vmatprep.subr.bf16.mxu0 0
    %1008 = vmatpush1.bf16.msra.mxu0 0
    %1009 = vmatprep.subr.bf16.mxu0 0
    %1010 = vmatpush1.bf16.msra.mxu0 0
    %1011 = vmatprep.subr.bf16.mxu0 0
    %1012 = vmatpush1.bf16.msra.mxu0 %v996
    %1013 = vmatprep.subr.bf16.mxu0 0
    %1014 = vmatpush1.bf16.msra.mxu0 %v995
    %1015 = vmatprep.subr.bf16.mxu0 0
    %1016 = vmatpush2.bf16.msra.mxu0 0
    %1017 = vmatprep.subr.bf16.mxu0 0
    %1018 = vmatpush2.bf16.msra.mxu0 0
    %1019 = vmatprep.subr.bf16.mxu0 0
    %1020 = vmatpush2.bf16.msra.mxu0 0
    %1021 = vmatprep.subr.bf16.mxu0 0
    %1022 = vmatpush2.bf16.msra.mxu0 0
    %1023 = vmatprep.subr.bf16.mxu0 0
    %1024 = vmatpush2.bf16.msra.mxu0 0
    %1025 = vmatprep.subr.bf16.mxu0 0
    %1026 = vmatpush2.bf16.msra.mxu0 0
    %1027 = vmatprep.subr.bf16.mxu0 0
    %1028 = vmatpush2.bf16.msra.mxu0 0
    %1029 = vmatprep.subr.bf16.mxu0 0
    %1030 = vmatpush2.bf16.msra.mxu0 0
    %1031 = vmatprep.mubr.bf16.mxu0 0
    %1032 = vmatmul.mubr.bf16.gmra.mxu0 %v122
    %v1033 = vpop.f32.mrf.mxu0
    %v1034 = vadd.f32 0.0, %v1033
    %v1035 = vpop.f32.mrf.mxu0
    %v1036 = vpop.f32.mrf.mxu0
    %v1037 = vadd.f32 0.0, %v1036
    %v1038 = vpop.f32.mrf.mxu0
    %1039 = vdwg.mxu0
    %s1040 = scalar_lea.vmem %s5, 32
    %v1041 = vld [vmem:[%s1040] sm:$0xf]
    %v1042 = vld [vmem:[%s1040 + $0x4] sm:$0xf]
    %v1043 = vld [vmem:[%s1040 + $0x8] sm:$0xf]
    %v1044 = vld [vmem:[%s1040 + $0xc] sm:$0xf]
    %v1049 = vunpack.c.l.b16 %v1041
    %v1050 = vunpack.c.l.b16 %v1042
    %v1051 = vunpack.c.l.b16 %v1043
    %v1052 = vunpack.c.l.b16 %v1044
    %v1053 = vpack.c.b16 %v1050, %v1049
    %v1054 = vpack.c.b16 %v1052, %v1051
    %1057 = vmatprep.subr.bf16.mxu0 0
    %1058 = vmatpush1.bf16.msra.mxu0 0
    %1059 = vmatprep.subr.bf16.mxu0 0
    %1060 = vmatpush1.bf16.msra.mxu0 0
    %1061 = vmatprep.subr.bf16.mxu0 0
    %1062 = vmatpush1.bf16.msra.mxu0 0
    %1063 = vmatprep.subr.bf16.mxu0 0
    %1064 = vmatpush1.bf16.msra.mxu0 0
    %1065 = vmatprep.subr.bf16.mxu0 0
    %1066 = vmatpush1.bf16.msra.mxu0 0
    %1067 = vmatprep.subr.bf16.mxu0 0
    %1068 = vmatpush1.bf16.msra.mxu0 0
    %1069 = vmatprep.subr.bf16.mxu0 0
    %1070 = vmatpush1.bf16.msra.mxu0 %v1054
    %1071 = vmatprep.subr.bf16.mxu0 0
    %1072 = vmatpush1.bf16.msra.mxu0 %v1053
    %1073 = vmatprep.subr.bf16.mxu0 0
    %1074 = vmatpush2.bf16.msra.mxu0 0
    %1075 = vmatprep.subr.bf16.mxu0 0
    %1076 = vmatpush2.bf16.msra.mxu0 0
    %1077 = vmatprep.subr.bf16.mxu0 0
    %1078 = vmatpush2.bf16.msra.mxu0 0
    %1079 = vmatprep.subr.bf16.mxu0 0
    %1080 = vmatpush2.bf16.msra.mxu0 0
    %1081 = vmatprep.subr.bf16.mxu0 0
    %1082 = vmatpush2.bf16.msra.mxu0 0
    %1083 = vmatprep.subr.bf16.mxu0 0
    %1084 = vmatpush2.bf16.msra.mxu0 0
    %1085 = vmatprep.subr.bf16.mxu0 0
    %1086 = vmatpush2.bf16.msra.mxu0 0
    %1087 = vmatprep.subr.bf16.mxu0 0
    %1088 = vmatpush2.bf16.msra.mxu0 0
    %1089 = vmatprep.mubr.bf16.mxu0 0
    %1090 = vmatmul.mubr.bf16.gmra.mxu0 %v122
    %v1091 = vpop.f32.mrf.mxu0
    %v1092 = vadd.f32 0.0, %v1091
    %v1093 = vpop.f32.mrf.mxu0
    %v1094 = vpop.f32.mrf.mxu0
    %v1095 = vadd.f32 0.0, %v1094
    %v1096 = vpop.f32.mrf.mxu0
    %1097 = vdwg.mxu0
    %s1098 = scalar_lea.vmem %s6, 32
    %v1099 = vld [vmem:[%s1098] sm:$0xf]
    %v1100 = vld [vmem:[%s1098 + $0x4] sm:$0xf]
    %v1101 = vld [vmem:[%s1098 + $0x8] sm:$0xf]
    %v1102 = vld [vmem:[%s1098 + $0xc] sm:$0xf]
    %v1107 = vunpack.c.l.b16 %v1099
    %v1108 = vunpack.c.l.b16 %v1100
    %v1109 = vunpack.c.l.b16 %v1101
    %v1110 = vunpack.c.l.b16 %v1102
    %v1111 = vpack.c.b16 %v1108, %v1107
    %v1112 = vpack.c.b16 %v1110, %v1109
    %1115 = vmatprep.subr.bf16.mxu0 0
    %1116 = vmatpush1.bf16.msra.mxu0 0
    %1117 = vmatprep.subr.bf16.mxu0 0
    %1118 = vmatpush1.bf16.msra.mxu0 0
    %1119 = vmatprep.subr.bf16.mxu0 0
    %1120 = vmatpush1.bf16.msra.mxu0 0
    %1121 = vmatprep.subr.bf16.mxu0 0
    %1122 = vmatpush1.bf16.msra.mxu0 0
    %1123 = vmatprep.subr.bf16.mxu0 0
    %1124 = vmatpush1.bf16.msra.mxu0 0
    %1125 = vmatprep.subr.bf16.mxu0 0
    %1126 = vmatpush1.bf16.msra.mxu0 0
    %1127 = vmatprep.subr.bf16.mxu0 0
    %1128 = vmatpush1.bf16.msra.mxu0 %v1112
    %1129 = vmatprep.subr.bf16.mxu0 0
    %1130 = vmatpush1.bf16.msra.mxu0 %v1111
    %1131 = vmatprep.subr.bf16.mxu0 0
    %1132 = vmatpush2.bf16.msra.mxu0 0
    %1133 = vmatprep.subr.bf16.mxu0 0
    %1134 = vmatpush2.bf16.msra.mxu0 0
    %1135 = vmatprep.subr.bf16.mxu0 0
    %1136 = vmatpush2.bf16.msra.mxu0 0
    %1137 = vmatprep.subr.bf16.mxu0 0
    %1138 = vmatpush2.bf16.msra.mxu0 0
    %1139 = vmatprep.subr.bf16.mxu0 0
    %1140 = vmatpush2.bf16.msra.mxu0 0
    %1141 = vmatprep.subr.bf16.mxu0 0
    %1142 = vmatpush2.bf16.msra.mxu0 0
    %1143 = vmatprep.subr.bf16.mxu0 0
    %1144 = vmatpush2.bf16.msra.mxu0 0
    %1145 = vmatprep.subr.bf16.mxu0 0
    %1146 = vmatpush2.bf16.msra.mxu0 0
    %1147 = vmatprep.mubr.bf16.mxu0 0
    %1148 = vmatmul.mubr.bf16.gmra.mxu0 %v122
    %v1149 = vpop.f32.mrf.mxu0
    %v1150 = vadd.f32 0.0, %v1149
    %v1151 = vpop.f32.mrf.mxu0
    %v1152 = vpop.f32.mrf.mxu0
    %v1153 = vadd.f32 0.0, %v1152
    %v1154 = vpop.f32.mrf.mxu0
    %1155 = vdwg.mxu0
    %v1156 = vpack.c.bf16 %v1034, %v1034
    %v1157 = vpack.c.bf16 %v1037, %v1037
    %v1158 = vpack.c.bf16 %v1092, %v1092
    %v1159 = vpack.c.bf16 %v1095, %v1095
    %v1160 = vpack.c.bf16 %v1150, %v1150
    %v1161 = vpack.c.bf16 %v1153, %v1153
    %v1163 = vsel %vm285, %v1156, 0
    %v1166 = vsel %vm285, %v1158, 0
    %1168 = vmatprep.subr.bf16.mxu0 0
    %1169 = vmatpush1.bf16.xpose.msra.mxu0 0
    %1170 = vmatprep.subr.bf16.mxu0 0
    %1171 = vmatpush1.bf16.xpose.msra.mxu0 0
    %1172 = vmatprep.subr.bf16.mxu0 0
    %1173 = vmatpush1.bf16.xpose.msra.mxu0 0
    %1174 = vmatprep.subr.bf16.mxu0 0
    %1175 = vmatpush1.bf16.xpose.msra.mxu0 0
    %1176 = vmatprep.subr.bf16.mxu0 0
    %1177 = vmatpush1.bf16.xpose.msra.mxu0 0
    %1178 = vmatprep.subr.bf16.mxu0 0
    %1179 = vmatpush1.bf16.xpose.msra.mxu0 0
    %1180 = vmatprep.subr.bf16.mxu0 0
    %1181 = vmatpush1.bf16.xpose.msra.mxu0 0
    %1182 = vmatprep.subr.bf16.mxu0 0
    %1183 = vmatpush1.bf16.xpose.msra.mxu0 %v1166
    %1184 = vmatprep.subr.bf16.mxu0 0
    %1185 = vmatpush2.bf16.xpose.msra.mxu0 0
    %1186 = vmatprep.subr.bf16.mxu0 0
    %1187 = vmatpush2.bf16.xpose.msra.mxu0 0
    %1188 = vmatprep.subr.bf16.mxu0 0
    %1189 = vmatpush2.bf16.xpose.msra.mxu0 0
    %1190 = vmatprep.subr.bf16.mxu0 0
    %1191 = vmatpush2.bf16.xpose.msra.mxu0 0
    %1192 = vmatprep.subr.bf16.mxu0 0
    %1193 = vmatpush2.bf16.xpose.msra.mxu0 0
    %1194 = vmatprep.subr.bf16.mxu0 0
    %1195 = vmatpush2.bf16.xpose.msra.mxu0 0
    %1196 = vmatprep.subr.bf16.mxu0 0
    %1197 = vmatpush2.bf16.xpose.msra.mxu0 0
    %1198 = vmatprep.subr.bf16.mxu0 0
    %1199 = vmatpush2.bf16.xpose.msra.mxu0 0
    %1200 = vmatprep.mubr.bf16.mxu0 0
    %1201 = vmatmul.mubr.bf16.gmra.mxu0 %v1163
    %v1202 = vpop.f32.mrf.mxu0
    %v1203 = vadd.f32 0.0, %v1202
    %v1204 = vpop.f32.mrf.mxu0
    %v1205 = vpop.f32.mrf.mxu0
    %v1206 = vpop.f32.mrf.mxu0
    %1207 = vdwg.mxu0
    %v1209 = vsel %vm285, %v1157, 0
    %v1212 = vsel %vm285, %v1159, 0
    %1214 = vmatprep.subr.bf16.mxu0 0
    %1215 = vmatpush1.bf16.xpose.msra.mxu0 0
    %1216 = vmatprep.subr.bf16.mxu0 0
    %1217 = vmatpush1.bf16.xpose.msra.mxu0 0
    %1218 = vmatprep.subr.bf16.mxu0 0
    %1219 = vmatpush1.bf16.xpose.msra.mxu0 0
    %1220 = vmatprep.subr.bf16.mxu0 0
    %1221 = vmatpush1.bf16.xpose.msra.mxu0 0
    %1222 = vmatprep.subr.bf16.mxu0 0
    %1223 = vmatpush1.bf16.xpose.msra.mxu0 0
    %1224 = vmatprep.subr.bf16.mxu0 0
    %1225 = vmatpush1.bf16.xpose.msra.mxu0 0
    %1226 = vmatprep.subr.bf16.mxu0 0
    %1227 = vmatpush1.bf16.xpose.msra.mxu0 0
    %1228 = vmatprep.subr.bf16.mxu0 0
    %1229 = vmatpush1.bf16.xpose.msra.mxu0 %v1212
    %1230 = vmatprep.subr.bf16.mxu0 0
    %1231 = vmatpush2.bf16.xpose.msra.mxu0 0
    %1232 = vmatprep.subr.bf16.mxu0 0
    %1233 = vmatpush2.bf16.xpose.msra.mxu0 0
    %1234 = vmatprep.subr.bf16.mxu0 0
    %1235 = vmatpush2.bf16.xpose.msra.mxu0 0
    %1236 = vmatprep.subr.bf16.mxu0 0
    %1237 = vmatpush2.bf16.xpose.msra.mxu0 0
    %1238 = vmatprep.subr.bf16.mxu0 0
    %1239 = vmatpush2.bf16.xpose.msra.mxu0 0
    %1240 = vmatprep.subr.bf16.mxu0 0
    %1241 = vmatpush2.bf16.xpose.msra.mxu0 0
    %1242 = vmatprep.subr.bf16.mxu0 0
    %1243 = vmatpush2.bf16.xpose.msra.mxu0 0
    %1244 = vmatprep.subr.bf16.mxu0 0
    %1245 = vmatpush2.bf16.xpose.msra.mxu0 0
    %1246 = vmatprep.mubr.bf16.mxu0 0
    %1247 = vmatmul.mubr.bf16.gmra.mxu0 %v1209
    %v1248 = vpop.f32.mrf.mxu0
    %v1249 = vadd.f32 0.0, %v1248
    %v1250 = vpop.f32.mrf.mxu0
    %v1251 = vpop.f32.mrf.mxu0
    %v1252 = vpop.f32.mrf.mxu0
    %1253 = vdwg.mxu0
    %v1254 = vsel %vm285, %v1203, -inf
    %1255 = vmax.xlane.f32.xlu0 %v1254
    %v1256 = vpop.xlane.xlu0 %1255
    %v1257 = vsel %vm285, %v1249, -inf
    %1258 = vmax.xlane.f32.xlu0 %v1257
    %v1259 = vpop.xlane.xlu0 %1258
    %v1260 = vsub.f32 %v1203, %v1256
    %v1261 = vsub.f32 %v1249, %v1259
    %v1262 = vmul.f32 %v1260, 1.442695
    %v1263 = vpow.pop %v1262
    %v1264 = vmul.f32 %v1261, 1.442695
    %v1265 = vpow.pop %v1264
    %v1266 = vsel %vm285, %v1263, 0.0
    %1267 = vadd.xlane.f32.xlu0 %v1266
    %v1268 = vpop.xlane.xlu0 %1267
    %v1269 = vsel %vm285, %v1265, 0.0
    %1270 = vadd.xlane.f32.xlu0 %v1269
    %v1271 = vpop.xlane.xlu0 %1270
    %v1272 = vrcp.pop %v1268
    %v1273 = vrcp.pop %v1271
    %v1274 = vmul.f32 %v1263, %v1272
    %v1275 = vmul.f32 %v1265, %v1273
    %v1276 = vpack.c.bf16 %v1274, %v1274
    %v1277 = vpack.c.bf16 %v1275, %v1275
    %v1279 = vsel %vm285, %v1276, 0
    %v1282 = vsel %vm405, %v1160, 0
    %1284 = vmatprep.subr.bf16.mxu0 0
    %1285 = vmatpush1.bf16.msra.mxu0 0
    %1286 = vmatprep.subr.bf16.mxu0 0
    %1287 = vmatpush1.bf16.msra.mxu0 0
    %1288 = vmatprep.subr.bf16.mxu0 0
    %1289 = vmatpush1.bf16.msra.mxu0 0
    %1290 = vmatprep.subr.bf16.mxu0 0
    %1291 = vmatpush1.bf16.msra.mxu0 0
    %1292 = vmatprep.subr.bf16.mxu0 0
    %1293 = vmatpush1.bf16.msra.mxu0 0
    %1294 = vmatprep.subr.bf16.mxu0 0
    %1295 = vmatpush1.bf16.msra.mxu0 0
    %1296 = vmatprep.subr.bf16.mxu0 0
    %1297 = vmatpush1.bf16.msra.mxu0 0
    %1298 = vmatprep.subr.bf16.mxu0 0
    %1299 = vmatpush1.bf16.msra.mxu0 %v1282
    %1300 = vmatprep.subr.bf16.mxu0 0
    %1301 = vmatpush2.bf16.msra.mxu0 0
    %1302 = vmatprep.subr.bf16.mxu0 0
    %1303 = vmatpush2.bf16.msra.mxu0 0
    %1304 = vmatprep.subr.bf16.mxu0 0
    %1305 = vmatpush2.bf16.msra.mxu0 0
    %1306 = vmatprep.subr.bf16.mxu0 0
    %1307 = vmatpush2.bf16.msra.mxu0 0
    %1308 = vmatprep.subr.bf16.mxu0 0
    %1309 = vmatpush2.bf16.msra.mxu0 0
    %1310 = vmatprep.subr.bf16.mxu0 0
    %1311 = vmatpush2.bf16.msra.mxu0 0
    %1312 = vmatprep.subr.bf16.mxu0 0
    %1313 = vmatpush2.bf16.msra.mxu0 0
    %1314 = vmatprep.subr.bf16.mxu0 0
    %1315 = vmatpush2.bf16.msra.mxu0 0
    %1316 = vmatprep.mubr.bf16.mxu0 0
    %1317 = vmatmul.mubr.bf16.gmra.mxu0 %v1279
    %v1318 = vpop.f32.mrf.mxu0
    %v1319 = vadd.f32 0.0, %v1318
    %v1320 = vpop.f32.mrf.mxu0
    %v1321 = vpop.f32.mrf.mxu0
    %v1322 = vpop.f32.mrf.mxu0
    %1323 = vdwg.mxu0
    %v1325 = vsel %vm285, %v1277, 0
    %v1328 = vsel %vm405, %v1161, 0
    %1330 = vmatprep.subr.bf16.mxu0 0
    %1331 = vmatpush1.bf16.msra.mxu0 0
    %1332 = vmatprep.subr.bf16.mxu0 0
    %1333 = vmatpush1.bf16.msra.mxu0 0
    %1334 = vmatprep.subr.bf16.mxu0 0
    %1335 = vmatpush1.bf16.msra.mxu0 0
    %1336 = vmatprep.subr.bf16.mxu0 0
    %1337 = vmatpush1.bf16.msra.mxu0 0
    %1338 = vmatprep.subr.bf16.mxu0 0
    %1339 = vmatpush1.bf16.msra.mxu0 0
    %1340 = vmatprep.subr.bf16.mxu0 0
    %1341 = vmatpush1.bf16.msra.mxu0 0
    %1342 = vmatprep.subr.bf16.mxu0 0
    %1343 = vmatpush1.bf16.msra.mxu0 0
    %1344 = vmatprep.subr.bf16.mxu0 0
    %1345 = vmatpush1.bf16.msra.mxu0 %v1328
    %1346 = vmatprep.subr.bf16.mxu0 0
    %1347 = vmatpush2.bf16.msra.mxu0 0
    %1348 = vmatprep.subr.bf16.mxu0 0
    %1349 = vmatpush2.bf16.msra.mxu0 0
    %1350 = vmatprep.subr.bf16.mxu0 0
    %1351 = vmatpush2.bf16.msra.mxu0 0
    %1352 = vmatprep.subr.bf16.mxu0 0
    %1353 = vmatpush2.bf16.msra.mxu0 0
    %1354 = vmatprep.subr.bf16.mxu0 0
    %1355 = vmatpush2.bf16.msra.mxu0 0
    %1356 = vmatprep.subr.bf16.mxu0 0
    %1357 = vmatpush2.bf16.msra.mxu0 0
    %1358 = vmatprep.subr.bf16.mxu0 0
    %1359 = vmatpush2.bf16.msra.mxu0 0
    %1360 = vmatprep.subr.bf16.mxu0 0
    %1361 = vmatpush2.bf16.msra.mxu0 0
    %1362 = vmatprep.mubr.bf16.mxu0 0
    %1363 = vmatmul.mubr.bf16.gmra.mxu0 %v1325
    %v1364 = vpop.f32.mrf.mxu0
    %v1365 = vadd.f32 0.0, %v1364
    %v1366 = vpop.f32.mrf.mxu0
    %v1367 = vpop.f32.mrf.mxu0
    %v1368 = vpop.f32.mrf.mxu0
    %1369 = vdwg.mxu0
    %v1370 = vpack.c.bf16 %v1365, %v1319
    %s1371 = scalar_lea.vmem %s7, 8
    %v1372 = vld [vmem:[%s1371] sm:$0xf]
    %v1374 = vsel %vm285, %v1370, 0
    %v1377 = vsel %vm405, %v1372, 0
    %1379 = vmatprep.subr.bf16.mxu0 0
    %1380 = vmatpush1.bf16.msra.mxu0 0
    %1381 = vmatprep.subr.bf16.mxu0 0
    %1382 = vmatpush1.bf16.msra.mxu0 0
    %1383 = vmatprep.subr.bf16.mxu0 0
    %1384 = vmatpush1.bf16.msra.mxu0 0
    %1385 = vmatprep.subr.bf16.mxu0 0
    %1386 = vmatpush1.bf16.msra.mxu0 0
    %1387 = vmatprep.subr.bf16.mxu0 0
    %1388 = vmatpush1.bf16.msra.mxu0 0
    %1389 = vmatprep.subr.bf16.mxu0 0
    %1390 = vmatpush1.bf16.msra.mxu0 0
    %1391 = vmatprep.subr.bf16.mxu0 0
    %1392 = vmatpush1.bf16.msra.mxu0 0
    %1393 = vmatprep.subr.bf16.mxu0 0
    %1394 = vmatpush1.bf16.msra.mxu0 %v1377
    %1395 = vmatprep.subr.bf16.mxu0 0
    %1396 = vmatpush2.bf16.msra.mxu0 0
    %1397 = vmatprep.subr.bf16.mxu0 0
    %1398 = vmatpush2.bf16.msra.mxu0 0
    %1399 = vmatprep.subr.bf16.mxu0 0
    %1400 = vmatpush2.bf16.msra.mxu0 0
    %1401 = vmatprep.subr.bf16.mxu0 0
    %1402 = vmatpush2.bf16.msra.mxu0 0
    %1403 = vmatprep.subr.bf16.mxu0 0
    %1404 = vmatpush2.bf16.msra.mxu0 0
    %1405 = vmatprep.subr.bf16.mxu0 0
    %1406 = vmatpush2.bf16.msra.mxu0 0
    %1407 = vmatprep.subr.bf16.mxu0 0
    %1408 = vmatpush2.bf16.msra.mxu0 0
    %1409 = vmatprep.subr.bf16.mxu0 0
    %1410 = vmatpush2.bf16.msra.mxu0 0
    %1411 = vmatprep.mubr.bf16.mxu0 0
    %1412 = vmatmul.mubr.bf16.gmra.mxu0 %v1374
    %v1413 = vpop.f32.mrf.mxu0
    %v1414 = vadd.f32 0.0, %v1413
    %v1415 = vpop.f32.mrf.mxu0
    %v1416 = vpop.f32.mrf.mxu0
    %v1417 = vadd.f32 0.0, %v1416
    %v1418 = vpop.f32.mrf.mxu0
    %1419 = vdwg.mxu0
    %v1420 = vadd.f32 %v976, %v1414
    %v1421 = vadd.f32 %v979, %v1417
    %s1422 = scalar_lea.vmem %s4, 48
    %v1423 = vld [vmem:[%s1422] sm:$0xf]
    %v1424 = vld [vmem:[%s1422 + $0x4] sm:$0xf]
    %v1425 = vld [vmem:[%s1422 + $0x8] sm:$0xf]
    %v1426 = vld [vmem:[%s1422 + $0xc] sm:$0xf]
    %v1431 = vunpack.c.l.b16 %v1423
    %v1432 = vunpack.c.l.b16 %v1424
    %v1433 = vunpack.c.l.b16 %v1425
    %v1434 = vunpack.c.l.b16 %v1426
    %v1435 = vpack.c.b16 %v1432, %v1431
    %v1436 = vpack.c.b16 %v1434, %v1433
    %1439 = vmatprep.subr.bf16.mxu0 0
    %1440 = vmatpush1.bf16.msra.mxu0 0
    %1441 = vmatprep.subr.bf16.mxu0 0
    %1442 = vmatpush1.bf16.msra.mxu0 0
    %1443 = vmatprep.subr.bf16.mxu0 0
    %1444 = vmatpush1.bf16.msra.mxu0 0
    %1445 = vmatprep.subr.bf16.mxu0 0
    %1446 = vmatpush1.bf16.msra.mxu0 0
    %1447 = vmatprep.subr.bf16.mxu0 0
    %1448 = vmatpush1.bf16.msra.mxu0 0
    %1449 = vmatprep.subr.bf16.mxu0 0
    %1450 = vmatpush1.bf16.msra.mxu0 0
    %1451 = vmatprep.subr.bf16.mxu0 0
    %1452 = vmatpush1.bf16.msra.mxu0 %v1436
    %1453 = vmatprep.subr.bf16.mxu0 0
    %1454 = vmatpush1.bf16.msra.mxu0 %v1435
    %1455 = vmatprep.subr.bf16.mxu0 0
    %1456 = vmatpush2.bf16.msra.mxu0 0
    %1457 = vmatprep.subr.bf16.mxu0 0
    %1458 = vmatpush2.bf16.msra.mxu0 0
    %1459 = vmatprep.subr.bf16.mxu0 0
    %1460 = vmatpush2.bf16.msra.mxu0 0
    %1461 = vmatprep.subr.bf16.mxu0 0
    %1462 = vmatpush2.bf16.msra.mxu0 0
    %1463 = vmatprep.subr.bf16.mxu0 0
    %1464 = vmatpush2.bf16.msra.mxu0 0
    %1465 = vmatprep.subr.bf16.mxu0 0
    %1466 = vmatpush2.bf16.msra.mxu0 0
    %1467 = vmatprep.subr.bf16.mxu0 0
    %1468 = vmatpush2.bf16.msra.mxu0 0
    %1469 = vmatprep.subr.bf16.mxu0 0
    %1470 = vmatpush2.bf16.msra.mxu0 0
    %1471 = vmatprep.mubr.bf16.mxu0 0
    %1472 = vmatmul.mubr.bf16.gmra.mxu0 %v122
    %v1473 = vpop.f32.mrf.mxu0
    %v1474 = vadd.f32 0.0, %v1473
    %v1475 = vpop.f32.mrf.mxu0
    %v1476 = vpop.f32.mrf.mxu0
    %v1477 = vadd.f32 0.0, %v1476
    %v1478 = vpop.f32.mrf.mxu0
    %1479 = vdwg.mxu0
    %s1480 = scalar_lea.vmem %s5, 48
    %v1481 = vld [vmem:[%s1480] sm:$0xf]
    %v1482 = vld [vmem:[%s1480 + $0x4] sm:$0xf]
    %v1483 = vld [vmem:[%s1480 + $0x8] sm:$0xf]
    %v1484 = vld [vmem:[%s1480 + $0xc] sm:$0xf]
    %v1489 = vunpack.c.l.b16 %v1481
    %v1490 = vunpack.c.l.b16 %v1482
    %v1491 = vunpack.c.l.b16 %v1483
    %v1492 = vunpack.c.l.b16 %v1484
    %v1493 = vpack.c.b16 %v1490, %v1489
    %v1494 = vpack.c.b16 %v1492, %v1491
    %1497 = vmatprep.subr.bf16.mxu0 0
    %1498 = vmatpush1.bf16.msra.mxu0 0
    %1499 = vmatprep.subr.bf16.mxu0 0
    %1500 = vmatpush1.bf16.msra.mxu0 0
    %1501 = vmatprep.subr.bf16.mxu0 0
    %1502 = vmatpush1.bf16.msra.mxu0 0
    %1503 = vmatprep.subr.bf16.mxu0 0
    %1504 = vmatpush1.bf16.msra.mxu0 0
    %1505 = vmatprep.subr.bf16.mxu0 0
    %1506 = vmatpush1.bf16.msra.mxu0 0
    %1507 = vmatprep.subr.bf16.mxu0 0
    %1508 = vmatpush1.bf16.msra.mxu0 0
    %1509 = vmatprep.subr.bf16.mxu0 0
    %1510 = vmatpush1.bf16.msra.mxu0 %v1494
    %1511 = vmatprep.subr.bf16.mxu0 0
    %1512 = vmatpush1.bf16.msra.mxu0 %v1493
    %1513 = vmatprep.subr.bf16.mxu0 0
    %1514 = vmatpush2.bf16.msra.mxu0 0
    %1515 = vmatprep.subr.bf16.mxu0 0
    %1516 = vmatpush2.bf16.msra.mxu0 0
    %1517 = vmatprep.subr.bf16.mxu0 0
    %1518 = vmatpush2.bf16.msra.mxu0 0
    %1519 = vmatprep.subr.bf16.mxu0 0
    %1520 = vmatpush2.bf16.msra.mxu0 0
    %1521 = vmatprep.subr.bf16.mxu0 0
    %1522 = vmatpush2.bf16.msra.mxu0 0
    %1523 = vmatprep.subr.bf16.mxu0 0
    %1524 = vmatpush2.bf16.msra.mxu0 0
    %1525 = vmatprep.subr.bf16.mxu0 0
    %1526 = vmatpush2.bf16.msra.mxu0 0
    %1527 = vmatprep.subr.bf16.mxu0 0
    %1528 = vmatpush2.bf16.msra.mxu0 0
    %1529 = vmatprep.mubr.bf16.mxu0 0
    %1530 = vmatmul.mubr.bf16.gmra.mxu0 %v122
    %v1531 = vpop.f32.mrf.mxu0
    %v1532 = vadd.f32 0.0, %v1531
    %v1533 = vpop.f32.mrf.mxu0
    %v1534 = vpop.f32.mrf.mxu0
    %v1535 = vadd.f32 0.0, %v1534
    %v1536 = vpop.f32.mrf.mxu0
    %1537 = vdwg.mxu0
    %s1538 = scalar_lea.vmem %s6, 48
    %v1539 = vld [vmem:[%s1538] sm:$0xf]
    %v1540 = vld [vmem:[%s1538 + $0x4] sm:$0xf]
    %v1541 = vld [vmem:[%s1538 + $0x8] sm:$0xf]
    %v1542 = vld [vmem:[%s1538 + $0xc] sm:$0xf]
    %v1547 = vunpack.c.l.b16 %v1539
    %v1548 = vunpack.c.l.b16 %v1540
    %v1549 = vunpack.c.l.b16 %v1541
    %v1550 = vunpack.c.l.b16 %v1542
    %v1551 = vpack.c.b16 %v1548, %v1547
    %v1552 = vpack.c.b16 %v1550, %v1549
    %1555 = vmatprep.subr.bf16.mxu0 0
    %1556 = vmatpush1.bf16.msra.mxu0 0
    %1557 = vmatprep.subr.bf16.mxu0 0
    %1558 = vmatpush1.bf16.msra.mxu0 0
    %1559 = vmatprep.subr.bf16.mxu0 0
    %1560 = vmatpush1.bf16.msra.mxu0 0
    %1561 = vmatprep.subr.bf16.mxu0 0
    %1562 = vmatpush1.bf16.msra.mxu0 0
    %1563 = vmatprep.subr.bf16.mxu0 0
    %1564 = vmatpush1.bf16.msra.mxu0 0
    %1565 = vmatprep.subr.bf16.mxu0 0
    %1566 = vmatpush1.bf16.msra.mxu0 0
    %1567 = vmatprep.subr.bf16.mxu0 0
    %1568 = vmatpush1.bf16.msra.mxu0 %v1552
    %1569 = vmatprep.subr.bf16.mxu0 0
    %1570 = vmatpush1.bf16.msra.mxu0 %v1551
    %1571 = vmatprep.subr.bf16.mxu0 0
    %1572 = vmatpush2.bf16.msra.mxu0 0
    %1573 = vmatprep.subr.bf16.mxu0 0
    %1574 = vmatpush2.bf16.msra.mxu0 0
    %1575 = vmatprep.subr.bf16.mxu0 0
    %1576 = vmatpush2.bf16.msra.mxu0 0
    %1577 = vmatprep.subr.bf16.mxu0 0
    %1578 = vmatpush2.bf16.msra.mxu0 0
    %1579 = vmatprep.subr.bf16.mxu0 0
    %1580 = vmatpush2.bf16.msra.mxu0 0
    %1581 = vmatprep.subr.bf16.mxu0 0
    %1582 = vmatpush2.bf16.msra.mxu0 0
    %1583 = vmatprep.subr.bf16.mxu0 0
    %1584 = vmatpush2.bf16.msra.mxu0 0
    %1585 = vmatprep.subr.bf16.mxu0 0
    %1586 = vmatpush2.bf16.msra.mxu0 0
    %1587 = vmatprep.mubr.bf16.mxu0 0
    %1588 = vmatmul.mubr.bf16.gmra.mxu0 %v122
    %v1589 = vpop.f32.mrf.mxu0
    %v1590 = vadd.f32 0.0, %v1589
    %v1591 = vpop.f32.mrf.mxu0
    %v1592 = vpop.f32.mrf.mxu0
    %v1593 = vadd.f32 0.0, %v1592
    %v1594 = vpop.f32.mrf.mxu0
    %1595 = vdwg.mxu0
    %v1596 = vpack.c.bf16 %v1474, %v1474
    %v1597 = vpack.c.bf16 %v1477, %v1477
    %v1598 = vpack.c.bf16 %v1532, %v1532
    %v1599 = vpack.c.bf16 %v1535, %v1535
    %v1600 = vpack.c.bf16 %v1590, %v1590
    %v1601 = vpack.c.bf16 %v1593, %v1593
    %v1603 = vsel %vm285, %v1596, 0
    %v1606 = vsel %vm285, %v1598, 0
    %1608 = vmatprep.subr.bf16.mxu0 0
    %1609 = vmatpush1.bf16.xpose.msra.mxu0 0
    %1610 = vmatprep.subr.bf16.mxu0 0
    %1611 = vmatpush1.bf16.xpose.msra.mxu0 0
    %1612 = vmatprep.subr.bf16.mxu0 0
    %1613 = vmatpush1.bf16.xpose.msra.mxu0 0
    %1614 = vmatprep.subr.bf16.mxu0 0
    %1615 = vmatpush1.bf16.xpose.msra.mxu0 0
    %1616 = vmatprep.subr.bf16.mxu0 0
    %1617 = vmatpush1.bf16.xpose.msra.mxu0 0
    %1618 = vmatprep.subr.bf16.mxu0 0
    %1619 = vmatpush1.bf16.xpose.msra.mxu0 0
    %1620 = vmatprep.subr.bf16.mxu0 0
    %1621 = vmatpush1.bf16.xpose.msra.mxu0 0
    %1622 = vmatprep.subr.bf16.mxu0 0
    %1623 = vmatpush1.bf16.xpose.msra.mxu0 %v1606
    %1624 = vmatprep.subr.bf16.mxu0 0
    %1625 = vmatpush2.bf16.xpose.msra.mxu0 0
    %1626 = vmatprep.subr.bf16.mxu0 0
    %1627 = vmatpush2.bf16.xpose.msra.mxu0 0
    %1628 = vmatprep.subr.bf16.mxu0 0
    %1629 = vmatpush2.bf16.xpose.msra.mxu0 0
    %1630 = vmatprep.subr.bf16.mxu0 0
    %1631 = vmatpush2.bf16.xpose.msra.mxu0 0
    %1632 = vmatprep.subr.bf16.mxu0 0
    %1633 = vmatpush2.bf16.xpose.msra.mxu0 0
    %1634 = vmatprep.subr.bf16.mxu0 0
    %1635 = vmatpush2.bf16.xpose.msra.mxu0 0
    %1636 = vmatprep.subr.bf16.mxu0 0
    %1637 = vmatpush2.bf16.xpose.msra.mxu0 0
    %1638 = vmatprep.subr.bf16.mxu0 0
    %1639 = vmatpush2.bf16.xpose.msra.mxu0 0
    %1640 = vmatprep.mubr.bf16.mxu0 0
    %1641 = vmatmul.mubr.bf16.gmra.mxu0 %v1603
    %v1642 = vpop.f32.mrf.mxu0
    %v1643 = vadd.f32 0.0, %v1642
    %v1644 = vpop.f32.mrf.mxu0
    %v1645 = vpop.f32.mrf.mxu0
    %v1646 = vpop.f32.mrf.mxu0
    %1647 = vdwg.mxu0
    %v1649 = vsel %vm285, %v1597, 0
    %v1652 = vsel %vm285, %v1599, 0
    %1654 = vmatprep.subr.bf16.mxu0 0
    %1655 = vmatpush1.bf16.xpose.msra.mxu0 0
    %1656 = vmatprep.subr.bf16.mxu0 0
    %1657 = vmatpush1.bf16.xpose.msra.mxu0 0
    %1658 = vmatprep.subr.bf16.mxu0 0
    %1659 = vmatpush1.bf16.xpose.msra.mxu0 0
    %1660 = vmatprep.subr.bf16.mxu0 0
    %1661 = vmatpush1.bf16.xpose.msra.mxu0 0
    %1662 = vmatprep.subr.bf16.mxu0 0
    %1663 = vmatpush1.bf16.xpose.msra.mxu0 0
    %1664 = vmatprep.subr.bf16.mxu0 0
    %1665 = vmatpush1.bf16.xpose.msra.mxu0 0
    %1666 = vmatprep.subr.bf16.mxu0 0
    %1667 = vmatpush1.bf16.xpose.msra.mxu0 0
    %1668 = vmatprep.subr.bf16.mxu0 0
    %1669 = vmatpush1.bf16.xpose.msra.mxu0 %v1652
    %1670 = vmatprep.subr.bf16.mxu0 0
    %1671 = vmatpush2.bf16.xpose.msra.mxu0 0
    %1672 = vmatprep.subr.bf16.mxu0 0
    %1673 = vmatpush2.bf16.xpose.msra.mxu0 0
    %1674 = vmatprep.subr.bf16.mxu0 0
    %1675 = vmatpush2.bf16.xpose.msra.mxu0 0
    %1676 = vmatprep.subr.bf16.mxu0 0
    %1677 = vmatpush2.bf16.xpose.msra.mxu0 0
    %1678 = vmatprep.subr.bf16.mxu0 0
    %1679 = vmatpush2.bf16.xpose.msra.mxu0 0
    %1680 = vmatprep.subr.bf16.mxu0 0
    %1681 = vmatpush2.bf16.xpose.msra.mxu0 0
    %1682 = vmatprep.subr.bf16.mxu0 0
    %1683 = vmatpush2.bf16.xpose.msra.mxu0 0
    %1684 = vmatprep.subr.bf16.mxu0 0
    %1685 = vmatpush2.bf16.xpose.msra.mxu0 0
    %1686 = vmatprep.mubr.bf16.mxu0 0
    %1687 = vmatmul.mubr.bf16.gmra.mxu0 %v1649
    %v1688 = vpop.f32.mrf.mxu0
    %v1689 = vadd.f32 0.0, %v1688
    %v1690 = vpop.f32.mrf.mxu0
    %v1691 = vpop.f32.mrf.mxu0
    %v1692 = vpop.f32.mrf.mxu0
    %1693 = vdwg.mxu0
    %v1694 = vsel %vm285, %v1643, -inf
    %1695 = vmax.xlane.f32.xlu0 %v1694
    %v1696 = vpop.xlane.xlu0 %1695
    %v1697 = vsel %vm285, %v1689, -inf
    %1698 = vmax.xlane.f32.xlu0 %v1697
    %v1699 = vpop.xlane.xlu0 %1698
    %v1700 = vsub.f32 %v1643, %v1696
    %v1701 = vsub.f32 %v1689, %v1699
    %v1702 = vmul.f32 %v1700, 1.442695
    %v1703 = vpow.pop %v1702
    %v1704 = vmul.f32 %v1701, 1.442695
    %v1705 = vpow.pop %v1704
    %v1706 = vsel %vm285, %v1703, 0.0
    %1707 = vadd.xlane.f32.xlu0 %v1706
    %v1708 = vpop.xlane.xlu0 %1707
    %v1709 = vsel %vm285, %v1705, 0.0
    %1710 = vadd.xlane.f32.xlu0 %v1709
    %v1711 = vpop.xlane.xlu0 %1710
    %v1712 = vrcp.pop %v1708
    %v1713 = vrcp.pop %v1711
    %v1714 = vmul.f32 %v1703, %v1712
    %v1715 = vmul.f32 %v1705, %v1713
    %v1716 = vpack.c.bf16 %v1714, %v1714
    %v1717 = vpack.c.bf16 %v1715, %v1715
    %v1719 = vsel %vm285, %v1716, 0
    %v1722 = vsel %vm405, %v1600, 0
    %1724 = vmatprep.subr.bf16.mxu0 0
    %1725 = vmatpush1.bf16.msra.mxu0 0
    %1726 = vmatprep.subr.bf16.mxu0 0
    %1727 = vmatpush1.bf16.msra.mxu0 0
    %1728 = vmatprep.subr.bf16.mxu0 0
    %1729 = vmatpush1.bf16.msra.mxu0 0
    %1730 = vmatprep.subr.bf16.mxu0 0
    %1731 = vmatpush1.bf16.msra.mxu0 0
    %1732 = vmatprep.subr.bf16.mxu0 0
    %1733 = vmatpush1.bf16.msra.mxu0 0
    %1734 = vmatprep.subr.bf16.mxu0 0
    %1735 = vmatpush1.bf16.msra.mxu0 0
    %1736 = vmatprep.subr.bf16.mxu0 0
    %1737 = vmatpush1.bf16.msra.mxu0 0
    %1738 = vmatprep.subr.bf16.mxu0 0
    %1739 = vmatpush1.bf16.msra.mxu0 %v1722
    %1740 = vmatprep.subr.bf16.mxu0 0
    %1741 = vmatpush2.bf16.msra.mxu0 0
    %1742 = vmatprep.subr.bf16.mxu0 0
    %1743 = vmatpush2.bf16.msra.mxu0 0
    %1744 = vmatprep.subr.bf16.mxu0 0
    %1745 = vmatpush2.bf16.msra.mxu0 0
    %1746 = vmatprep.subr.bf16.mxu0 0
    %1747 = vmatpush2.bf16.msra.mxu0 0
    %1748 = vmatprep.subr.bf16.mxu0 0
    %1749 = vmatpush2.bf16.msra.mxu0 0
    %1750 = vmatprep.subr.bf16.mxu0 0
    %1751 = vmatpush2.bf16.msra.mxu0 0
    %1752 = vmatprep.subr.bf16.mxu0 0
    %1753 = vmatpush2.bf16.msra.mxu0 0
    %1754 = vmatprep.subr.bf16.mxu0 0
    %1755 = vmatpush2.bf16.msra.mxu0 0
    %1756 = vmatprep.mubr.bf16.mxu0 0
    %1757 = vmatmul.mubr.bf16.gmra.mxu0 %v1719
    %v1758 = vpop.f32.mrf.mxu0
    %v1759 = vadd.f32 0.0, %v1758
    %v1760 = vpop.f32.mrf.mxu0
    %v1761 = vpop.f32.mrf.mxu0
    %v1762 = vpop.f32.mrf.mxu0
    %1763 = vdwg.mxu0
    %v1765 = vsel %vm285, %v1717, 0
    %v1768 = vsel %vm405, %v1601, 0
    %1770 = vmatprep.subr.bf16.mxu0 0
    %1771 = vmatpush1.bf16.msra.mxu0 0
    %1772 = vmatprep.subr.bf16.mxu0 0
    %1773 = vmatpush1.bf16.msra.mxu0 0
    %1774 = vmatprep.subr.bf16.mxu0 0
    %1775 = vmatpush1.bf16.msra.mxu0 0
    %1776 = vmatprep.subr.bf16.mxu0 0
    %1777 = vmatpush1.bf16.msra.mxu0 0
    %1778 = vmatprep.subr.bf16.mxu0 0
    %1779 = vmatpush1.bf16.msra.mxu0 0
    %1780 = vmatprep.subr.bf16.mxu0 0
    %1781 = vmatpush1.bf16.msra.mxu0 0
    %1782 = vmatprep.subr.bf16.mxu0 0
    %1783 = vmatpush1.bf16.msra.mxu0 0
    %1784 = vmatprep.subr.bf16.mxu0 0
    %1785 = vmatpush1.bf16.msra.mxu0 %v1768
    %1786 = vmatprep.subr.bf16.mxu0 0
    %1787 = vmatpush2.bf16.msra.mxu0 0
    %1788 = vmatprep.subr.bf16.mxu0 0
    %1789 = vmatpush2.bf16.msra.mxu0 0
    %1790 = vmatprep.subr.bf16.mxu0 0
    %1791 = vmatpush2.bf16.msra.mxu0 0
    %1792 = vmatprep.subr.bf16.mxu0 0
    %1793 = vmatpush2.bf16.msra.mxu0 0
    %1794 = vmatprep.subr.bf16.mxu0 0
    %1795 = vmatpush2.bf16.msra.mxu0 0
    %1796 = vmatprep.subr.bf16.mxu0 0
    %1797 = vmatpush2.bf16.msra.mxu0 0
    %1798 = vmatprep.subr.bf16.mxu0 0
    %1799 = vmatpush2.bf16.msra.mxu0 0
    %1800 = vmatprep.subr.bf16.mxu0 0
    %1801 = vmatpush2.bf16.msra.mxu0 0
    %1802 = vmatprep.mubr.bf16.mxu0 0
    %1803 = vmatmul.mubr.bf16.gmra.mxu0 %v1765
    %v1804 = vpop.f32.mrf.mxu0
    %v1805 = vadd.f32 0.0, %v1804
    %v1806 = vpop.f32.mrf.mxu0
    %v1807 = vpop.f32.mrf.mxu0
    %v1808 = vpop.f32.mrf.mxu0
    %1809 = vdwg.mxu0
    %v1810 = vpack.c.bf16 %v1805, %v1759
    %s1811 = scalar_lea.vmem %s7, 12
    %v1812 = vld [vmem:[%s1811] sm:$0xf]
    %v1814 = vsel %vm285, %v1810, 0
    %v1817 = vsel %vm405, %v1812, 0
    %1819 = vmatprep.subr.bf16.mxu0 0
    %1820 = vmatpush1.bf16.msra.mxu0 0
    %1821 = vmatprep.subr.bf16.mxu0 0
    %1822 = vmatpush1.bf16.msra.mxu0 0
    %1823 = vmatprep.subr.bf16.mxu0 0
    %1824 = vmatpush1.bf16.msra.mxu0 0
    %1825 = vmatprep.subr.bf16.mxu0 0
    %1826 = vmatpush1.bf16.msra.mxu0 0
    %1827 = vmatprep.subr.bf16.mxu0 0
    %1828 = vmatpush1.bf16.msra.mxu0 0
    %1829 = vmatprep.subr.bf16.mxu0 0
    %1830 = vmatpush1.bf16.msra.mxu0 0
    %1831 = vmatprep.subr.bf16.mxu0 0
    %1832 = vmatpush1.bf16.msra.mxu0 0
    %1833 = vmatprep.subr.bf16.mxu0 0
    %1834 = vmatpush1.bf16.msra.mxu0 %v1817
    %1835 = vmatprep.subr.bf16.mxu0 0
    %1836 = vmatpush2.bf16.msra.mxu0 0
    %1837 = vmatprep.subr.bf16.mxu0 0
    %1838 = vmatpush2.bf16.msra.mxu0 0
    %1839 = vmatprep.subr.bf16.mxu0 0
    %1840 = vmatpush2.bf16.msra.mxu0 0
    %1841 = vmatprep.subr.bf16.mxu0 0
    %1842 = vmatpush2.bf16.msra.mxu0 0
    %1843 = vmatprep.subr.bf16.mxu0 0
    %1844 = vmatpush2.bf16.msra.mxu0 0
    %1845 = vmatprep.subr.bf16.mxu0 0
    %1846 = vmatpush2.bf16.msra.mxu0 0
    %1847 = vmatprep.subr.bf16.mxu0 0
    %1848 = vmatpush2.bf16.msra.mxu0 0
    %1849 = vmatprep.subr.bf16.mxu0 0
    %1850 = vmatpush2.bf16.msra.mxu0 0
    %1851 = vmatprep.mubr.bf16.mxu0 0
    %1852 = vmatmul.mubr.bf16.gmra.mxu0 %v1814
    %v1853 = vpop.f32.mrf.mxu0
    %v1854 = vadd.f32 0.0, %v1853
    %v1855 = vpop.f32.mrf.mxu0
    %v1856 = vpop.f32.mrf.mxu0
    %v1857 = vadd.f32 0.0, %v1856
    %v1858 = vpop.f32.mrf.mxu0
    %1859 = vdwg.mxu0
    %v1860 = vadd.f32 %v1420, %v1854
    %v1861 = vadd.f32 %v1421, %v1857
    %v1862 = vadd.f32 %v56, %v1860
    %v1863 = vadd.f32 %v57, %v1861
    %v1864 = vld [vmem:[%s8] sm:$0x1]
    %v1866 = vlaneseq
    %v1867 = vshrl.u32 %v1866, 7
    %v1868 = vsub.s32 0, %v1867
    %v1869 = vrot.slane %v1864, %v1868
    %v1871 = vadd.f32 %v1862, %v1869
    %v1872 = vadd.f32 %v1863, %v1869
    %v1873 = vld [vmem:[%s9] sm:$0x1]
    %v1874 = vld [vmem:[%s10] sm:$0x1]
    %v1875 = vsel %vm60, %v1871, 0.0
    %1876 = vadd.xlane.f32.xlu0 %v1875
    %v1877 = vpop.xlane.xlu0 %1876
    %v1878 = vsel %vm60, %v1872, 0.0
    %1879 = vadd.xlane.f32.xlu0 %v1878
    %v1880 = vpop.xlane.xlu0 %1879
    %v1881 = vmul.f32 %v1877, %v67
    %v1882 = vmul.f32 %v1880, %v67
    %v1883 = vsub.f32 %v1871, %v1881
    %v1884 = vsub.f32 %v1872, %v1882
    %v1885 = vmul.f32 %v1883, %v1883
    %v1886 = vmul.f32 %v1884, %v1884
    %v1887 = vsel %vm60, %v1885, 0.0
    %1888 = vadd.xlane.f32.xlu0 %v1887
    %v1889 = vpop.xlane.xlu0 %1888
    %v1890 = vsel %vm60, %v1886, 0.0
    %1891 = vadd.xlane.f32.xlu0 %v1890
    %v1892 = vpop.xlane.xlu0 %1891
    %v1893 = vmul.f32 %v1889, %v67
    %v1894 = vmul.f32 %v1892, %v67
    %v1895 = vadd.f32 %v1893, 1e-05
    %v1896 = vadd.f32 %v1894, 1e-05
    %v1897 = vrsqrt.pop %v1895
    %v1898 = vrsqrt.pop %v1896
    %v1899 = vmul.f32 %v1883, %v1897
    %v1900 = vmul.f32 %v1884, %v1898
    %v1902 = vlaneseq
    %v1903 = vshrl.u32 %v1902, 7
    %v1904 = vsub.s32 0, %v1903
    %v1905 = vrot.slane %v1873, %v1904
    %v1907 = vmul.f32 %v1899, %v1905
    %v1908 = vmul.f32 %v1900, %v1905
    %v1910 = vlaneseq
    %v1911 = vshrl.u32 %v1910, 7
    %v1912 = vsub.s32 0, %v1911
    %v1913 = vrot.slane %v1874, %v1912
    %v1915 = vadd.f32 %v1907, %v1913
    %v1916 = vadd.f32 %v1908, %v1913
    %v1917 = vpack.c.bf16 %v1916, %v1915
    %v1918 = vld [vmem:[%s11] sm:$0xf]
    %v1919 = vld [vmem:[%s11 + $0x4] sm:$0xf]
    %v1920 = vld [vmem:[%s11 + $0x8] sm:$0xf]
    %v1921 = vld [vmem:[%s11 + $0xc] sm:$0xf]
    %v1922 = vld [vmem:[%s12] sm:$0x1]
    %v1924 = vlaneseq
    %v1925 = vshrl.u32 %v1924, 7
    %v1926 = vsub.s32 0, %v1925
    %v1927 = vrot.slane %v1922, %v1926
    %v1933 = vunpack.c.l.b16 %v1918
    %v1934 = vunpack.c.l.b16 %v1919
    %v1935 = vunpack.c.l.b16 %v1920
    %v1936 = vunpack.c.l.b16 %v1921
    %v1937 = vpack.c.b16 %v1934, %v1933
    %v1938 = vpack.c.b16 %v1936, %v1935
    %v1942 = vsel %vm60, %v1917, 0
    %1944 = vmatprep.subr.bf16.mxu0 0
    %1945 = vmatpush1.bf16.msra.mxu0 0
    %1946 = vmatprep.subr.bf16.mxu0 0
    %1947 = vmatpush1.bf16.msra.mxu0 0
    %1948 = vmatprep.subr.bf16.mxu0 0
    %1949 = vmatpush1.bf16.msra.mxu0 0
    %1950 = vmatprep.subr.bf16.mxu0 0
    %1951 = vmatpush1.bf16.msra.mxu0 0
    %1952 = vmatprep.subr.bf16.mxu0 0
    %1953 = vmatpush1.bf16.msra.mxu0 0
    %1954 = vmatprep.subr.bf16.mxu0 0
    %1955 = vmatpush1.bf16.msra.mxu0 0
    %1956 = vmatprep.subr.bf16.mxu0 0
    %1957 = vmatpush1.bf16.msra.mxu0 %v1938
    %1958 = vmatprep.subr.bf16.mxu0 0
    %1959 = vmatpush1.bf16.msra.mxu0 %v1937
    %1960 = vmatprep.subr.bf16.mxu0 0
    %1961 = vmatpush2.bf16.msra.mxu0 0
    %1962 = vmatprep.subr.bf16.mxu0 0
    %1963 = vmatpush2.bf16.msra.mxu0 0
    %1964 = vmatprep.subr.bf16.mxu0 0
    %1965 = vmatpush2.bf16.msra.mxu0 0
    %1966 = vmatprep.subr.bf16.mxu0 0
    %1967 = vmatpush2.bf16.msra.mxu0 0
    %1968 = vmatprep.subr.bf16.mxu0 0
    %1969 = vmatpush2.bf16.msra.mxu0 0
    %1970 = vmatprep.subr.bf16.mxu0 0
    %1971 = vmatpush2.bf16.msra.mxu0 0
    %1972 = vmatprep.subr.bf16.mxu0 0
    %1973 = vmatpush2.bf16.msra.mxu0 0
    %1974 = vmatprep.subr.bf16.mxu0 0
    %1975 = vmatpush2.bf16.msra.mxu0 0
    %1976 = vmatprep.mubr.bf16.mxu0 0
    %1977 = vmatmul.mubr.bf16.gmra.mxu0 %v1942
    %v1978 = vpop.f32.mrf.mxu0
    %v1979 = vadd.f32 %v1927, %v1978
    %v1980 = vpop.f32.mrf.mxu0
    %v1981 = vpop.f32.mrf.mxu0
    %v1982 = vadd.f32 %v1927, %v1981
    %v1983 = vpop.f32.mrf.mxu0
    %1984 = vdwg.mxu0
    %v1985 = vmul.f32 %v1979, 0.5
    %v1986 = vmul.f32 %v1982, 0.5
    %v1987 = vmul.f32 %v1979, 0.70710677
    %v1988 = vmul.f32 %v1982, 0.70710677
    %v1989 = verf.f32.pop %v1987
    %v1990 = verf.f32.pop %v1988
    %v1991 = vadd.f32 %v1989, 1.0
    %v1992 = vadd.f32 %v1990, 1.0
    %v1993 = vmul.f32 %v1985, %v1991
    %v1994 = vmul.f32 %v1986, %v1992
    %v1995 = vpack.c.bf16 %v1994, %v1993
    %v1996 = vld [vmem:[%s13] sm:$0xf]
    %v1997 = vld [vmem:[%s13 + $0x4] sm:$0xf]
    %v1998 = vld [vmem:[%s13 + $0x8] sm:$0xf]
    %v1999 = vld [vmem:[%s13 + $0xc] sm:$0xf]
    %v2000 = vld [vmem:[%s13 + $0x10] sm:$0xf]
    %v2001 = vld [vmem:[%s13 + $0x14] sm:$0xf]
    %v2002 = vld [vmem:[%s13 + $0x18] sm:$0xf]
    %v2003 = vld [vmem:[%s13 + $0x1c] sm:$0xf]
    %v2004 = vld [vmem:[%s14] sm:$0x1]
    %v2006 = vlaneseq
    %v2007 = vshrl.u32 %v2006, 7
    %v2008 = vsub.s32 0, %v2007
    %v2009 = vrot.slane %v2004, %v2008
    %v2019 = vunpack.c.l.b16 %v1996
    %v2020 = vunpack.c.l.b16 %v1997
    %v2021 = vunpack.c.l.b16 %v1998
    %v2022 = vunpack.c.l.b16 %v1999
    %v2023 = vunpack.c.l.b16 %v2000
    %v2024 = vunpack.c.l.b16 %v2001
    %v2025 = vunpack.c.l.b16 %v2002
    %v2026 = vunpack.c.l.b16 %v2003
    %v2027 = vpack.c.b16 %v2020, %v2019
    %v2028 = vpack.c.b16 %v2022, %v2021
    %v2029 = vpack.c.b16 %v2024, %v2023
    %v2030 = vpack.c.b16 %v2026, %v2025
    %vm2035 = vcmask 523264
    %v2037 = vsel %vm2035, %v1995, 0
    %2039 = vmatprep.subr.bf16.mxu0 0
    %2040 = vmatpush1.bf16.msra.mxu0 0
    %2041 = vmatprep.subr.bf16.mxu0 0
    %2042 = vmatpush1.bf16.msra.mxu0 0
    %2043 = vmatprep.subr.bf16.mxu0 0
    %2044 = vmatpush1.bf16.msra.mxu0 0
    %2045 = vmatprep.subr.bf16.mxu0 0
    %2046 = vmatpush1.bf16.msra.mxu0 0
    %2047 = vmatprep.subr.bf16.mxu0 0
    %2048 = vmatpush1.bf16.msra.mxu0 %v2030
    %2049 = vmatprep.subr.bf16.mxu0 0
    %2050 = vmatpush1.bf16.msra.mxu0 %v2029
    %2051 = vmatprep.subr.bf16.mxu0 0
    %2052 = vmatpush1.bf16.msra.mxu0 %v2028
    %2053 = vmatprep.subr.bf16.mxu0 0
    %2054 = vmatpush1.bf16.msra.mxu0 %v2027
    %2055 = vmatprep.subr.bf16.mxu0 0
    %2056 = vmatpush2.bf16.msra.mxu0 0
    %2057 = vmatprep.subr.bf16.mxu0 0
    %2058 = vmatpush2.bf16.msra.mxu0 0
    %2059 = vmatprep.subr.bf16.mxu0 0
    %2060 = vmatpush2.bf16.msra.mxu0 0
    %2061 = vmatprep.subr.bf16.mxu0 0
    %2062 = vmatpush2.bf16.msra.mxu0 0
    %2063 = vmatprep.subr.bf16.mxu0 0
    %2064 = vmatpush2.bf16.msra.mxu0 0
    %2065 = vmatprep.subr.bf16.mxu0 0
    %2066 = vmatpush2.bf16.msra.mxu0 0
    %2067 = vmatprep.subr.bf16.mxu0 0
    %2068 = vmatpush2.bf16.msra.mxu0 0
    %2069 = vmatprep.subr.bf16.mxu0 0
    %2070 = vmatpush2.bf16.msra.mxu0 0
    %2071 = vmatprep.mubr.bf16.mxu0 0
    %2072 = vmatmul.mubr.bf16.gmra.mxu0 %v2037
    %v2073 = vpop.f32.mrf.mxu0
    %v2074 = vadd.f32 %v2009, %v2073
    %v2075 = vpop.f32.mrf.mxu0
    %v2076 = vpop.f32.mrf.mxu0
    %v2077 = vadd.f32 %v2009, %v2076
    %v2078 = vpop.f32.mrf.mxu0
    %2079 = vdwg.mxu0
    %v2080 = vadd.f32 %v1871, %v2074
    %v2081 = vadd.f32 %v1872, %v2077
    %s2082 = scalar_lea.vmem %s2, 1
    %v2083 = vld [vmem:[%s2082] sm:$0x1]
    %s2084 = scalar_lea.vmem %s3, 1
    %v2085 = vld [vmem:[%s2084] sm:$0x1]
    %v2086 = vsel %vm60, %v2080, 0.0
    %2087 = vadd.xlane.f32.xlu0 %v2086
    %v2088 = vpop.xlane.xlu0 %2087
    %v2089 = vsel %vm60, %v2081, 0.0
    %2090 = vadd.xlane.f32.xlu0 %v2089
    %v2091 = vpop.xlane.xlu0 %2090
    %v2092 = vmul.f32 %v2088, %v67
    %v2093 = vmul.f32 %v2091, %v67
    %v2094 = vsub.f32 %v2080, %v2092
    %v2095 = vsub.f32 %v2081, %v2093
    %v2096 = vmul.f32 %v2094, %v2094
    %v2097 = vmul.f32 %v2095, %v2095
    %v2098 = vsel %vm60, %v2096, 0.0
    %2099 = vadd.xlane.f32.xlu0 %v2098
    %v2100 = vpop.xlane.xlu0 %2099
    %v2101 = vsel %vm60, %v2097, 0.0
    %2102 = vadd.xlane.f32.xlu0 %v2101
    %v2103 = vpop.xlane.xlu0 %2102
    %v2104 = vmul.f32 %v2100, %v67
    %v2105 = vmul.f32 %v2103, %v67
    %v2106 = vadd.f32 %v2104, 1e-05
    %v2107 = vadd.f32 %v2105, 1e-05
    %v2108 = vrsqrt.pop %v2106
    %v2109 = vrsqrt.pop %v2107
    %v2110 = vmul.f32 %v2094, %v2108
    %v2111 = vmul.f32 %v2095, %v2109
    %v2113 = vlaneseq
    %v2114 = vshrl.u32 %v2113, 7
    %v2115 = vsub.s32 0, %v2114
    %v2116 = vrot.slane %v2083, %v2115
    %v2118 = vmul.f32 %v2110, %v2116
    %v2119 = vmul.f32 %v2111, %v2116
    %v2121 = vlaneseq
    %v2122 = vshrl.u32 %v2121, 7
    %v2123 = vsub.s32 0, %v2122
    %v2124 = vrot.slane %v2085, %v2123
    %v2126 = vadd.f32 %v2118, %v2124
    %v2127 = vadd.f32 %v2119, %v2124
    %v2128 = vpack.c.bf16 %v2127, %v2126
    %s2129 = scalar_lea.vmem %s4, 64
    %v2130 = vld [vmem:[%s2129] sm:$0xf]
    %v2131 = vld [vmem:[%s2129 + $0x4] sm:$0xf]
    %v2132 = vld [vmem:[%s2129 + $0x8] sm:$0xf]
    %v2133 = vld [vmem:[%s2129 + $0xc] sm:$0xf]
    %v2138 = vunpack.c.l.b16 %v2130
    %v2139 = vunpack.c.l.b16 %v2131
    %v2140 = vunpack.c.l.b16 %v2132
    %v2141 = vunpack.c.l.b16 %v2133
    %v2142 = vpack.c.b16 %v2139, %v2138
    %v2143 = vpack.c.b16 %v2141, %v2140
    %v2147 = vsel %vm60, %v2128, 0
    %2149 = vmatprep.subr.bf16.mxu0 0
    %2150 = vmatpush1.bf16.msra.mxu0 0
    %2151 = vmatprep.subr.bf16.mxu0 0
    %2152 = vmatpush1.bf16.msra.mxu0 0
    %2153 = vmatprep.subr.bf16.mxu0 0
    %2154 = vmatpush1.bf16.msra.mxu0 0
    %2155 = vmatprep.subr.bf16.mxu0 0
    %2156 = vmatpush1.bf16.msra.mxu0 0
    %2157 = vmatprep.subr.bf16.mxu0 0
    %2158 = vmatpush1.bf16.msra.mxu0 0
    %2159 = vmatprep.subr.bf16.mxu0 0
    %2160 = vmatpush1.bf16.msra.mxu0 0
    %2161 = vmatprep.subr.bf16.mxu0 0
    %2162 = vmatpush1.bf16.msra.mxu0 %v2143
    %2163 = vmatprep.subr.bf16.mxu0 0
    %2164 = vmatpush1.bf16.msra.mxu0 %v2142
    %2165 = vmatprep.subr.bf16.mxu0 0
    %2166 = vmatpush2.bf16.msra.mxu0 0
    %2167 = vmatprep.subr.bf16.mxu0 0
    %2168 = vmatpush2.bf16.msra.mxu0 0
    %2169 = vmatprep.subr.bf16.mxu0 0
    %2170 = vmatpush2.bf16.msra.mxu0 0
    %2171 = vmatprep.subr.bf16.mxu0 0
    %2172 = vmatpush2.bf16.msra.mxu0 0
    %2173 = vmatprep.subr.bf16.mxu0 0
    %2174 = vmatpush2.bf16.msra.mxu0 0
    %2175 = vmatprep.subr.bf16.mxu0 0
    %2176 = vmatpush2.bf16.msra.mxu0 0
    %2177 = vmatprep.subr.bf16.mxu0 0
    %2178 = vmatpush2.bf16.msra.mxu0 0
    %2179 = vmatprep.subr.bf16.mxu0 0
    %2180 = vmatpush2.bf16.msra.mxu0 0
    %2181 = vmatprep.mubr.bf16.mxu0 0
    %2182 = vmatmul.mubr.bf16.gmra.mxu0 %v2147
    %v2183 = vpop.f32.mrf.mxu0
    %v2184 = vadd.f32 0.0, %v2183
    %v2185 = vpop.f32.mrf.mxu0
    %v2186 = vpop.f32.mrf.mxu0
    %v2187 = vadd.f32 0.0, %v2186
    %v2188 = vpop.f32.mrf.mxu0
    %2189 = vdwg.mxu0
    %s2190 = scalar_lea.vmem %s5, 64
    %v2191 = vld [vmem:[%s2190] sm:$0xf]
    %v2192 = vld [vmem:[%s2190 + $0x4] sm:$0xf]
    %v2193 = vld [vmem:[%s2190 + $0x8] sm:$0xf]
    %v2194 = vld [vmem:[%s2190 + $0xc] sm:$0xf]
    %v2199 = vunpack.c.l.b16 %v2191
    %v2200 = vunpack.c.l.b16 %v2192
    %v2201 = vunpack.c.l.b16 %v2193
    %v2202 = vunpack.c.l.b16 %v2194
    %v2203 = vpack.c.b16 %v2200, %v2199
    %v2204 = vpack.c.b16 %v2202, %v2201
    %2207 = vmatprep.subr.bf16.mxu0 0
    %2208 = vmatpush1.bf16.msra.mxu0 0
    %2209 = vmatprep.subr.bf16.mxu0 0
    %2210 = vmatpush1.bf16.msra.mxu0 0
    %2211 = vmatprep.subr.bf16.mxu0 0
    %2212 = vmatpush1.bf16.msra.mxu0 0
    %2213 = vmatprep.subr.bf16.mxu0 0
    %2214 = vmatpush1.bf16.msra.mxu0 0
    %2215 = vmatprep.subr.bf16.mxu0 0
    %2216 = vmatpush1.bf16.msra.mxu0 0
    %2217 = vmatprep.subr.bf16.mxu0 0
    %2218 = vmatpush1.bf16.msra.mxu0 0
    %2219 = vmatprep.subr.bf16.mxu0 0
    %2220 = vmatpush1.bf16.msra.mxu0 %v2204
    %2221 = vmatprep.subr.bf16.mxu0 0
    %2222 = vmatpush1.bf16.msra.mxu0 %v2203
    %2223 = vmatprep.subr.bf16.mxu0 0
    %2224 = vmatpush2.bf16.msra.mxu0 0
    %2225 = vmatprep.subr.bf16.mxu0 0
    %2226 = vmatpush2.bf16.msra.mxu0 0
    %2227 = vmatprep.subr.bf16.mxu0 0
    %2228 = vmatpush2.bf16.msra.mxu0 0
    %2229 = vmatprep.subr.bf16.mxu0 0
    %2230 = vmatpush2.bf16.msra.mxu0 0
    %2231 = vmatprep.subr.bf16.mxu0 0
    %2232 = vmatpush2.bf16.msra.mxu0 0
    %2233 = vmatprep.subr.bf16.mxu0 0
    %2234 = vmatpush2.bf16.msra.mxu0 0
    %2235 = vmatprep.subr.bf16.mxu0 0
    %2236 = vmatpush2.bf16.msra.mxu0 0
    %2237 = vmatprep.subr.bf16.mxu0 0
    %2238 = vmatpush2.bf16.msra.mxu0 0
    %2239 = vmatprep.mubr.bf16.mxu0 0
    %2240 = vmatmul.mubr.bf16.gmra.mxu0 %v2147
    %v2241 = vpop.f32.mrf.mxu0
    %v2242 = vadd.f32 0.0, %v2241
    %v2243 = vpop.f32.mrf.mxu0
    %v2244 = vpop.f32.mrf.mxu0
    %v2245 = vadd.f32 0.0, %v2244
    %v2246 = vpop.f32.mrf.mxu0
    %2247 = vdwg.mxu0
    %s2248 = scalar_lea.vmem %s6, 64
    %v2249 = vld [vmem:[%s2248] sm:$0xf]
    %v2250 = vld [vmem:[%s2248 + $0x4] sm:$0xf]
    %v2251 = vld [vmem:[%s2248 + $0x8] sm:$0xf]
    %v2252 = vld [vmem:[%s2248 + $0xc] sm:$0xf]
    %v2257 = vunpack.c.l.b16 %v2249
    %v2258 = vunpack.c.l.b16 %v2250
    %v2259 = vunpack.c.l.b16 %v2251
    %v2260 = vunpack.c.l.b16 %v2252
    %v2261 = vpack.c.b16 %v2258, %v2257
    %v2262 = vpack.c.b16 %v2260, %v2259
    %2265 = vmatprep.subr.bf16.mxu0 0
    %2266 = vmatpush1.bf16.msra.mxu0 0
    %2267 = vmatprep.subr.bf16.mxu0 0
    %2268 = vmatpush1.bf16.msra.mxu0 0
    %2269 = vmatprep.subr.bf16.mxu0 0
    %2270 = vmatpush1.bf16.msra.mxu0 0
    %2271 = vmatprep.subr.bf16.mxu0 0
    %2272 = vmatpush1.bf16.msra.mxu0 0
    %2273 = vmatprep.subr.bf16.mxu0 0
    %2274 = vmatpush1.bf16.msra.mxu0 0
    %2275 = vmatprep.subr.bf16.mxu0 0
    %2276 = vmatpush1.bf16.msra.mxu0 0
    %2277 = vmatprep.subr.bf16.mxu0 0
    %2278 = vmatpush1.bf16.msra.mxu0 %v2262
    %2279 = vmatprep.subr.bf16.mxu0 0
    %2280 = vmatpush1.bf16.msra.mxu0 %v2261
    %2281 = vmatprep.subr.bf16.mxu0 0
    %2282 = vmatpush2.bf16.msra.mxu0 0
    %2283 = vmatprep.subr.bf16.mxu0 0
    %2284 = vmatpush2.bf16.msra.mxu0 0
    %2285 = vmatprep.subr.bf16.mxu0 0
    %2286 = vmatpush2.bf16.msra.mxu0 0
    %2287 = vmatprep.subr.bf16.mxu0 0
    %2288 = vmatpush2.bf16.msra.mxu0 0
    %2289 = vmatprep.subr.bf16.mxu0 0
    %2290 = vmatpush2.bf16.msra.mxu0 0
    %2291 = vmatprep.subr.bf16.mxu0 0
    %2292 = vmatpush2.bf16.msra.mxu0 0
    %2293 = vmatprep.subr.bf16.mxu0 0
    %2294 = vmatpush2.bf16.msra.mxu0 0
    %2295 = vmatprep.subr.bf16.mxu0 0
    %2296 = vmatpush2.bf16.msra.mxu0 0
    %2297 = vmatprep.mubr.bf16.mxu0 0
    %2298 = vmatmul.mubr.bf16.gmra.mxu0 %v2147
    %v2299 = vpop.f32.mrf.mxu0
    %v2300 = vadd.f32 0.0, %v2299
    %v2301 = vpop.f32.mrf.mxu0
    %v2302 = vpop.f32.mrf.mxu0
    %v2303 = vadd.f32 0.0, %v2302
    %v2304 = vpop.f32.mrf.mxu0
    %2305 = vdwg.mxu0
    %v2306 = vpack.c.bf16 %v2184, %v2184
    %v2307 = vpack.c.bf16 %v2187, %v2187
    %v2308 = vpack.c.bf16 %v2242, %v2242
    %v2309 = vpack.c.bf16 %v2245, %v2245
    %v2310 = vpack.c.bf16 %v2300, %v2300
    %v2311 = vpack.c.bf16 %v2303, %v2303
    %v2313 = vsel %vm285, %v2306, 0
    %v2316 = vsel %vm285, %v2308, 0
    %2318 = vmatprep.subr.bf16.mxu0 0
    %2319 = vmatpush1.bf16.xpose.msra.mxu0 0
    %2320 = vmatprep.subr.bf16.mxu0 0
    %2321 = vmatpush1.bf16.xpose.msra.mxu0 0
    %2322 = vmatprep.subr.bf16.mxu0 0
    %2323 = vmatpush1.bf16.xpose.msra.mxu0 0
    %2324 = vmatprep.subr.bf16.mxu0 0
    %2325 = vmatpush1.bf16.xpose.msra.mxu0 0
    %2326 = vmatprep.subr.bf16.mxu0 0
    %2327 = vmatpush1.bf16.xpose.msra.mxu0 0
    %2328 = vmatprep.subr.bf16.mxu0 0
    %2329 = vmatpush1.bf16.xpose.msra.mxu0 0
    %2330 = vmatprep.subr.bf16.mxu0 0
    %2331 = vmatpush1.bf16.xpose.msra.mxu0 0
    %2332 = vmatprep.subr.bf16.mxu0 0
    %2333 = vmatpush1.bf16.xpose.msra.mxu0 %v2316
    %2334 = vmatprep.subr.bf16.mxu0 0
    %2335 = vmatpush2.bf16.xpose.msra.mxu0 0
    %2336 = vmatprep.subr.bf16.mxu0 0
    %2337 = vmatpush2.bf16.xpose.msra.mxu0 0
    %2338 = vmatprep.subr.bf16.mxu0 0
    %2339 = vmatpush2.bf16.xpose.msra.mxu0 0
    %2340 = vmatprep.subr.bf16.mxu0 0
    %2341 = vmatpush2.bf16.xpose.msra.mxu0 0
    %2342 = vmatprep.subr.bf16.mxu0 0
    %2343 = vmatpush2.bf16.xpose.msra.mxu0 0
    %2344 = vmatprep.subr.bf16.mxu0 0
    %2345 = vmatpush2.bf16.xpose.msra.mxu0 0
    %2346 = vmatprep.subr.bf16.mxu0 0
    %2347 = vmatpush2.bf16.xpose.msra.mxu0 0
    %2348 = vmatprep.subr.bf16.mxu0 0
    %2349 = vmatpush2.bf16.xpose.msra.mxu0 0
    %2350 = vmatprep.mubr.bf16.mxu0 0
    %2351 = vmatmul.mubr.bf16.gmra.mxu0 %v2313
    %v2352 = vpop.f32.mrf.mxu0
    %v2353 = vadd.f32 0.0, %v2352
    %v2354 = vpop.f32.mrf.mxu0
    %v2355 = vpop.f32.mrf.mxu0
    %v2356 = vpop.f32.mrf.mxu0
    %2357 = vdwg.mxu0
    %v2359 = vsel %vm285, %v2307, 0
    %v2362 = vsel %vm285, %v2309, 0
    %2364 = vmatprep.subr.bf16.mxu0 0
    %2365 = vmatpush1.bf16.xpose.msra.mxu0 0
    %2366 = vmatprep.subr.bf16.mxu0 0
    %2367 = vmatpush1.bf16.xpose.msra.mxu0 0
    %2368 = vmatprep.subr.bf16.mxu0 0
    %2369 = vmatpush1.bf16.xpose.msra.mxu0 0
    %2370 = vmatprep.subr.bf16.mxu0 0
    %2371 = vmatpush1.bf16.xpose.msra.mxu0 0
    %2372 = vmatprep.subr.bf16.mxu0 0
    %2373 = vmatpush1.bf16.xpose.msra.mxu0 0
    %2374 = vmatprep.subr.bf16.mxu0 0
    %2375 = vmatpush1.bf16.xpose.msra.mxu0 0
    %2376 = vmatprep.subr.bf16.mxu0 0
    %2377 = vmatpush1.bf16.xpose.msra.mxu0 0
    %2378 = vmatprep.subr.bf16.mxu0 0
    %2379 = vmatpush1.bf16.xpose.msra.mxu0 %v2362
    %2380 = vmatprep.subr.bf16.mxu0 0
    %2381 = vmatpush2.bf16.xpose.msra.mxu0 0
    %2382 = vmatprep.subr.bf16.mxu0 0
    %2383 = vmatpush2.bf16.xpose.msra.mxu0 0
    %2384 = vmatprep.subr.bf16.mxu0 0
    %2385 = vmatpush2.bf16.xpose.msra.mxu0 0
    %2386 = vmatprep.subr.bf16.mxu0 0
    %2387 = vmatpush2.bf16.xpose.msra.mxu0 0
    %2388 = vmatprep.subr.bf16.mxu0 0
    %2389 = vmatpush2.bf16.xpose.msra.mxu0 0
    %2390 = vmatprep.subr.bf16.mxu0 0
    %2391 = vmatpush2.bf16.xpose.msra.mxu0 0
    %2392 = vmatprep.subr.bf16.mxu0 0
    %2393 = vmatpush2.bf16.xpose.msra.mxu0 0
    %2394 = vmatprep.subr.bf16.mxu0 0
    %2395 = vmatpush2.bf16.xpose.msra.mxu0 0
    %2396 = vmatprep.mubr.bf16.mxu0 0
    %2397 = vmatmul.mubr.bf16.gmra.mxu0 %v2359
    %v2398 = vpop.f32.mrf.mxu0
    %v2399 = vadd.f32 0.0, %v2398
    %v2400 = vpop.f32.mrf.mxu0
    %v2401 = vpop.f32.mrf.mxu0
    %v2402 = vpop.f32.mrf.mxu0
    %2403 = vdwg.mxu0
    %v2404 = vsel %vm285, %v2353, -inf
    %2405 = vmax.xlane.f32.xlu0 %v2404
    %v2406 = vpop.xlane.xlu0 %2405
    %v2407 = vsel %vm285, %v2399, -inf
    %2408 = vmax.xlane.f32.xlu0 %v2407
    %v2409 = vpop.xlane.xlu0 %2408
    %v2410 = vsub.f32 %v2353, %v2406
    %v2411 = vsub.f32 %v2399, %v2409
    %v2412 = vmul.f32 %v2410, 1.442695
    %v2413 = vpow.pop %v2412
    %v2414 = vmul.f32 %v2411, 1.442695
    %v2415 = vpow.pop %v2414
    %v2416 = vsel %vm285, %v2413, 0.0
    %2417 = vadd.xlane.f32.xlu0 %v2416
    %v2418 = vpop.xlane.xlu0 %2417
    %v2419 = vsel %vm285, %v2415, 0.0
    %2420 = vadd.xlane.f32.xlu0 %v2419
    %v2421 = vpop.xlane.xlu0 %2420
    %v2422 = vrcp.pop %v2418
    %v2423 = vrcp.pop %v2421
    %v2424 = vmul.f32 %v2413, %v2422
    %v2425 = vmul.f32 %v2415, %v2423
    %v2426 = vpack.c.bf16 %v2424, %v2424
    %v2427 = vpack.c.bf16 %v2425, %v2425
    %v2429 = vsel %vm285, %v2426, 0
    %v2432 = vsel %vm405, %v2310, 0
    %2434 = vmatprep.subr.bf16.mxu0 0
    %2435 = vmatpush1.bf16.msra.mxu0 0
    %2436 = vmatprep.subr.bf16.mxu0 0
    %2437 = vmatpush1.bf16.msra.mxu0 0
    %2438 = vmatprep.subr.bf16.mxu0 0
    %2439 = vmatpush1.bf16.msra.mxu0 0
    %2440 = vmatprep.subr.bf16.mxu0 0
    %2441 = vmatpush1.bf16.msra.mxu0 0
    %2442 = vmatprep.subr.bf16.mxu0 0
    %2443 = vmatpush1.bf16.msra.mxu0 0
    %2444 = vmatprep.subr.bf16.mxu0 0
    %2445 = vmatpush1.bf16.msra.mxu0 0
    %2446 = vmatprep.subr.bf16.mxu0 0
    %2447 = vmatpush1.bf16.msra.mxu0 0
    %2448 = vmatprep.subr.bf16.mxu0 0
    %2449 = vmatpush1.bf16.msra.mxu0 %v2432
    %2450 = vmatprep.subr.bf16.mxu0 0
    %2451 = vmatpush2.bf16.msra.mxu0 0
    %2452 = vmatprep.subr.bf16.mxu0 0
    %2453 = vmatpush2.bf16.msra.mxu0 0
    %2454 = vmatprep.subr.bf16.mxu0 0
    %2455 = vmatpush2.bf16.msra.mxu0 0
    %2456 = vmatprep.subr.bf16.mxu0 0
    %2457 = vmatpush2.bf16.msra.mxu0 0
    %2458 = vmatprep.subr.bf16.mxu0 0
    %2459 = vmatpush2.bf16.msra.mxu0 0
    %2460 = vmatprep.subr.bf16.mxu0 0
    %2461 = vmatpush2.bf16.msra.mxu0 0
    %2462 = vmatprep.subr.bf16.mxu0 0
    %2463 = vmatpush2.bf16.msra.mxu0 0
    %2464 = vmatprep.subr.bf16.mxu0 0
    %2465 = vmatpush2.bf16.msra.mxu0 0
    %2466 = vmatprep.mubr.bf16.mxu0 0
    %2467 = vmatmul.mubr.bf16.gmra.mxu0 %v2429
    %v2468 = vpop.f32.mrf.mxu0
    %v2469 = vadd.f32 0.0, %v2468
    %v2470 = vpop.f32.mrf.mxu0
    %v2471 = vpop.f32.mrf.mxu0
    %v2472 = vpop.f32.mrf.mxu0
    %2473 = vdwg.mxu0
    %v2475 = vsel %vm285, %v2427, 0
    %v2478 = vsel %vm405, %v2311, 0
    %2480 = vmatprep.subr.bf16.mxu0 0
    %2481 = vmatpush1.bf16.msra.mxu0 0
    %2482 = vmatprep.subr.bf16.mxu0 0
    %2483 = vmatpush1.bf16.msra.mxu0 0
    %2484 = vmatprep.subr.bf16.mxu0 0
    %2485 = vmatpush1.bf16.msra.mxu0 0
    %2486 = vmatprep.subr.bf16.mxu0 0
    %2487 = vmatpush1.bf16.msra.mxu0 0
    %2488 = vmatprep.subr.bf16.mxu0 0
    %2489 = vmatpush1.bf16.msra.mxu0 0
    %2490 = vmatprep.subr.bf16.mxu0 0
    %2491 = vmatpush1.bf16.msra.mxu0 0
    %2492 = vmatprep.subr.bf16.mxu0 0
    %2493 = vmatpush1.bf16.msra.mxu0 0
    %2494 = vmatprep.subr.bf16.mxu0 0
    %2495 = vmatpush1.bf16.msra.mxu0 %v2478
    %2496 = vmatprep.subr.bf16.mxu0 0
    %2497 = vmatpush2.bf16.msra.mxu0 0
    %2498 = vmatprep.subr.bf16.mxu0 0
    %2499 = vmatpush2.bf16.msra.mxu0 0
    %2500 = vmatprep.subr.bf16.mxu0 0
    %2501 = vmatpush2.bf16.msra.mxu0 0
    %2502 = vmatprep.subr.bf16.mxu0 0
    %2503 = vmatpush2.bf16.msra.mxu0 0
    %2504 = vmatprep.subr.bf16.mxu0 0
    %2505 = vmatpush2.bf16.msra.mxu0 0
    %2506 = vmatprep.subr.bf16.mxu0 0
    %2507 = vmatpush2.bf16.msra.mxu0 0
    %2508 = vmatprep.subr.bf16.mxu0 0
    %2509 = vmatpush2.bf16.msra.mxu0 0
    %2510 = vmatprep.subr.bf16.mxu0 0
    %2511 = vmatpush2.bf16.msra.mxu0 0
    %2512 = vmatprep.mubr.bf16.mxu0 0
    %2513 = vmatmul.mubr.bf16.gmra.mxu0 %v2475
    %v2514 = vpop.f32.mrf.mxu0
    %v2515 = vadd.f32 0.0, %v2514
    %v2516 = vpop.f32.mrf.mxu0
    %v2517 = vpop.f32.mrf.mxu0
    %v2518 = vpop.f32.mrf.mxu0
    %2519 = vdwg.mxu0
    %v2520 = vpack.c.bf16 %v2515, %v2469
    %s2521 = scalar_lea.vmem %s7, 16
    %v2522 = vld [vmem:[%s2521] sm:$0xf]
    %s2523 = scalar_lea.vmem %s4, 80
    %v2524 = vld [vmem:[%s2523] sm:$0xf]
    %v2525 = vld [vmem:[%s2523 + $0x4] sm:$0xf]
    %v2526 = vld [vmem:[%s2523 + $0x8] sm:$0xf]
    %v2527 = vld [vmem:[%s2523 + $0xc] sm:$0xf]
    %v2532 = vunpack.c.l.b16 %v2524
    %v2533 = vunpack.c.l.b16 %v2525
    %v2534 = vunpack.c.l.b16 %v2526
    %v2535 = vunpack.c.l.b16 %v2527
    %v2536 = vpack.c.b16 %v2533, %v2532
    %v2537 = vpack.c.b16 %v2535, %v2534
    %2540 = vmatprep.subr.bf16.mxu0 0
    %2541 = vmatpush1.bf16.msra.mxu0 0
    %2542 = vmatprep.subr.bf16.mxu0 0
    %2543 = vmatpush1.bf16.msra.mxu0 0
    %2544 = vmatprep.subr.bf16.mxu0 0
    %2545 = vmatpush1.bf16.msra.mxu0 0
    %2546 = vmatprep.subr.bf16.mxu0 0
    %2547 = vmatpush1.bf16.msra.mxu0 0
    %2548 = vmatprep.subr.bf16.mxu0 0
    %2549 = vmatpush1.bf16.msra.mxu0 0
    %2550 = vmatprep.subr.bf16.mxu0 0
    %2551 = vmatpush1.bf16.msra.mxu0 0
    %2552 = vmatprep.subr.bf16.mxu0 0
    %2553 = vmatpush1.bf16.msra.mxu0 %v2537
    %2554 = vmatprep.subr.bf16.mxu0 0
    %2555 = vmatpush1.bf16.msra.mxu0 %v2536
    %2556 = vmatprep.subr.bf16.mxu0 0
    %2557 = vmatpush2.bf16.msra.mxu0 0
    %2558 = vmatprep.subr.bf16.mxu0 0
    %2559 = vmatpush2.bf16.msra.mxu0 0
    %2560 = vmatprep.subr.bf16.mxu0 0
    %2561 = vmatpush2.bf16.msra.mxu0 0
    %2562 = vmatprep.subr.bf16.mxu0 0
    %2563 = vmatpush2.bf16.msra.mxu0 0
    %2564 = vmatprep.subr.bf16.mxu0 0
    %2565 = vmatpush2.bf16.msra.mxu0 0
    %2566 = vmatprep.subr.bf16.mxu0 0
    %2567 = vmatpush2.bf16.msra.mxu0 0
    %2568 = vmatprep.subr.bf16.mxu0 0
    %2569 = vmatpush2.bf16.msra.mxu0 0
    %2570 = vmatprep.subr.bf16.mxu0 0
    %2571 = vmatpush2.bf16.msra.mxu0 0
    %2572 = vmatprep.mubr.bf16.mxu0 0
    %2573 = vmatmul.mubr.bf16.gmra.mxu0 %v2147
    %v2574 = vpop.f32.mrf.mxu0
    %v2575 = vadd.f32 0.0, %v2574
    %v2576 = vpop.f32.mrf.mxu0
    %v2577 = vpop.f32.mrf.mxu0
    %v2578 = vadd.f32 0.0, %v2577
    %v2579 = vpop.f32.mrf.mxu0
    %2580 = vdwg.mxu0
    %s2581 = scalar_lea.vmem %s5, 80
    %v2582 = vld [vmem:[%s2581] sm:$0xf]
    %v2583 = vld [vmem:[%s2581 + $0x4] sm:$0xf]
    %v2584 = vld [vmem:[%s2581 + $0x8] sm:$0xf]
    %v2585 = vld [vmem:[%s2581 + $0xc] sm:$0xf]
    %v2590 = vunpack.c.l.b16 %v2582
    %v2591 = vunpack.c.l.b16 %v2583
    %v2592 = vunpack.c.l.b16 %v2584
    %v2593 = vunpack.c.l.b16 %v2585
    %v2594 = vpack.c.b16 %v2591, %v2590
    %v2595 = vpack.c.b16 %v2593, %v2592
    %2598 = vmatprep.subr.bf16.mxu0 0
    %2599 = vmatpush1.bf16.msra.mxu0 0
    %2600 = vmatprep.subr.bf16.mxu0 0
    %2601 = vmatpush1.bf16.msra.mxu0 0
    %2602 = vmatprep.subr.bf16.mxu0 0
    %2603 = vmatpush1.bf16.msra.mxu0 0
    %2604 = vmatprep.subr.bf16.mxu0 0
    %2605 = vmatpush1.bf16.msra.mxu0 0
    %2606 = vmatprep.subr.bf16.mxu0 0
    %2607 = vmatpush1.bf16.msra.mxu0 0
    %2608 = vmatprep.subr.bf16.mxu0 0
    %2609 = vmatpush1.bf16.msra.mxu0 0
    %2610 = vmatprep.subr.bf16.mxu0 0
    %2611 = vmatpush1.bf16.msra.mxu0 %v2595
    %2612 = vmatprep.subr.bf16.mxu0 0
    %2613 = vmatpush1.bf16.msra.mxu0 %v2594
    %2614 = vmatprep.subr.bf16.mxu0 0
    %2615 = vmatpush2.bf16.msra.mxu0 0
    %2616 = vmatprep.subr.bf16.mxu0 0
    %2617 = vmatpush2.bf16.msra.mxu0 0
    %2618 = vmatprep.subr.bf16.mxu0 0
    %2619 = vmatpush2.bf16.msra.mxu0 0
    %2620 = vmatprep.subr.bf16.mxu0 0
    %2621 = vmatpush2.bf16.msra.mxu0 0
    %2622 = vmatprep.subr.bf16.mxu0 0
    %2623 = vmatpush2.bf16.msra.mxu0 0
    %2624 = vmatprep.subr.bf16.mxu0 0
    %2625 = vmatpush2.bf16.msra.mxu0 0
    %2626 = vmatprep.subr.bf16.mxu0 0
    %2627 = vmatpush2.bf16.msra.mxu0 0
    %2628 = vmatprep.subr.bf16.mxu0 0
    %2629 = vmatpush2.bf16.msra.mxu0 0
    %2630 = vmatprep.mubr.bf16.mxu0 0
    %2631 = vmatmul.mubr.bf16.gmra.mxu0 %v2147
    %v2632 = vpop.f32.mrf.mxu0
    %v2633 = vadd.f32 0.0, %v2632
    %v2634 = vpop.f32.mrf.mxu0
    %v2635 = vpop.f32.mrf.mxu0
    %v2636 = vadd.f32 0.0, %v2635
    %v2637 = vpop.f32.mrf.mxu0
    %2638 = vdwg.mxu0
    %s2639 = scalar_lea.vmem %s6, 80
    %v2640 = vld [vmem:[%s2639] sm:$0xf]
    %v2641 = vld [vmem:[%s2639 + $0x4] sm:$0xf]
    %v2642 = vld [vmem:[%s2639 + $0x8] sm:$0xf]
    %v2643 = vld [vmem:[%s2639 + $0xc] sm:$0xf]
    %v2648 = vunpack.c.l.b16 %v2640
    %v2649 = vunpack.c.l.b16 %v2641
    %v2650 = vunpack.c.l.b16 %v2642
    %v2651 = vunpack.c.l.b16 %v2643
    %v2652 = vpack.c.b16 %v2649, %v2648
    %v2653 = vpack.c.b16 %v2651, %v2650
    %2656 = vmatprep.subr.bf16.mxu0 0
    %2657 = vmatpush1.bf16.msra.mxu0 0
    %2658 = vmatprep.subr.bf16.mxu0 0
    %2659 = vmatpush1.bf16.msra.mxu0 0
    %2660 = vmatprep.subr.bf16.mxu0 0
    %2661 = vmatpush1.bf16.msra.mxu0 0
    %2662 = vmatprep.subr.bf16.mxu0 0
    %2663 = vmatpush1.bf16.msra.mxu0 0
    %2664 = vmatprep.subr.bf16.mxu0 0
    %2665 = vmatpush1.bf16.msra.mxu0 0
    %2666 = vmatprep.subr.bf16.mxu0 0
    %2667 = vmatpush1.bf16.msra.mxu0 0
    %2668 = vmatprep.subr.bf16.mxu0 0
    %2669 = vmatpush1.bf16.msra.mxu0 %v2653
    %2670 = vmatprep.subr.bf16.mxu0 0
    %2671 = vmatpush1.bf16.msra.mxu0 %v2652
    %2672 = vmatprep.subr.bf16.mxu0 0
    %2673 = vmatpush2.bf16.msra.mxu0 0
    %2674 = vmatprep.subr.bf16.mxu0 0
    %2675 = vmatpush2.bf16.msra.mxu0 0
    %2676 = vmatprep.subr.bf16.mxu0 0
    %2677 = vmatpush2.bf16.msra.mxu0 0
    %2678 = vmatprep.subr.bf16.mxu0 0
    %2679 = vmatpush2.bf16.msra.mxu0 0
    %2680 = vmatprep.subr.bf16.mxu0 0
    %2681 = vmatpush2.bf16.msra.mxu0 0
    %2682 = vmatprep.subr.bf16.mxu0 0
    %2683 = vmatpush2.bf16.msra.mxu0 0
    %2684 = vmatprep.subr.bf16.mxu0 0
    %2685 = vmatpush2.bf16.msra.mxu0 0
    %2686 = vmatprep.subr.bf16.mxu0 0
    %2687 = vmatpush2.bf16.msra.mxu0 0
    %2688 = vmatprep.mubr.bf16.mxu0 0
    %2689 = vmatmul.mubr.bf16.gmra.mxu0 %v2147
    %v2690 = vpop.f32.mrf.mxu0
    %v2691 = vadd.f32 0.0, %v2690
    %v2692 = vpop.f32.mrf.mxu0
    %v2693 = vpop.f32.mrf.mxu0
    %v2694 = vadd.f32 0.0, %v2693
    %v2695 = vpop.f32.mrf.mxu0
    %2696 = vdwg.mxu0
    %v2697 = vpack.c.bf16 %v2575, %v2575
    %v2698 = vpack.c.bf16 %v2578, %v2578
    %v2699 = vpack.c.bf16 %v2633, %v2633
    %v2700 = vpack.c.bf16 %v2636, %v2636
    %v2701 = vpack.c.bf16 %v2691, %v2691
    %v2702 = vpack.c.bf16 %v2694, %v2694
    %v2704 = vsel %vm285, %v2697, 0
    %v2707 = vsel %vm285, %v2699, 0
    %2709 = vmatprep.subr.bf16.mxu0 0
    %2710 = vmatpush1.bf16.xpose.msra.mxu0 0
    %2711 = vmatprep.subr.bf16.mxu0 0
    %2712 = vmatpush1.bf16.xpose.msra.mxu0 0
    %2713 = vmatprep.subr.bf16.mxu0 0
    %2714 = vmatpush1.bf16.xpose.msra.mxu0 0
    %2715 = vmatprep.subr.bf16.mxu0 0
    %2716 = vmatpush1.bf16.xpose.msra.mxu0 0
    %2717 = vmatprep.subr.bf16.mxu0 0
    %2718 = vmatpush1.bf16.xpose.msra.mxu0 0
    %2719 = vmatprep.subr.bf16.mxu0 0
    %2720 = vmatpush1.bf16.xpose.msra.mxu0 0
    %2721 = vmatprep.subr.bf16.mxu0 0
    %2722 = vmatpush1.bf16.xpose.msra.mxu0 0
    %2723 = vmatprep.subr.bf16.mxu0 0
    %2724 = vmatpush1.bf16.xpose.msra.mxu0 %v2707
    %2725 = vmatprep.subr.bf16.mxu0 0
    %2726 = vmatpush2.bf16.xpose.msra.mxu0 0
    %2727 = vmatprep.subr.bf16.mxu0 0
    %2728 = vmatpush2.bf16.xpose.msra.mxu0 0
    %2729 = vmatprep.subr.bf16.mxu0 0
    %2730 = vmatpush2.bf16.xpose.msra.mxu0 0
    %2731 = vmatprep.subr.bf16.mxu0 0
    %2732 = vmatpush2.bf16.xpose.msra.mxu0 0
    %2733 = vmatprep.subr.bf16.mxu0 0
    %2734 = vmatpush2.bf16.xpose.msra.mxu0 0
    %2735 = vmatprep.subr.bf16.mxu0 0
    %2736 = vmatpush2.bf16.xpose.msra.mxu0 0
    %2737 = vmatprep.subr.bf16.mxu0 0
    %2738 = vmatpush2.bf16.xpose.msra.mxu0 0
    %2739 = vmatprep.subr.bf16.mxu0 0
    %2740 = vmatpush2.bf16.xpose.msra.mxu0 0
    %2741 = vmatprep.mubr.bf16.mxu0 0
    %2742 = vmatmul.mubr.bf16.gmra.mxu0 %v2704
    %v2743 = vpop.f32.mrf.mxu0
    %v2744 = vadd.f32 0.0, %v2743
    %v2745 = vpop.f32.mrf.mxu0
    %v2746 = vpop.f32.mrf.mxu0
    %v2747 = vpop.f32.mrf.mxu0
    %2748 = vdwg.mxu0
    %v2750 = vsel %vm285, %v2698, 0
    %v2753 = vsel %vm285, %v2700, 0
    %2755 = vmatprep.subr.bf16.mxu0 0
    %2756 = vmatpush1.bf16.xpose.msra.mxu0 0
    %2757 = vmatprep.subr.bf16.mxu0 0
    %2758 = vmatpush1.bf16.xpose.msra.mxu0 0
    %2759 = vmatprep.subr.bf16.mxu0 0
    %2760 = vmatpush1.bf16.xpose.msra.mxu0 0
    %2761 = vmatprep.subr.bf16.mxu0 0
    %2762 = vmatpush1.bf16.xpose.msra.mxu0 0
    %2763 = vmatprep.subr.bf16.mxu0 0
    %2764 = vmatpush1.bf16.xpose.msra.mxu0 0
    %2765 = vmatprep.subr.bf16.mxu0 0
    %2766 = vmatpush1.bf16.xpose.msra.mxu0 0
    %2767 = vmatprep.subr.bf16.mxu0 0
    %2768 = vmatpush1.bf16.xpose.msra.mxu0 0
    %2769 = vmatprep.subr.bf16.mxu0 0
    %2770 = vmatpush1.bf16.xpose.msra.mxu0 %v2753
    %2771 = vmatprep.subr.bf16.mxu0 0
    %2772 = vmatpush2.bf16.xpose.msra.mxu0 0
    %2773 = vmatprep.subr.bf16.mxu0 0
    %2774 = vmatpush2.bf16.xpose.msra.mxu0 0
    %2775 = vmatprep.subr.bf16.mxu0 0
    %2776 = vmatpush2.bf16.xpose.msra.mxu0 0
    %2777 = vmatprep.subr.bf16.mxu0 0
    %2778 = vmatpush2.bf16.xpose.msra.mxu0 0
    %2779 = vmatprep.subr.bf16.mxu0 0
    %2780 = vmatpush2.bf16.xpose.msra.mxu0 0
    %2781 = vmatprep.subr.bf16.mxu0 0
    %2782 = vmatpush2.bf16.xpose.msra.mxu0 0
    %2783 = vmatprep.subr.bf16.mxu0 0
    %2784 = vmatpush2.bf16.xpose.msra.mxu0 0
    %2785 = vmatprep.subr.bf16.mxu0 0
    %2786 = vmatpush2.bf16.xpose.msra.mxu0 0
    %2787 = vmatprep.mubr.bf16.mxu0 0
    %2788 = vmatmul.mubr.bf16.gmra.mxu0 %v2750
    %v2789 = vpop.f32.mrf.mxu0
    %v2790 = vadd.f32 0.0, %v2789
    %v2791 = vpop.f32.mrf.mxu0
    %v2792 = vpop.f32.mrf.mxu0
    %v2793 = vpop.f32.mrf.mxu0
    %2794 = vdwg.mxu0
    %v2795 = vsel %vm285, %v2744, -inf
    %2796 = vmax.xlane.f32.xlu0 %v2795
    %v2797 = vpop.xlane.xlu0 %2796
    %v2798 = vsel %vm285, %v2790, -inf
    %2799 = vmax.xlane.f32.xlu0 %v2798
    %v2800 = vpop.xlane.xlu0 %2799
    %v2801 = vsub.f32 %v2744, %v2797
    %v2802 = vsub.f32 %v2790, %v2800
    %v2803 = vmul.f32 %v2801, 1.442695
    %v2804 = vpow.pop %v2803
    %v2805 = vmul.f32 %v2802, 1.442695
    %v2806 = vpow.pop %v2805
    %v2807 = vsel %vm285, %v2804, 0.0
    %2808 = vadd.xlane.f32.xlu0 %v2807
    %v2809 = vpop.xlane.xlu0 %2808
    %v2810 = vsel %vm285, %v2806, 0.0
    %2811 = vadd.xlane.f32.xlu0 %v2810
    %v2812 = vpop.xlane.xlu0 %2811
    %v2813 = vrcp.pop %v2809
    %v2814 = vrcp.pop %v2812
    %v2815 = vmul.f32 %v2804, %v2813
    %v2816 = vmul.f32 %v2806, %v2814
    %v2817 = vpack.c.bf16 %v2815, %v2815
    %v2818 = vpack.c.bf16 %v2816, %v2816
    %v2820 = vsel %vm285, %v2817, 0
    %v2823 = vsel %vm405, %v2701, 0
    %2825 = vmatprep.subr.bf16.mxu0 0
    %2826 = vmatpush1.bf16.msra.mxu0 0
    %2827 = vmatprep.subr.bf16.mxu0 0
    %2828 = vmatpush1.bf16.msra.mxu0 0
    %2829 = vmatprep.subr.bf16.mxu0 0
    %2830 = vmatpush1.bf16.msra.mxu0 0
    %2831 = vmatprep.subr.bf16.mxu0 0
    %2832 = vmatpush1.bf16.msra.mxu0 0
    %2833 = vmatprep.subr.bf16.mxu0 0
    %2834 = vmatpush1.bf16.msra.mxu0 0
    %2835 = vmatprep.subr.bf16.mxu0 0
    %2836 = vmatpush1.bf16.msra.mxu0 0
    %2837 = vmatprep.subr.bf16.mxu0 0
    %2838 = vmatpush1.bf16.msra.mxu0 0
    %2839 = vmatprep.subr.bf16.mxu0 0
    %2840 = vmatpush1.bf16.msra.mxu0 %v2823
    %2841 = vmatprep.subr.bf16.mxu0 0
    %2842 = vmatpush2.bf16.msra.mxu0 0
    %2843 = vmatprep.subr.bf16.mxu0 0
    %2844 = vmatpush2.bf16.msra.mxu0 0
    %2845 = vmatprep.subr.bf16.mxu0 0
    %2846 = vmatpush2.bf16.msra.mxu0 0
    %2847 = vmatprep.subr.bf16.mxu0 0
    %2848 = vmatpush2.bf16.msra.mxu0 0
    %2849 = vmatprep.subr.bf16.mxu0 0
    %2850 = vmatpush2.bf16.msra.mxu0 0
    %2851 = vmatprep.subr.bf16.mxu0 0
    %2852 = vmatpush2.bf16.msra.mxu0 0
    %2853 = vmatprep.subr.bf16.mxu0 0
    %2854 = vmatpush2.bf16.msra.mxu0 0
    %2855 = vmatprep.subr.bf16.mxu0 0
    %2856 = vmatpush2.bf16.msra.mxu0 0
    %2857 = vmatprep.mubr.bf16.mxu0 0
    %2858 = vmatmul.mubr.bf16.gmra.mxu0 %v2820
    %v2859 = vpop.f32.mrf.mxu0
    %v2860 = vadd.f32 0.0, %v2859
    %v2861 = vpop.f32.mrf.mxu0
    %v2862 = vpop.f32.mrf.mxu0
    %v2863 = vpop.f32.mrf.mxu0
    %2864 = vdwg.mxu0
    %v2866 = vsel %vm285, %v2818, 0
    %v2869 = vsel %vm405, %v2702, 0
    %2871 = vmatprep.subr.bf16.mxu0 0
    %2872 = vmatpush1.bf16.msra.mxu0 0
    %2873 = vmatprep.subr.bf16.mxu0 0
    %2874 = vmatpush1.bf16.msra.mxu0 0
    %2875 = vmatprep.subr.bf16.mxu0 0
    %2876 = vmatpush1.bf16.msra.mxu0 0
    %2877 = vmatprep.subr.bf16.mxu0 0
    %2878 = vmatpush1.bf16.msra.mxu0 0
    %2879 = vmatprep.subr.bf16.mxu0 0
    %2880 = vmatpush1.bf16.msra.mxu0 0
    %2881 = vmatprep.subr.bf16.mxu0 0
    %2882 = vmatpush1.bf16.msra.mxu0 0
    %2883 = vmatprep.subr.bf16.mxu0 0
    %2884 = vmatpush1.bf16.msra.mxu0 0
    %2885 = vmatprep.subr.bf16.mxu0 0
    %2886 = vmatpush1.bf16.msra.mxu0 %v2869
    %2887 = vmatprep.subr.bf16.mxu0 0
    %2888 = vmatpush2.bf16.msra.mxu0 0
    %2889 = vmatprep.subr.bf16.mxu0 0
    %2890 = vmatpush2.bf16.msra.mxu0 0
    %2891 = vmatprep.subr.bf16.mxu0 0
    %2892 = vmatpush2.bf16.msra.mxu0 0
    %2893 = vmatprep.subr.bf16.mxu0 0
    %2894 = vmatpush2.bf16.msra.mxu0 0
    %2895 = vmatprep.subr.bf16.mxu0 0
    %2896 = vmatpush2.bf16.msra.mxu0 0
    %2897 = vmatprep.subr.bf16.mxu0 0
    %2898 = vmatpush2.bf16.msra.mxu0 0
    %2899 = vmatprep.subr.bf16.mxu0 0
    %2900 = vmatpush2.bf16.msra.mxu0 0
    %2901 = vmatprep.subr.bf16.mxu0 0
    %2902 = vmatpush2.bf16.msra.mxu0 0
    %2903 = vmatprep.mubr.bf16.mxu0 0
    %2904 = vmatmul.mubr.bf16.gmra.mxu0 %v2866
    %v2905 = vpop.f32.mrf.mxu0
    %v2906 = vadd.f32 0.0, %v2905
    %v2907 = vpop.f32.mrf.mxu0
    %v2908 = vpop.f32.mrf.mxu0
    %v2909 = vpop.f32.mrf.mxu0
    %2910 = vdwg.mxu0
    %v2911 = vpack.c.bf16 %v2906, %v2860
    %s2912 = scalar_lea.vmem %s7, 20
    %v2913 = vld [vmem:[%s2912] sm:$0xf]
    %v2915 = vsel %vm285, %v2911, 0
    %v2918 = vsel %vm405, %v2913, 0
    %2920 = vmatprep.subr.bf16.mxu0 0
    %2921 = vmatpush1.bf16.msra.mxu0 0
    %2922 = vmatprep.subr.bf16.mxu0 0
    %2923 = vmatpush1.bf16.msra.mxu0 0
    %2924 = vmatprep.subr.bf16.mxu0 0
    %2925 = vmatpush1.bf16.msra.mxu0 0
    %2926 = vmatprep.subr.bf16.mxu0 0
    %2927 = vmatpush1.bf16.msra.mxu0 0
    %2928 = vmatprep.subr.bf16.mxu0 0
    %2929 = vmatpush1.bf16.msra.mxu0 0
    %2930 = vmatprep.subr.bf16.mxu0 0
    %2931 = vmatpush1.bf16.msra.mxu0 0
    %2932 = vmatprep.subr.bf16.mxu0 0
    %2933 = vmatpush1.bf16.msra.mxu0 0
    %2934 = vmatprep.subr.bf16.mxu0 0
    %2935 = vmatpush1.bf16.msra.mxu0 %v2918
    %2936 = vmatprep.subr.bf16.mxu0 0
    %2937 = vmatpush2.bf16.msra.mxu0 0
    %2938 = vmatprep.subr.bf16.mxu0 0
    %2939 = vmatpush2.bf16.msra.mxu0 0
    %2940 = vmatprep.subr.bf16.mxu0 0
    %2941 = vmatpush2.bf16.msra.mxu0 0
    %2942 = vmatprep.subr.bf16.mxu0 0
    %2943 = vmatpush2.bf16.msra.mxu0 0
    %2944 = vmatprep.subr.bf16.mxu0 0
    %2945 = vmatpush2.bf16.msra.mxu0 0
    %2946 = vmatprep.subr.bf16.mxu0 0
    %2947 = vmatpush2.bf16.msra.mxu0 0
    %2948 = vmatprep.subr.bf16.mxu0 0
    %2949 = vmatpush2.bf16.msra.mxu0 0
    %2950 = vmatprep.subr.bf16.mxu0 0
    %2951 = vmatpush2.bf16.msra.mxu0 0
    %2952 = vmatprep.mubr.bf16.mxu0 0
    %2953 = vmatmul.mubr.bf16.gmra.mxu0 %v2915
    %v2954 = vpop.f32.mrf.mxu0
    %v2955 = vadd.f32 0.0, %v2954
    %v2956 = vpop.f32.mrf.mxu0
    %v2957 = vpop.f32.mrf.mxu0
    %v2958 = vadd.f32 0.0, %v2957
    %v2959 = vpop.f32.mrf.mxu0
    %2960 = vdwg.mxu0
    %v2962 = vsel %vm285, %v2520, 0
    %v2965 = vsel %vm405, %v2522, 0
    %2967 = vmatprep.subr.bf16.mxu0 0
    %2968 = vmatpush1.bf16.msra.mxu0 0
    %2969 = vmatprep.subr.bf16.mxu0 0
    %2970 = vmatpush1.bf16.msra.mxu0 0
    %2971 = vmatprep.subr.bf16.mxu0 0
    %2972 = vmatpush1.bf16.msra.mxu0 0
    %2973 = vmatprep.subr.bf16.mxu0 0
    %2974 = vmatpush1.bf16.msra.mxu0 0
    %2975 = vmatprep.subr.bf16.mxu0 0
    %2976 = vmatpush1.bf16.msra.mxu0 0
    %2977 = vmatprep.subr.bf16.mxu0 0
    %2978 = vmatpush1.bf16.msra.mxu0 0
    %2979 = vmatprep.subr.bf16.mxu0 0
    %2980 = vmatpush1.bf16.msra.mxu0 0
    %2981 = vmatprep.subr.bf16.mxu0 0
    %2982 = vmatpush1.bf16.msra.mxu0 %v2965
    %2983 = vmatprep.subr.bf16.mxu0 0
    %2984 = vmatpush2.bf16.msra.mxu0 0
    %2985 = vmatprep.subr.bf16.mxu0 0
    %2986 = vmatpush2.bf16.msra.mxu0 0
    %2987 = vmatprep.subr.bf16.mxu0 0
    %2988 = vmatpush2.bf16.msra.mxu0 0
    %2989 = vmatprep.subr.bf16.mxu0 0
    %2990 = vmatpush2.bf16.msra.mxu0 0
    %2991 = vmatprep.subr.bf16.mxu0 0
    %2992 = vmatpush2.bf16.msra.mxu0 0
    %2993 = vmatprep.subr.bf16.mxu0 0
    %2994 = vmatpush2.bf16.msra.mxu0 0
    %2995 = vmatprep.subr.bf16.mxu0 0
    %2996 = vmatpush2.bf16.msra.mxu0 0
    %2997 = vmatprep.subr.bf16.mxu0 0
    %2998 = vmatpush2.bf16.msra.mxu0 0
    %2999 = vmatprep.mubr.bf16.mxu0 0
    %3000 = vmatmul.mubr.bf16.gmra.mxu0 %v2962
    %v3001 = vpop.f32.mrf.mxu0
    %v3002 = vadd.f32 %v2955, %v3001
    %v3003 = vpop.f32.mrf.mxu0
    %v3004 = vpop.f32.mrf.mxu0
    %v3005 = vadd.f32 %v2958, %v3004
    %v3006 = vpop.f32.mrf.mxu0
    %3007 = vdwg.mxu0
    %s3008 = scalar_lea.vmem %s4, 96
    %v3009 = vld [vmem:[%s3008] sm:$0xf]
    %v3010 = vld [vmem:[%s3008 + $0x4] sm:$0xf]
    %v3011 = vld [vmem:[%s3008 + $0x8] sm:$0xf]
    %v3012 = vld [vmem:[%s3008 + $0xc] sm:$0xf]
    %v3017 = vunpack.c.l.b16 %v3009
    %v3018 = vunpack.c.l.b16 %v3010
    %v3019 = vunpack.c.l.b16 %v3011
    %v3020 = vunpack.c.l.b16 %v3012
    %v3021 = vpack.c.b16 %v3018, %v3017
    %v3022 = vpack.c.b16 %v3020, %v3019
    %3025 = vmatprep.subr.bf16.mxu0 0
    %3026 = vmatpush1.bf16.msra.mxu0 0
    %3027 = vmatprep.subr.bf16.mxu0 0
    %3028 = vmatpush1.bf16.msra.mxu0 0
    %3029 = vmatprep.subr.bf16.mxu0 0
    %3030 = vmatpush1.bf16.msra.mxu0 0
    %3031 = vmatprep.subr.bf16.mxu0 0
    %3032 = vmatpush1.bf16.msra.mxu0 0
    %3033 = vmatprep.subr.bf16.mxu0 0
    %3034 = vmatpush1.bf16.msra.mxu0 0
    %3035 = vmatprep.subr.bf16.mxu0 0
    %3036 = vmatpush1.bf16.msra.mxu0 0
    %3037 = vmatprep.subr.bf16.mxu0 0
    %3038 = vmatpush1.bf16.msra.mxu0 %v3022
    %3039 = vmatprep.subr.bf16.mxu0 0
    %3040 = vmatpush1.bf16.msra.mxu0 %v3021
    %3041 = vmatprep.subr.bf16.mxu0 0
    %3042 = vmatpush2.bf16.msra.mxu0 0
    %3043 = vmatprep.subr.bf16.mxu0 0
    %3044 = vmatpush2.bf16.msra.mxu0 0
    %3045 = vmatprep.subr.bf16.mxu0 0
    %3046 = vmatpush2.bf16.msra.mxu0 0
    %3047 = vmatprep.subr.bf16.mxu0 0
    %3048 = vmatpush2.bf16.msra.mxu0 0
    %3049 = vmatprep.subr.bf16.mxu0 0
    %3050 = vmatpush2.bf16.msra.mxu0 0
    %3051 = vmatprep.subr.bf16.mxu0 0
    %3052 = vmatpush2.bf16.msra.mxu0 0
    %3053 = vmatprep.subr.bf16.mxu0 0
    %3054 = vmatpush2.bf16.msra.mxu0 0
    %3055 = vmatprep.subr.bf16.mxu0 0
    %3056 = vmatpush2.bf16.msra.mxu0 0
    %3057 = vmatprep.mubr.bf16.mxu0 0
    %3058 = vmatmul.mubr.bf16.gmra.mxu0 %v2147
    %v3059 = vpop.f32.mrf.mxu0
    %v3060 = vadd.f32 0.0, %v3059
    %v3061 = vpop.f32.mrf.mxu0
    %v3062 = vpop.f32.mrf.mxu0
    %v3063 = vadd.f32 0.0, %v3062
    %v3064 = vpop.f32.mrf.mxu0
    %3065 = vdwg.mxu0
    %s3066 = scalar_lea.vmem %s5, 96
    %v3067 = vld [vmem:[%s3066] sm:$0xf]
    %v3068 = vld [vmem:[%s3066 + $0x4] sm:$0xf]
    %v3069 = vld [vmem:[%s3066 + $0x8] sm:$0xf]
    %v3070 = vld [vmem:[%s3066 + $0xc] sm:$0xf]
    %v3075 = vunpack.c.l.b16 %v3067
    %v3076 = vunpack.c.l.b16 %v3068
    %v3077 = vunpack.c.l.b16 %v3069
    %v3078 = vunpack.c.l.b16 %v3070
    %v3079 = vpack.c.b16 %v3076, %v3075
    %v3080 = vpack.c.b16 %v3078, %v3077
    %3083 = vmatprep.subr.bf16.mxu0 0
    %3084 = vmatpush1.bf16.msra.mxu0 0
    %3085 = vmatprep.subr.bf16.mxu0 0
    %3086 = vmatpush1.bf16.msra.mxu0 0
    %3087 = vmatprep.subr.bf16.mxu0 0
    %3088 = vmatpush1.bf16.msra.mxu0 0
    %3089 = vmatprep.subr.bf16.mxu0 0
    %3090 = vmatpush1.bf16.msra.mxu0 0
    %3091 = vmatprep.subr.bf16.mxu0 0
    %3092 = vmatpush1.bf16.msra.mxu0 0
    %3093 = vmatprep.subr.bf16.mxu0 0
    %3094 = vmatpush1.bf16.msra.mxu0 0
    %3095 = vmatprep.subr.bf16.mxu0 0
    %3096 = vmatpush1.bf16.msra.mxu0 %v3080
    %3097 = vmatprep.subr.bf16.mxu0 0
    %3098 = vmatpush1.bf16.msra.mxu0 %v3079
    %3099 = vmatprep.subr.bf16.mxu0 0
    %3100 = vmatpush2.bf16.msra.mxu0 0
    %3101 = vmatprep.subr.bf16.mxu0 0
    %3102 = vmatpush2.bf16.msra.mxu0 0
    %3103 = vmatprep.subr.bf16.mxu0 0
    %3104 = vmatpush2.bf16.msra.mxu0 0
    %3105 = vmatprep.subr.bf16.mxu0 0
    %3106 = vmatpush2.bf16.msra.mxu0 0
    %3107 = vmatprep.subr.bf16.mxu0 0
    %3108 = vmatpush2.bf16.msra.mxu0 0
    %3109 = vmatprep.subr.bf16.mxu0 0
    %3110 = vmatpush2.bf16.msra.mxu0 0
    %3111 = vmatprep.subr.bf16.mxu0 0
    %3112 = vmatpush2.bf16.msra.mxu0 0
    %3113 = vmatprep.subr.bf16.mxu0 0
    %3114 = vmatpush2.bf16.msra.mxu0 0
    %3115 = vmatprep.mubr.bf16.mxu0 0
    %3116 = vmatmul.mubr.bf16.gmra.mxu0 %v2147
    %v3117 = vpop.f32.mrf.mxu0
    %v3118 = vadd.f32 0.0, %v3117
    %v3119 = vpop.f32.mrf.mxu0
    %v3120 = vpop.f32.mrf.mxu0
    %v3121 = vadd.f32 0.0, %v3120
    %v3122 = vpop.f32.mrf.mxu0
    %3123 = vdwg.mxu0
    %s3124 = scalar_lea.vmem %s6, 96
    %v3125 = vld [vmem:[%s3124] sm:$0xf]
    %v3126 = vld [vmem:[%s3124 + $0x4] sm:$0xf]
    %v3127 = vld [vmem:[%s3124 + $0x8] sm:$0xf]
    %v3128 = vld [vmem:[%s3124 + $0xc] sm:$0xf]
    %v3133 = vunpack.c.l.b16 %v3125
    %v3134 = vunpack.c.l.b16 %v3126
    %v3135 = vunpack.c.l.b16 %v3127
    %v3136 = vunpack.c.l.b16 %v3128
    %v3137 = vpack.c.b16 %v3134, %v3133
    %v3138 = vpack.c.b16 %v3136, %v3135
    %3141 = vmatprep.subr.bf16.mxu0 0
    %3142 = vmatpush1.bf16.msra.mxu0 0
    %3143 = vmatprep.subr.bf16.mxu0 0
    %3144 = vmatpush1.bf16.msra.mxu0 0
    %3145 = vmatprep.subr.bf16.mxu0 0
    %3146 = vmatpush1.bf16.msra.mxu0 0
    %3147 = vmatprep.subr.bf16.mxu0 0
    %3148 = vmatpush1.bf16.msra.mxu0 0
    %3149 = vmatprep.subr.bf16.mxu0 0
    %3150 = vmatpush1.bf16.msra.mxu0 0
    %3151 = vmatprep.subr.bf16.mxu0 0
    %3152 = vmatpush1.bf16.msra.mxu0 0
    %3153 = vmatprep.subr.bf16.mxu0 0
    %3154 = vmatpush1.bf16.msra.mxu0 %v3138
    %3155 = vmatprep.subr.bf16.mxu0 0
    %3156 = vmatpush1.bf16.msra.mxu0 %v3137
    %3157 = vmatprep.subr.bf16.mxu0 0
    %3158 = vmatpush2.bf16.msra.mxu0 0
    %3159 = vmatprep.subr.bf16.mxu0 0
    %3160 = vmatpush2.bf16.msra.mxu0 0
    %3161 = vmatprep.subr.bf16.mxu0 0
    %3162 = vmatpush2.bf16.msra.mxu0 0
    %3163 = vmatprep.subr.bf16.mxu0 0
    %3164 = vmatpush2.bf16.msra.mxu0 0
    %3165 = vmatprep.subr.bf16.mxu0 0
    %3166 = vmatpush2.bf16.msra.mxu0 0
    %3167 = vmatprep.subr.bf16.mxu0 0
    %3168 = vmatpush2.bf16.msra.mxu0 0
    %3169 = vmatprep.subr.bf16.mxu0 0
    %3170 = vmatpush2.bf16.msra.mxu0 0
    %3171 = vmatprep.subr.bf16.mxu0 0
    %3172 = vmatpush2.bf16.msra.mxu0 0
    %3173 = vmatprep.mubr.bf16.mxu0 0
    %3174 = vmatmul.mubr.bf16.gmra.mxu0 %v2147
    %v3175 = vpop.f32.mrf.mxu0
    %v3176 = vadd.f32 0.0, %v3175
    %v3177 = vpop.f32.mrf.mxu0
    %v3178 = vpop.f32.mrf.mxu0
    %v3179 = vadd.f32 0.0, %v3178
    %v3180 = vpop.f32.mrf.mxu0
    %3181 = vdwg.mxu0
    %v3182 = vpack.c.bf16 %v3060, %v3060
    %v3183 = vpack.c.bf16 %v3063, %v3063
    %v3184 = vpack.c.bf16 %v3118, %v3118
    %v3185 = vpack.c.bf16 %v3121, %v3121
    %v3186 = vpack.c.bf16 %v3176, %v3176
    %v3187 = vpack.c.bf16 %v3179, %v3179
    %v3189 = vsel %vm285, %v3182, 0
    %v3192 = vsel %vm285, %v3184, 0
    %3194 = vmatprep.subr.bf16.mxu0 0
    %3195 = vmatpush1.bf16.xpose.msra.mxu0 0
    %3196 = vmatprep.subr.bf16.mxu0 0
    %3197 = vmatpush1.bf16.xpose.msra.mxu0 0
    %3198 = vmatprep.subr.bf16.mxu0 0
    %3199 = vmatpush1.bf16.xpose.msra.mxu0 0
    %3200 = vmatprep.subr.bf16.mxu0 0
    %3201 = vmatpush1.bf16.xpose.msra.mxu0 0
    %3202 = vmatprep.subr.bf16.mxu0 0
    %3203 = vmatpush1.bf16.xpose.msra.mxu0 0
    %3204 = vmatprep.subr.bf16.mxu0 0
    %3205 = vmatpush1.bf16.xpose.msra.mxu0 0
    %3206 = vmatprep.subr.bf16.mxu0 0
    %3207 = vmatpush1.bf16.xpose.msra.mxu0 0
    %3208 = vmatprep.subr.bf16.mxu0 0
    %3209 = vmatpush1.bf16.xpose.msra.mxu0 %v3192
    %3210 = vmatprep.subr.bf16.mxu0 0
    %3211 = vmatpush2.bf16.xpose.msra.mxu0 0
    %3212 = vmatprep.subr.bf16.mxu0 0
    %3213 = vmatpush2.bf16.xpose.msra.mxu0 0
    %3214 = vmatprep.subr.bf16.mxu0 0
    %3215 = vmatpush2.bf16.xpose.msra.mxu0 0
    %3216 = vmatprep.subr.bf16.mxu0 0
    %3217 = vmatpush2.bf16.xpose.msra.mxu0 0
    %3218 = vmatprep.subr.bf16.mxu0 0
    %3219 = vmatpush2.bf16.xpose.msra.mxu0 0
    %3220 = vmatprep.subr.bf16.mxu0 0
    %3221 = vmatpush2.bf16.xpose.msra.mxu0 0
    %3222 = vmatprep.subr.bf16.mxu0 0
    %3223 = vmatpush2.bf16.xpose.msra.mxu0 0
    %3224 = vmatprep.subr.bf16.mxu0 0
    %3225 = vmatpush2.bf16.xpose.msra.mxu0 0
    %3226 = vmatprep.mubr.bf16.mxu0 0
    %3227 = vmatmul.mubr.bf16.gmra.mxu0 %v3189
    %v3228 = vpop.f32.mrf.mxu0
    %v3229 = vadd.f32 0.0, %v3228
    %v3230 = vpop.f32.mrf.mxu0
    %v3231 = vpop.f32.mrf.mxu0
    %v3232 = vpop.f32.mrf.mxu0
    %3233 = vdwg.mxu0
    %v3235 = vsel %vm285, %v3183, 0
    %v3238 = vsel %vm285, %v3185, 0
    %3240 = vmatprep.subr.bf16.mxu0 0
    %3241 = vmatpush1.bf16.xpose.msra.mxu0 0
    %3242 = vmatprep.subr.bf16.mxu0 0
    %3243 = vmatpush1.bf16.xpose.msra.mxu0 0
    %3244 = vmatprep.subr.bf16.mxu0 0
    %3245 = vmatpush1.bf16.xpose.msra.mxu0 0
    %3246 = vmatprep.subr.bf16.mxu0 0
    %3247 = vmatpush1.bf16.xpose.msra.mxu0 0
    %3248 = vmatprep.subr.bf16.mxu0 0
    %3249 = vmatpush1.bf16.xpose.msra.mxu0 0
    %3250 = vmatprep.subr.bf16.mxu0 0
    %3251 = vmatpush1.bf16.xpose.msra.mxu0 0
    %3252 = vmatprep.subr.bf16.mxu0 0
    %3253 = vmatpush1.bf16.xpose.msra.mxu0 0
    %3254 = vmatprep.subr.bf16.mxu0 0
    %3255 = vmatpush1.bf16.xpose.msra.mxu0 %v3238
    %3256 = vmatprep.subr.bf16.mxu0 0
    %3257 = vmatpush2.bf16.xpose.msra.mxu0 0
    %3258 = vmatprep.subr.bf16.mxu0 0
    %3259 = vmatpush2.bf16.xpose.msra.mxu0 0
    %3260 = vmatprep.subr.bf16.mxu0 0
    %3261 = vmatpush2.bf16.xpose.msra.mxu0 0
    %3262 = vmatprep.subr.bf16.mxu0 0
    %3263 = vmatpush2.bf16.xpose.msra.mxu0 0
    %3264 = vmatprep.subr.bf16.mxu0 0
    %3265 = vmatpush2.bf16.xpose.msra.mxu0 0
    %3266 = vmatprep.subr.bf16.mxu0 0
    %3267 = vmatpush2.bf16.xpose.msra.mxu0 0
    %3268 = vmatprep.subr.bf16.mxu0 0
    %3269 = vmatpush2.bf16.xpose.msra.mxu0 0
    %3270 = vmatprep.subr.bf16.mxu0 0
    %3271 = vmatpush2.bf16.xpose.msra.mxu0 0
    %3272 = vmatprep.mubr.bf16.mxu0 0
    %3273 = vmatmul.mubr.bf16.gmra.mxu0 %v3235
    %v3274 = vpop.f32.mrf.mxu0
    %v3275 = vadd.f32 0.0, %v3274
    %v3276 = vpop.f32.mrf.mxu0
    %v3277 = vpop.f32.mrf.mxu0
    %v3278 = vpop.f32.mrf.mxu0
    %3279 = vdwg.mxu0
    %v3280 = vsel %vm285, %v3229, -inf
    %3281 = vmax.xlane.f32.xlu0 %v3280
    %v3282 = vpop.xlane.xlu0 %3281
    %v3283 = vsel %vm285, %v3275, -inf
    %3284 = vmax.xlane.f32.xlu0 %v3283
    %v3285 = vpop.xlane.xlu0 %3284
    %v3286 = vsub.f32 %v3229, %v3282
    %v3287 = vsub.f32 %v3275, %v3285
    %v3288 = vmul.f32 %v3286, 1.442695
    %v3289 = vpow.pop %v3288
    %v3290 = vmul.f32 %v3287, 1.442695
    %v3291 = vpow.pop %v3290
    %v3292 = vsel %vm285, %v3289, 0.0
    %3293 = vadd.xlane.f32.xlu0 %v3292
    %v3294 = vpop.xlane.xlu0 %3293
    %v3295 = vsel %vm285, %v3291, 0.0
    %3296 = vadd.xlane.f32.xlu0 %v3295
    %v3297 = vpop.xlane.xlu0 %3296
    %v3298 = vrcp.pop %v3294
    %v3299 = vrcp.pop %v3297
    %v3300 = vmul.f32 %v3289, %v3298
    %v3301 = vmul.f32 %v3291, %v3299
    %v3302 = vpack.c.bf16 %v3300, %v3300
    %v3303 = vpack.c.bf16 %v3301, %v3301
    %v3305 = vsel %vm285, %v3302, 0
    %v3308 = vsel %vm405, %v3186, 0
    %3310 = vmatprep.subr.bf16.mxu0 0
    %3311 = vmatpush1.bf16.msra.mxu0 0
    %3312 = vmatprep.subr.bf16.mxu0 0
    %3313 = vmatpush1.bf16.msra.mxu0 0
    %3314 = vmatprep.subr.bf16.mxu0 0
    %3315 = vmatpush1.bf16.msra.mxu0 0
    %3316 = vmatprep.subr.bf16.mxu0 0
    %3317 = vmatpush1.bf16.msra.mxu0 0
    %3318 = vmatprep.subr.bf16.mxu0 0
    %3319 = vmatpush1.bf16.msra.mxu0 0
    %3320 = vmatprep.subr.bf16.mxu0 0
    %3321 = vmatpush1.bf16.msra.mxu0 0
    %3322 = vmatprep.subr.bf16.mxu0 0
    %3323 = vmatpush1.bf16.msra.mxu0 0
    %3324 = vmatprep.subr.bf16.mxu0 0
    %3325 = vmatpush1.bf16.msra.mxu0 %v3308
    %3326 = vmatprep.subr.bf16.mxu0 0
    %3327 = vmatpush2.bf16.msra.mxu0 0
    %3328 = vmatprep.subr.bf16.mxu0 0
    %3329 = vmatpush2.bf16.msra.mxu0 0
    %3330 = vmatprep.subr.bf16.mxu0 0
    %3331 = vmatpush2.bf16.msra.mxu0 0
    %3332 = vmatprep.subr.bf16.mxu0 0
    %3333 = vmatpush2.bf16.msra.mxu0 0
    %3334 = vmatprep.subr.bf16.mxu0 0
    %3335 = vmatpush2.bf16.msra.mxu0 0
    %3336 = vmatprep.subr.bf16.mxu0 0
    %3337 = vmatpush2.bf16.msra.mxu0 0
    %3338 = vmatprep.subr.bf16.mxu0 0
    %3339 = vmatpush2.bf16.msra.mxu0 0
    %3340 = vmatprep.subr.bf16.mxu0 0
    %3341 = vmatpush2.bf16.msra.mxu0 0
    %3342 = vmatprep.mubr.bf16.mxu0 0
    %3343 = vmatmul.mubr.bf16.gmra.mxu0 %v3305
    %v3344 = vpop.f32.mrf.mxu0
    %v3345 = vadd.f32 0.0, %v3344
    %v3346 = vpop.f32.mrf.mxu0
    %v3347 = vpop.f32.mrf.mxu0
    %v3348 = vpop.f32.mrf.mxu0
    %3349 = vdwg.mxu0
    %v3351 = vsel %vm285, %v3303, 0
    %v3354 = vsel %vm405, %v3187, 0
    %3356 = vmatprep.subr.bf16.mxu0 0
    %3357 = vmatpush1.bf16.msra.mxu0 0
    %3358 = vmatprep.subr.bf16.mxu0 0
    %3359 = vmatpush1.bf16.msra.mxu0 0
    %3360 = vmatprep.subr.bf16.mxu0 0
    %3361 = vmatpush1.bf16.msra.mxu0 0
    %3362 = vmatprep.subr.bf16.mxu0 0
    %3363 = vmatpush1.bf16.msra.mxu0 0
    %3364 = vmatprep.subr.bf16.mxu0 0
    %3365 = vmatpush1.bf16.msra.mxu0 0
    %3366 = vmatprep.subr.bf16.mxu0 0
    %3367 = vmatpush1.bf16.msra.mxu0 0
    %3368 = vmatprep.subr.bf16.mxu0 0
    %3369 = vmatpush1.bf16.msra.mxu0 0
    %3370 = vmatprep.subr.bf16.mxu0 0
    %3371 = vmatpush1.bf16.msra.mxu0 %v3354
    %3372 = vmatprep.subr.bf16.mxu0 0
    %3373 = vmatpush2.bf16.msra.mxu0 0
    %3374 = vmatprep.subr.bf16.mxu0 0
    %3375 = vmatpush2.bf16.msra.mxu0 0
    %3376 = vmatprep.subr.bf16.mxu0 0
    %3377 = vmatpush2.bf16.msra.mxu0 0
    %3378 = vmatprep.subr.bf16.mxu0 0
    %3379 = vmatpush2.bf16.msra.mxu0 0
    %3380 = vmatprep.subr.bf16.mxu0 0
    %3381 = vmatpush2.bf16.msra.mxu0 0
    %3382 = vmatprep.subr.bf16.mxu0 0
    %3383 = vmatpush2.bf16.msra.mxu0 0
    %3384 = vmatprep.subr.bf16.mxu0 0
    %3385 = vmatpush2.bf16.msra.mxu0 0
    %3386 = vmatprep.subr.bf16.mxu0 0
    %3387 = vmatpush2.bf16.msra.mxu0 0
    %3388 = vmatprep.mubr.bf16.mxu0 0
    %3389 = vmatmul.mubr.bf16.gmra.mxu0 %v3351
    %v3390 = vpop.f32.mrf.mxu0
    %v3391 = vadd.f32 0.0, %v3390
    %v3392 = vpop.f32.mrf.mxu0
    %v3393 = vpop.f32.mrf.mxu0
    %v3394 = vpop.f32.mrf.mxu0
    %3395 = vdwg.mxu0
    %v3396 = vpack.c.bf16 %v3391, %v3345
    %s3397 = scalar_lea.vmem %s7, 24
    %v3398 = vld [vmem:[%s3397] sm:$0xf]
    %v3400 = vsel %vm285, %v3396, 0
    %v3403 = vsel %vm405, %v3398, 0
    %3405 = vmatprep.subr.bf16.mxu0 0
    %3406 = vmatpush1.bf16.msra.mxu0 0
    %3407 = vmatprep.subr.bf16.mxu0 0
    %3408 = vmatpush1.bf16.msra.mxu0 0
    %3409 = vmatprep.subr.bf16.mxu0 0
    %3410 = vmatpush1.bf16.msra.mxu0 0
    %3411 = vmatprep.subr.bf16.mxu0 0
    %3412 = vmatpush1.bf16.msra.mxu0 0
    %3413 = vmatprep.subr.bf16.mxu0 0
    %3414 = vmatpush1.bf16.msra.mxu0 0
    %3415 = vmatprep.subr.bf16.mxu0 0
    %3416 = vmatpush1.bf16.msra.mxu0 0
    %3417 = vmatprep.subr.bf16.mxu0 0
    %3418 = vmatpush1.bf16.msra.mxu0 0
    %3419 = vmatprep.subr.bf16.mxu0 0
    %3420 = vmatpush1.bf16.msra.mxu0 %v3403
    %3421 = vmatprep.subr.bf16.mxu0 0
    %3422 = vmatpush2.bf16.msra.mxu0 0
    %3423 = vmatprep.subr.bf16.mxu0 0
    %3424 = vmatpush2.bf16.msra.mxu0 0
    %3425 = vmatprep.subr.bf16.mxu0 0
    %3426 = vmatpush2.bf16.msra.mxu0 0
    %3427 = vmatprep.subr.bf16.mxu0 0
    %3428 = vmatpush2.bf16.msra.mxu0 0
    %3429 = vmatprep.subr.bf16.mxu0 0
    %3430 = vmatpush2.bf16.msra.mxu0 0
    %3431 = vmatprep.subr.bf16.mxu0 0
    %3432 = vmatpush2.bf16.msra.mxu0 0
    %3433 = vmatprep.subr.bf16.mxu0 0
    %3434 = vmatpush2.bf16.msra.mxu0 0
    %3435 = vmatprep.subr.bf16.mxu0 0
    %3436 = vmatpush2.bf16.msra.mxu0 0
    %3437 = vmatprep.mubr.bf16.mxu0 0
    %3438 = vmatmul.mubr.bf16.gmra.mxu0 %v3400
    %v3439 = vpop.f32.mrf.mxu0
    %v3440 = vadd.f32 0.0, %v3439
    %v3441 = vpop.f32.mrf.mxu0
    %v3442 = vpop.f32.mrf.mxu0
    %v3443 = vadd.f32 0.0, %v3442
    %v3444 = vpop.f32.mrf.mxu0
    %3445 = vdwg.mxu0
    %v3446 = vadd.f32 %v3002, %v3440
    %v3447 = vadd.f32 %v3005, %v3443
    %s3448 = scalar_lea.vmem %s4, 112
    %v3449 = vld [vmem:[%s3448] sm:$0xf]
    %v3450 = vld [vmem:[%s3448 + $0x4] sm:$0xf]
    %v3451 = vld [vmem:[%s3448 + $0x8] sm:$0xf]
    %v3452 = vld [vmem:[%s3448 + $0xc] sm:$0xf]
    %v3457 = vunpack.c.l.b16 %v3449
    %v3458 = vunpack.c.l.b16 %v3450
    %v3459 = vunpack.c.l.b16 %v3451
    %v3460 = vunpack.c.l.b16 %v3452
    %v3461 = vpack.c.b16 %v3458, %v3457
    %v3462 = vpack.c.b16 %v3460, %v3459
    %3465 = vmatprep.subr.bf16.mxu0 0
    %3466 = vmatpush1.bf16.msra.mxu0 0
    %3467 = vmatprep.subr.bf16.mxu0 0
    %3468 = vmatpush1.bf16.msra.mxu0 0
    %3469 = vmatprep.subr.bf16.mxu0 0
    %3470 = vmatpush1.bf16.msra.mxu0 0
    %3471 = vmatprep.subr.bf16.mxu0 0
    %3472 = vmatpush1.bf16.msra.mxu0 0
    %3473 = vmatprep.subr.bf16.mxu0 0
    %3474 = vmatpush1.bf16.msra.mxu0 0
    %3475 = vmatprep.subr.bf16.mxu0 0
    %3476 = vmatpush1.bf16.msra.mxu0 0
    %3477 = vmatprep.subr.bf16.mxu0 0
    %3478 = vmatpush1.bf16.msra.mxu0 %v3462
    %3479 = vmatprep.subr.bf16.mxu0 0
    %3480 = vmatpush1.bf16.msra.mxu0 %v3461
    %3481 = vmatprep.subr.bf16.mxu0 0
    %3482 = vmatpush2.bf16.msra.mxu0 0
    %3483 = vmatprep.subr.bf16.mxu0 0
    %3484 = vmatpush2.bf16.msra.mxu0 0
    %3485 = vmatprep.subr.bf16.mxu0 0
    %3486 = vmatpush2.bf16.msra.mxu0 0
    %3487 = vmatprep.subr.bf16.mxu0 0
    %3488 = vmatpush2.bf16.msra.mxu0 0
    %3489 = vmatprep.subr.bf16.mxu0 0
    %3490 = vmatpush2.bf16.msra.mxu0 0
    %3491 = vmatprep.subr.bf16.mxu0 0
    %3492 = vmatpush2.bf16.msra.mxu0 0
    %3493 = vmatprep.subr.bf16.mxu0 0
    %3494 = vmatpush2.bf16.msra.mxu0 0
    %3495 = vmatprep.subr.bf16.mxu0 0
    %3496 = vmatpush2.bf16.msra.mxu0 0
    %3497 = vmatprep.mubr.bf16.mxu0 0
    %3498 = vmatmul.mubr.bf16.gmra.mxu0 %v2147
    %v3499 = vpop.f32.mrf.mxu0
    %v3500 = vadd.f32 0.0, %v3499
    %v3501 = vpop.f32.mrf.mxu0
    %v3502 = vpop.f32.mrf.mxu0
    %v3503 = vadd.f32 0.0, %v3502
    %v3504 = vpop.f32.mrf.mxu0
    %3505 = vdwg.mxu0
    %s3506 = scalar_lea.vmem %s5, 112
    %v3507 = vld [vmem:[%s3506] sm:$0xf]
    %v3508 = vld [vmem:[%s3506 + $0x4] sm:$0xf]
    %v3509 = vld [vmem:[%s3506 + $0x8] sm:$0xf]
    %v3510 = vld [vmem:[%s3506 + $0xc] sm:$0xf]
    %v3515 = vunpack.c.l.b16 %v3507
    %v3516 = vunpack.c.l.b16 %v3508
    %v3517 = vunpack.c.l.b16 %v3509
    %v3518 = vunpack.c.l.b16 %v3510
    %v3519 = vpack.c.b16 %v3516, %v3515
    %v3520 = vpack.c.b16 %v3518, %v3517
    %3523 = vmatprep.subr.bf16.mxu0 0
    %3524 = vmatpush1.bf16.msra.mxu0 0
    %3525 = vmatprep.subr.bf16.mxu0 0
    %3526 = vmatpush1.bf16.msra.mxu0 0
    %3527 = vmatprep.subr.bf16.mxu0 0
    %3528 = vmatpush1.bf16.msra.mxu0 0
    %3529 = vmatprep.subr.bf16.mxu0 0
    %3530 = vmatpush1.bf16.msra.mxu0 0
    %3531 = vmatprep.subr.bf16.mxu0 0
    %3532 = vmatpush1.bf16.msra.mxu0 0
    %3533 = vmatprep.subr.bf16.mxu0 0
    %3534 = vmatpush1.bf16.msra.mxu0 0
    %3535 = vmatprep.subr.bf16.mxu0 0
    %3536 = vmatpush1.bf16.msra.mxu0 %v3520
    %3537 = vmatprep.subr.bf16.mxu0 0
    %3538 = vmatpush1.bf16.msra.mxu0 %v3519
    %3539 = vmatprep.subr.bf16.mxu0 0
    %3540 = vmatpush2.bf16.msra.mxu0 0
    %3541 = vmatprep.subr.bf16.mxu0 0
    %3542 = vmatpush2.bf16.msra.mxu0 0
    %3543 = vmatprep.subr.bf16.mxu0 0
    %3544 = vmatpush2.bf16.msra.mxu0 0
    %3545 = vmatprep.subr.bf16.mxu0 0
    %3546 = vmatpush2.bf16.msra.mxu0 0
    %3547 = vmatprep.subr.bf16.mxu0 0
    %3548 = vmatpush2.bf16.msra.mxu0 0
    %3549 = vmatprep.subr.bf16.mxu0 0
    %3550 = vmatpush2.bf16.msra.mxu0 0
    %3551 = vmatprep.subr.bf16.mxu0 0
    %3552 = vmatpush2.bf16.msra.mxu0 0
    %3553 = vmatprep.subr.bf16.mxu0 0
    %3554 = vmatpush2.bf16.msra.mxu0 0
    %3555 = vmatprep.mubr.bf16.mxu0 0
    %3556 = vmatmul.mubr.bf16.gmra.mxu0 %v2147
    %v3557 = vpop.f32.mrf.mxu0
    %v3558 = vadd.f32 0.0, %v3557
    %v3559 = vpop.f32.mrf.mxu0
    %v3560 = vpop.f32.mrf.mxu0
    %v3561 = vadd.f32 0.0, %v3560
    %v3562 = vpop.f32.mrf.mxu0
    %3563 = vdwg.mxu0
    %s3564 = scalar_lea.vmem %s6, 112
    %v3565 = vld [vmem:[%s3564] sm:$0xf]
    %v3566 = vld [vmem:[%s3564 + $0x4] sm:$0xf]
    %v3567 = vld [vmem:[%s3564 + $0x8] sm:$0xf]
    %v3568 = vld [vmem:[%s3564 + $0xc] sm:$0xf]
    %v3573 = vunpack.c.l.b16 %v3565
    %v3574 = vunpack.c.l.b16 %v3566
    %v3575 = vunpack.c.l.b16 %v3567
    %v3576 = vunpack.c.l.b16 %v3568
    %v3577 = vpack.c.b16 %v3574, %v3573
    %v3578 = vpack.c.b16 %v3576, %v3575
    %3581 = vmatprep.subr.bf16.mxu0 0
    %3582 = vmatpush1.bf16.msra.mxu0 0
    %3583 = vmatprep.subr.bf16.mxu0 0
    %3584 = vmatpush1.bf16.msra.mxu0 0
    %3585 = vmatprep.subr.bf16.mxu0 0
    %3586 = vmatpush1.bf16.msra.mxu0 0
    %3587 = vmatprep.subr.bf16.mxu0 0
    %3588 = vmatpush1.bf16.msra.mxu0 0
    %3589 = vmatprep.subr.bf16.mxu0 0
    %3590 = vmatpush1.bf16.msra.mxu0 0
    %3591 = vmatprep.subr.bf16.mxu0 0
    %3592 = vmatpush1.bf16.msra.mxu0 0
    %3593 = vmatprep.subr.bf16.mxu0 0
    %3594 = vmatpush1.bf16.msra.mxu0 %v3578
    %3595 = vmatprep.subr.bf16.mxu0 0
    %3596 = vmatpush1.bf16.msra.mxu0 %v3577
    %3597 = vmatprep.subr.bf16.mxu0 0
    %3598 = vmatpush2.bf16.msra.mxu0 0
    %3599 = vmatprep.subr.bf16.mxu0 0
    %3600 = vmatpush2.bf16.msra.mxu0 0
    %3601 = vmatprep.subr.bf16.mxu0 0
    %3602 = vmatpush2.bf16.msra.mxu0 0
    %3603 = vmatprep.subr.bf16.mxu0 0
    %3604 = vmatpush2.bf16.msra.mxu0 0
    %3605 = vmatprep.subr.bf16.mxu0 0
    %3606 = vmatpush2.bf16.msra.mxu0 0
    %3607 = vmatprep.subr.bf16.mxu0 0
    %3608 = vmatpush2.bf16.msra.mxu0 0
    %3609 = vmatprep.subr.bf16.mxu0 0
    %3610 = vmatpush2.bf16.msra.mxu0 0
    %3611 = vmatprep.subr.bf16.mxu0 0
    %3612 = vmatpush2.bf16.msra.mxu0 0
    %3613 = vmatprep.mubr.bf16.mxu0 0
    %3614 = vmatmul.mubr.bf16.gmra.mxu0 %v2147
    %v3615 = vpop.f32.mrf.mxu0
    %v3616 = vadd.f32 0.0, %v3615
    %v3617 = vpop.f32.mrf.mxu0
    %v3618 = vpop.f32.mrf.mxu0
    %v3619 = vadd.f32 0.0, %v3618
    %v3620 = vpop.f32.mrf.mxu0
    %3621 = vdwg.mxu0
    %v3622 = vpack.c.bf16 %v3500, %v3500
    %v3623 = vpack.c.bf16 %v3503, %v3503
    %v3624 = vpack.c.bf16 %v3558, %v3558
    %v3625 = vpack.c.bf16 %v3561, %v3561
    %v3626 = vpack.c.bf16 %v3616, %v3616
    %v3627 = vpack.c.bf16 %v3619, %v3619
    %v3629 = vsel %vm285, %v3622, 0
    %v3632 = vsel %vm285, %v3624, 0
    %3634 = vmatprep.subr.bf16.mxu0 0
    %3635 = vmatpush1.bf16.xpose.msra.mxu0 0
    %3636 = vmatprep.subr.bf16.mxu0 0
    %3637 = vmatpush1.bf16.xpose.msra.mxu0 0
    %3638 = vmatprep.subr.bf16.mxu0 0
    %3639 = vmatpush1.bf16.xpose.msra.mxu0 0
    %3640 = vmatprep.subr.bf16.mxu0 0
    %3641 = vmatpush1.bf16.xpose.msra.mxu0 0
    %3642 = vmatprep.subr.bf16.mxu0 0
    %3643 = vmatpush1.bf16.xpose.msra.mxu0 0
    %3644 = vmatprep.subr.bf16.mxu0 0
    %3645 = vmatpush1.bf16.xpose.msra.mxu0 0
    %3646 = vmatprep.subr.bf16.mxu0 0
    %3647 = vmatpush1.bf16.xpose.msra.mxu0 0
    %3648 = vmatprep.subr.bf16.mxu0 0
    %3649 = vmatpush1.bf16.xpose.msra.mxu0 %v3632
    %3650 = vmatprep.subr.bf16.mxu0 0
    %3651 = vmatpush2.bf16.xpose.msra.mxu0 0
    %3652 = vmatprep.subr.bf16.mxu0 0
    %3653 = vmatpush2.bf16.xpose.msra.mxu0 0
    %3654 = vmatprep.subr.bf16.mxu0 0
    %3655 = vmatpush2.bf16.xpose.msra.mxu0 0
    %3656 = vmatprep.subr.bf16.mxu0 0
    %3657 = vmatpush2.bf16.xpose.msra.mxu0 0
    %3658 = vmatprep.subr.bf16.mxu0 0
    %3659 = vmatpush2.bf16.xpose.msra.mxu0 0
    %3660 = vmatprep.subr.bf16.mxu0 0
    %3661 = vmatpush2.bf16.xpose.msra.mxu0 0
    %3662 = vmatprep.subr.bf16.mxu0 0
    %3663 = vmatpush2.bf16.xpose.msra.mxu0 0
    %3664 = vmatprep.subr.bf16.mxu0 0
    %3665 = vmatpush2.bf16.xpose.msra.mxu0 0
    %3666 = vmatprep.mubr.bf16.mxu0 0
    %3667 = vmatmul.mubr.bf16.gmra.mxu0 %v3629
    %v3668 = vpop.f32.mrf.mxu0
    %v3669 = vadd.f32 0.0, %v3668
    %v3670 = vpop.f32.mrf.mxu0
    %v3671 = vpop.f32.mrf.mxu0
    %v3672 = vpop.f32.mrf.mxu0
    %3673 = vdwg.mxu0
    %v3675 = vsel %vm285, %v3623, 0
    %v3678 = vsel %vm285, %v3625, 0
    %3680 = vmatprep.subr.bf16.mxu0 0
    %3681 = vmatpush1.bf16.xpose.msra.mxu0 0
    %3682 = vmatprep.subr.bf16.mxu0 0
    %3683 = vmatpush1.bf16.xpose.msra.mxu0 0
    %3684 = vmatprep.subr.bf16.mxu0 0
    %3685 = vmatpush1.bf16.xpose.msra.mxu0 0
    %3686 = vmatprep.subr.bf16.mxu0 0
    %3687 = vmatpush1.bf16.xpose.msra.mxu0 0
    %3688 = vmatprep.subr.bf16.mxu0 0
    %3689 = vmatpush1.bf16.xpose.msra.mxu0 0
    %3690 = vmatprep.subr.bf16.mxu0 0
    %3691 = vmatpush1.bf16.xpose.msra.mxu0 0
    %3692 = vmatprep.subr.bf16.mxu0 0
    %3693 = vmatpush1.bf16.xpose.msra.mxu0 0
    %3694 = vmatprep.subr.bf16.mxu0 0
    %3695 = vmatpush1.bf16.xpose.msra.mxu0 %v3678
    %3696 = vmatprep.subr.bf16.mxu0 0
    %3697 = vmatpush2.bf16.xpose.msra.mxu0 0
    %3698 = vmatprep.subr.bf16.mxu0 0
    %3699 = vmatpush2.bf16.xpose.msra.mxu0 0
    %3700 = vmatprep.subr.bf16.mxu0 0
    %3701 = vmatpush2.bf16.xpose.msra.mxu0 0
    %3702 = vmatprep.subr.bf16.mxu0 0
    %3703 = vmatpush2.bf16.xpose.msra.mxu0 0
    %3704 = vmatprep.subr.bf16.mxu0 0
    %3705 = vmatpush2.bf16.xpose.msra.mxu0 0
    %3706 = vmatprep.subr.bf16.mxu0 0
    %3707 = vmatpush2.bf16.xpose.msra.mxu0 0
    %3708 = vmatprep.subr.bf16.mxu0 0
    %3709 = vmatpush2.bf16.xpose.msra.mxu0 0
    %3710 = vmatprep.subr.bf16.mxu0 0
    %3711 = vmatpush2.bf16.xpose.msra.mxu0 0
    %3712 = vmatprep.mubr.bf16.mxu0 0
    %3713 = vmatmul.mubr.bf16.gmra.mxu0 %v3675
    %v3714 = vpop.f32.mrf.mxu0
    %v3715 = vadd.f32 0.0, %v3714
    %v3716 = vpop.f32.mrf.mxu0
    %v3717 = vpop.f32.mrf.mxu0
    %v3718 = vpop.f32.mrf.mxu0
    %3719 = vdwg.mxu0
    %v3720 = vsel %vm285, %v3669, -inf
    %3721 = vmax.xlane.f32.xlu0 %v3720
    %v3722 = vpop.xlane.xlu0 %3721
    %v3723 = vsel %vm285, %v3715, -inf
    %3724 = vmax.xlane.f32.xlu0 %v3723
    %v3725 = vpop.xlane.xlu0 %3724
    %v3726 = vsub.f32 %v3669, %v3722
    %v3727 = vsub.f32 %v3715, %v3725
    %v3728 = vmul.f32 %v3726, 1.442695
    %v3729 = vpow.pop %v3728
    %v3730 = vmul.f32 %v3727, 1.442695
    %v3731 = vpow.pop %v3730
    %v3732 = vsel %vm285, %v3729, 0.0
    %3733 = vadd.xlane.f32.xlu0 %v3732
    %v3734 = vpop.xlane.xlu0 %3733
    %v3735 = vsel %vm285, %v3731, 0.0
    %3736 = vadd.xlane.f32.xlu0 %v3735
    %v3737 = vpop.xlane.xlu0 %3736
    %v3738 = vrcp.pop %v3734
    %v3739 = vrcp.pop %v3737
    %v3740 = vmul.f32 %v3729, %v3738
    %v3741 = vmul.f32 %v3731, %v3739
    %v3742 = vpack.c.bf16 %v3740, %v3740
    %v3743 = vpack.c.bf16 %v3741, %v3741
    %v3745 = vsel %vm285, %v3742, 0
    %v3748 = vsel %vm405, %v3626, 0
    %3750 = vmatprep.subr.bf16.mxu0 0
    %3751 = vmatpush1.bf16.msra.mxu0 0
    %3752 = vmatprep.subr.bf16.mxu0 0
    %3753 = vmatpush1.bf16.msra.mxu0 0
    %3754 = vmatprep.subr.bf16.mxu0 0
    %3755 = vmatpush1.bf16.msra.mxu0 0
    %3756 = vmatprep.subr.bf16.mxu0 0
    %3757 = vmatpush1.bf16.msra.mxu0 0
    %3758 = vmatprep.subr.bf16.mxu0 0
    %3759 = vmatpush1.bf16.msra.mxu0 0
    %3760 = vmatprep.subr.bf16.mxu0 0
    %3761 = vmatpush1.bf16.msra.mxu0 0
    %3762 = vmatprep.subr.bf16.mxu0 0
    %3763 = vmatpush1.bf16.msra.mxu0 0
    %3764 = vmatprep.subr.bf16.mxu0 0
    %3765 = vmatpush1.bf16.msra.mxu0 %v3748
    %3766 = vmatprep.subr.bf16.mxu0 0
    %3767 = vmatpush2.bf16.msra.mxu0 0
    %3768 = vmatprep.subr.bf16.mxu0 0
    %3769 = vmatpush2.bf16.msra.mxu0 0
    %3770 = vmatprep.subr.bf16.mxu0 0
    %3771 = vmatpush2.bf16.msra.mxu0 0
    %3772 = vmatprep.subr.bf16.mxu0 0
    %3773 = vmatpush2.bf16.msra.mxu0 0
    %3774 = vmatprep.subr.bf16.mxu0 0
    %3775 = vmatpush2.bf16.msra.mxu0 0
    %3776 = vmatprep.subr.bf16.mxu0 0
    %3777 = vmatpush2.bf16.msra.mxu0 0
    %3778 = vmatprep.subr.bf16.mxu0 0
    %3779 = vmatpush2.bf16.msra.mxu0 0
    %3780 = vmatprep.subr.bf16.mxu0 0
    %3781 = vmatpush2.bf16.msra.mxu0 0
    %3782 = vmatprep.mubr.bf16.mxu0 0
    %3783 = vmatmul.mubr.bf16.gmra.mxu0 %v3745
    %v3784 = vpop.f32.mrf.mxu0
    %v3785 = vadd.f32 0.0, %v3784
    %v3786 = vpop.f32.mrf.mxu0
    %v3787 = vpop.f32.mrf.mxu0
    %v3788 = vpop.f32.mrf.mxu0
    %3789 = vdwg.mxu0
    %v3791 = vsel %vm285, %v3743, 0
    %v3794 = vsel %vm405, %v3627, 0
    %3796 = vmatprep.subr.bf16.mxu0 0
    %3797 = vmatpush1.bf16.msra.mxu0 0
    %3798 = vmatprep.subr.bf16.mxu0 0
    %3799 = vmatpush1.bf16.msra.mxu0 0
    %3800 = vmatprep.subr.bf16.mxu0 0
    %3801 = vmatpush1.bf16.msra.mxu0 0
    %3802 = vmatprep.subr.bf16.mxu0 0
    %3803 = vmatpush1.bf16.msra.mxu0 0
    %3804 = vmatprep.subr.bf16.mxu0 0
    %3805 = vmatpush1.bf16.msra.mxu0 0
    %3806 = vmatprep.subr.bf16.mxu0 0
    %3807 = vmatpush1.bf16.msra.mxu0 0
    %3808 = vmatprep.subr.bf16.mxu0 0
    %3809 = vmatpush1.bf16.msra.mxu0 0
    %3810 = vmatprep.subr.bf16.mxu0 0
    %3811 = vmatpush1.bf16.msra.mxu0 %v3794
    %3812 = vmatprep.subr.bf16.mxu0 0
    %3813 = vmatpush2.bf16.msra.mxu0 0
    %3814 = vmatprep.subr.bf16.mxu0 0
    %3815 = vmatpush2.bf16.msra.mxu0 0
    %3816 = vmatprep.subr.bf16.mxu0 0
    %3817 = vmatpush2.bf16.msra.mxu0 0
    %3818 = vmatprep.subr.bf16.mxu0 0
    %3819 = vmatpush2.bf16.msra.mxu0 0
    %3820 = vmatprep.subr.bf16.mxu0 0
    %3821 = vmatpush2.bf16.msra.mxu0 0
    %3822 = vmatprep.subr.bf16.mxu0 0
    %3823 = vmatpush2.bf16.msra.mxu0 0
    %3824 = vmatprep.subr.bf16.mxu0 0
    %3825 = vmatpush2.bf16.msra.mxu0 0
    %3826 = vmatprep.subr.bf16.mxu0 0
    %3827 = vmatpush2.bf16.msra.mxu0 0
    %3828 = vmatprep.mubr.bf16.mxu0 0
    %3829 = vmatmul.mubr.bf16.gmra.mxu0 %v3791
    %v3830 = vpop.f32.mrf.mxu0
    %v3831 = vadd.f32 0.0, %v3830
    %v3832 = vpop.f32.mrf.mxu0
    %v3833 = vpop.f32.mrf.mxu0
    %v3834 = vpop.f32.mrf.mxu0
    %3835 = vdwg.mxu0
    %v3836 = vpack.c.bf16 %v3831, %v3785
    %s3837 = scalar_lea.vmem %s7, 28
    %v3838 = vld [vmem:[%s3837] sm:$0xf]
    %v3840 = vsel %vm285, %v3836, 0
    %v3843 = vsel %vm405, %v3838, 0
    %3845 = vmatprep.subr.bf16.mxu0 0
    %3846 = vmatpush1.bf16.msra.mxu0 0
    %3847 = vmatprep.subr.bf16.mxu0 0
    %3848 = vmatpush1.bf16.msra.mxu0 0
    %3849 = vmatprep.subr.bf16.mxu0 0
    %3850 = vmatpush1.bf16.msra.mxu0 0
    %3851 = vmatprep.subr.bf16.mxu0 0
    %3852 = vmatpush1.bf16.msra.mxu0 0
    %3853 = vmatprep.subr.bf16.mxu0 0
    %3854 = vmatpush1.bf16.msra.mxu0 0
    %3855 = vmatprep.subr.bf16.mxu0 0
    %3856 = vmatpush1.bf16.msra.mxu0 0
    %3857 = vmatprep.subr.bf16.mxu0 0
    %3858 = vmatpush1.bf16.msra.mxu0 0
    %3859 = vmatprep.subr.bf16.mxu0 0
    %3860 = vmatpush1.bf16.msra.mxu0 %v3843
    %3861 = vmatprep.subr.bf16.mxu0 0
    %3862 = vmatpush2.bf16.msra.mxu0 0
    %3863 = vmatprep.subr.bf16.mxu0 0
    %3864 = vmatpush2.bf16.msra.mxu0 0
    %3865 = vmatprep.subr.bf16.mxu0 0
    %3866 = vmatpush2.bf16.msra.mxu0 0
    %3867 = vmatprep.subr.bf16.mxu0 0
    %3868 = vmatpush2.bf16.msra.mxu0 0
    %3869 = vmatprep.subr.bf16.mxu0 0
    %3870 = vmatpush2.bf16.msra.mxu0 0
    %3871 = vmatprep.subr.bf16.mxu0 0
    %3872 = vmatpush2.bf16.msra.mxu0 0
    %3873 = vmatprep.subr.bf16.mxu0 0
    %3874 = vmatpush2.bf16.msra.mxu0 0
    %3875 = vmatprep.subr.bf16.mxu0 0
    %3876 = vmatpush2.bf16.msra.mxu0 0
    %3877 = vmatprep.mubr.bf16.mxu0 0
    %3878 = vmatmul.mubr.bf16.gmra.mxu0 %v3840
    %v3879 = vpop.f32.mrf.mxu0
    %v3880 = vadd.f32 0.0, %v3879
    %v3881 = vpop.f32.mrf.mxu0
    %v3882 = vpop.f32.mrf.mxu0
    %v3883 = vadd.f32 0.0, %v3882
    %v3884 = vpop.f32.mrf.mxu0
    %3885 = vdwg.mxu0
    %v3886 = vadd.f32 %v3446, %v3880
    %v3887 = vadd.f32 %v3447, %v3883
    %v3888 = vadd.f32 %v2080, %v3886
    %v3889 = vadd.f32 %v2081, %v3887
    %s3890 = scalar_lea.vmem %s8, 1
    %v3891 = vld [vmem:[%s3890] sm:$0x1]
    %v3893 = vlaneseq
    %v3894 = vshrl.u32 %v3893, 7
    %v3895 = vsub.s32 0, %v3894
    %v3896 = vrot.slane %v3891, %v3895
    %v3898 = vadd.f32 %v3888, %v3896
    %v3899 = vadd.f32 %v3889, %v3896
    %s3900 = scalar_lea.vmem %s9, 1
    %v3901 = vld [vmem:[%s3900] sm:$0x1]
    %s3902 = scalar_lea.vmem %s10, 1
    %v3903 = vld [vmem:[%s3902] sm:$0x1]
    %v3904 = vsel %vm60, %v3898, 0.0
    %3905 = vadd.xlane.f32.xlu0 %v3904
    %v3906 = vpop.xlane.xlu0 %3905
    %v3907 = vsel %vm60, %v3899, 0.0
    %3908 = vadd.xlane.f32.xlu0 %v3907
    %v3909 = vpop.xlane.xlu0 %3908
    %v3910 = vmul.f32 %v3906, %v67
    %v3911 = vmul.f32 %v3909, %v67
    %v3912 = vsub.f32 %v3898, %v3910
    %v3913 = vsub.f32 %v3899, %v3911
    %v3914 = vmul.f32 %v3912, %v3912
    %v3915 = vmul.f32 %v3913, %v3913
    %v3916 = vsel %vm60, %v3914, 0.0
    %3917 = vadd.xlane.f32.xlu0 %v3916
    %v3918 = vpop.xlane.xlu0 %3917
    %v3919 = vsel %vm60, %v3915, 0.0
    %3920 = vadd.xlane.f32.xlu0 %v3919
    %v3921 = vpop.xlane.xlu0 %3920
    %v3922 = vmul.f32 %v3918, %v67
    %v3923 = vmul.f32 %v3921, %v67
    %v3924 = vadd.f32 %v3922, 1e-05
    %v3925 = vadd.f32 %v3923, 1e-05
    %v3926 = vrsqrt.pop %v3924
    %v3927 = vrsqrt.pop %v3925
    %v3928 = vmul.f32 %v3912, %v3926
    %v3929 = vmul.f32 %v3913, %v3927
    %v3931 = vlaneseq
    %v3932 = vshrl.u32 %v3931, 7
    %v3933 = vsub.s32 0, %v3932
    %v3934 = vrot.slane %v3901, %v3933
    %v3936 = vmul.f32 %v3928, %v3934
    %v3937 = vmul.f32 %v3929, %v3934
    %v3939 = vlaneseq
    %v3940 = vshrl.u32 %v3939, 7
    %v3941 = vsub.s32 0, %v3940
    %v3942 = vrot.slane %v3903, %v3941
    %v3944 = vadd.f32 %v3936, %v3942
    %v3945 = vadd.f32 %v3937, %v3942
    %v3946 = vpack.c.bf16 %v3945, %v3944
    %s3947 = scalar_lea.vmem %s11, 16
    %v3948 = vld [vmem:[%s3947] sm:$0xf]
    %v3949 = vld [vmem:[%s3947 + $0x4] sm:$0xf]
    %v3950 = vld [vmem:[%s3947 + $0x8] sm:$0xf]
    %v3951 = vld [vmem:[%s3947 + $0xc] sm:$0xf]
    %s3952 = scalar_lea.vmem %s12, 1
    %v3953 = vld [vmem:[%s3952] sm:$0x1]
    %v3955 = vlaneseq
    %v3956 = vshrl.u32 %v3955, 7
    %v3957 = vsub.s32 0, %v3956
    %v3958 = vrot.slane %v3953, %v3957
    %v3964 = vunpack.c.l.b16 %v3948
    %v3965 = vunpack.c.l.b16 %v3949
    %v3966 = vunpack.c.l.b16 %v3950
    %v3967 = vunpack.c.l.b16 %v3951
    %v3968 = vpack.c.b16 %v3965, %v3964
    %v3969 = vpack.c.b16 %v3967, %v3966
    %v3973 = vsel %vm60, %v3946, 0
    %3975 = vmatprep.subr.bf16.mxu0 0
    %3976 = vmatpush1.bf16.msra.mxu0 0
    %3977 = vmatprep.subr.bf16.mxu0 0
    %3978 = vmatpush1.bf16.msra.mxu0 0
    %3979 = vmatprep.subr.bf16.mxu0 0
    %3980 = vmatpush1.bf16.msra.mxu0 0
    %3981 = vmatprep.subr.bf16.mxu0 0
    %3982 = vmatpush1.bf16.msra.mxu0 0
    %3983 = vmatprep.subr.bf16.mxu0 0
    %3984 = vmatpush1.bf16.msra.mxu0 0
    %3985 = vmatprep.subr.bf16.mxu0 0
    %3986 = vmatpush1.bf16.msra.mxu0 0
    %3987 = vmatprep.subr.bf16.mxu0 0
    %3988 = vmatpush1.bf16.msra.mxu0 %v3969
    %3989 = vmatprep.subr.bf16.mxu0 0
    %3990 = vmatpush1.bf16.msra.mxu0 %v3968
    %3991 = vmatprep.subr.bf16.mxu0 0
    %3992 = vmatpush2.bf16.msra.mxu0 0
    %3993 = vmatprep.subr.bf16.mxu0 0
    %3994 = vmatpush2.bf16.msra.mxu0 0
    %3995 = vmatprep.subr.bf16.mxu0 0
    %3996 = vmatpush2.bf16.msra.mxu0 0
    %3997 = vmatprep.subr.bf16.mxu0 0
    %3998 = vmatpush2.bf16.msra.mxu0 0
    %3999 = vmatprep.subr.bf16.mxu0 0
    %4000 = vmatpush2.bf16.msra.mxu0 0
    %4001 = vmatprep.subr.bf16.mxu0 0
    %4002 = vmatpush2.bf16.msra.mxu0 0
    %4003 = vmatprep.subr.bf16.mxu0 0
    %4004 = vmatpush2.bf16.msra.mxu0 0
    %4005 = vmatprep.subr.bf16.mxu0 0
    %4006 = vmatpush2.bf16.msra.mxu0 0
    %4007 = vmatprep.mubr.bf16.mxu0 0
    %4008 = vmatmul.mubr.bf16.gmra.mxu0 %v3973
    %v4009 = vpop.f32.mrf.mxu0
    %v4010 = vadd.f32 %v3958, %v4009
    %v4011 = vpop.f32.mrf.mxu0
    %v4012 = vpop.f32.mrf.mxu0
    %v4013 = vadd.f32 %v3958, %v4012
    %v4014 = vpop.f32.mrf.mxu0
    %4015 = vdwg.mxu0
    %v4016 = vmul.f32 %v4010, 0.5
    %v4017 = vmul.f32 %v4013, 0.5
    %v4018 = vmul.f32 %v4010, 0.70710677
    %v4019 = vmul.f32 %v4013, 0.70710677
    %v4020 = verf.f32.pop %v4018
    %v4021 = verf.f32.pop %v4019
    %v4022 = vadd.f32 %v4020, 1.0
    %v4023 = vadd.f32 %v4021, 1.0
    %v4024 = vmul.f32 %v4016, %v4022
    %v4025 = vmul.f32 %v4017, %v4023
    %v4026 = vpack.c.bf16 %v4025, %v4024
    %s4027 = scalar_lea.vmem %s13, 32
    %v4028 = vld [vmem:[%s4027] sm:$0xf]
    %v4029 = vld [vmem:[%s4027 + $0x4] sm:$0xf]
    %v4030 = vld [vmem:[%s4027 + $0x8] sm:$0xf]
    %v4031 = vld [vmem:[%s4027 + $0xc] sm:$0xf]
    %v4032 = vld [vmem:[%s4027 + $0x10] sm:$0xf]
    %v4033 = vld [vmem:[%s4027 + $0x14] sm:$0xf]
    %v4034 = vld [vmem:[%s4027 + $0x18] sm:$0xf]
    %v4035 = vld [vmem:[%s4027 + $0x1c] sm:$0xf]
    %s4036 = scalar_lea.vmem %s14, 1
    %v4037 = vld [vmem:[%s4036] sm:$0x1]
    %v4039 = vlaneseq
    %v4040 = vshrl.u32 %v4039, 7
    %v4041 = vsub.s32 0, %v4040
    %v4042 = vrot.slane %v4037, %v4041
    %v4052 = vunpack.c.l.b16 %v4028
    %v4053 = vunpack.c.l.b16 %v4029
    %v4054 = vunpack.c.l.b16 %v4030
    %v4055 = vunpack.c.l.b16 %v4031
    %v4056 = vunpack.c.l.b16 %v4032
    %v4057 = vunpack.c.l.b16 %v4033
    %v4058 = vunpack.c.l.b16 %v4034
    %v4059 = vunpack.c.l.b16 %v4035
    %v4060 = vpack.c.b16 %v4053, %v4052
    %v4061 = vpack.c.b16 %v4055, %v4054
    %v4062 = vpack.c.b16 %v4057, %v4056
    %v4063 = vpack.c.b16 %v4059, %v4058
    %v4069 = vsel %vm2035, %v4026, 0
    %4071 = vmatprep.subr.bf16.mxu0 0
    %4072 = vmatpush1.bf16.msra.mxu0 0
    %4073 = vmatprep.subr.bf16.mxu0 0
    %4074 = vmatpush1.bf16.msra.mxu0 0
    %4075 = vmatprep.subr.bf16.mxu0 0
    %4076 = vmatpush1.bf16.msra.mxu0 0
    %4077 = vmatprep.subr.bf16.mxu0 0
    %4078 = vmatpush1.bf16.msra.mxu0 0
    %4079 = vmatprep.subr.bf16.mxu0 0
    %4080 = vmatpush1.bf16.msra.mxu0 %v4063
    %4081 = vmatprep.subr.bf16.mxu0 0
    %4082 = vmatpush1.bf16.msra.mxu0 %v4062
    %4083 = vmatprep.subr.bf16.mxu0 0
    %4084 = vmatpush1.bf16.msra.mxu0 %v4061
    %4085 = vmatprep.subr.bf16.mxu0 0
    %4086 = vmatpush1.bf16.msra.mxu0 %v4060
    %4087 = vmatprep.subr.bf16.mxu0 0
    %4088 = vmatpush2.bf16.msra.mxu0 0
    %4089 = vmatprep.subr.bf16.mxu0 0
    %4090 = vmatpush2.bf16.msra.mxu0 0
    %4091 = vmatprep.subr.bf16.mxu0 0
    %4092 = vmatpush2.bf16.msra.mxu0 0
    %4093 = vmatprep.subr.bf16.mxu0 0
    %4094 = vmatpush2.bf16.msra.mxu0 0
    %4095 = vmatprep.subr.bf16.mxu0 0
    %4096 = vmatpush2.bf16.msra.mxu0 0
    %4097 = vmatprep.subr.bf16.mxu0 0
    %4098 = vmatpush2.bf16.msra.mxu0 0
    %4099 = vmatprep.subr.bf16.mxu0 0
    %4100 = vmatpush2.bf16.msra.mxu0 0
    %4101 = vmatprep.subr.bf16.mxu0 0
    %4102 = vmatpush2.bf16.msra.mxu0 0
    %4103 = vmatprep.mubr.bf16.mxu0 0
    %4104 = vmatmul.mubr.bf16.gmra.mxu0 %v4069
    %v4105 = vpop.f32.mrf.mxu0
    %v4106 = vadd.f32 %v4042, %v4105
    %v4107 = vpop.f32.mrf.mxu0
    %v4108 = vpop.f32.mrf.mxu0
    %v4109 = vadd.f32 %v4042, %v4108
    %v4110 = vpop.f32.mrf.mxu0
    %4111 = vdwg.mxu0
    %v4112 = vadd.f32 %v3898, %v4106
    %v4113 = vadd.f32 %v3899, %v4109
    %4114 = vst.msk [vmem:[#allocation2] sm:$0xff] %vm60, %v4112
    %4115 = vst.msk [vmem:[#allocation2 + $0x8] sm:$0xff] %vm60, %v4113
    // Predicated region
    $region62: #{transformer_encoder.1} parent=1 // pred_check
      _
    $region63: #{transformer_encoder.1} parent=1 // pred_check_branch
      %4117 = sbr.rel (0) target = $region65
    $region64: #{transformer_encoder.1} parent=1 // pred_region
      %s4119 = ssub.s32 256, 256
      %4120 = vsyncadd [#allocation3], %s4119
      %s4121 = sshll.u32 [#allocation2], 4
      %s4122 = int_to_ptr.vmem [resolvable:$true] %s4121
      %4127 = dma.vmem_to_hbm [thread:$0]  %s4122, 256, %s15, [#allocation3], 128, 128, 8
    $region65: #{transformer_encoder.1} parent=1 // pred_fallthru
      _
    // Predicated region
    $region66: #{transformer_encoder.1} parent=1 // pred_check
      _
    $region67: #{transformer_encoder.1} parent=1 // pred_check_branch
      %4129 = sbr.rel (0) target = $region69
    $region68: #{transformer_encoder.1} parent=1 // pred_region
      %4130 = dma.done [#allocation3], 256
    $region69: #{transformer_encoder.1} parent=1 // pred_fallthru
      _
    %4131 = vsyncpa [#allocation3], 1

</llo_original>
